<compile_context>
chip_gen: v7x
topology: tpu7x:2x2x1
jax: 0.10.0
libtpu: 0.0.40
codegen_flags: <defaults>
</compile_context>

<pallas_src>
import jax
import jax.numpy as jnp
from jax.experimental import pallas as pl
from jax.experimental.pallas import tpu as pltpu

SEQ_LEN = 15          # Attention(32, 15) fixes the input length
L1 = SEQ_LEN - 2      # 13 after conv_1 (k=3, valid)
L2 = L1 - 2           # 11 after conv_2 (k=3, valid)
C0, C1, C2 = 32, 64, 10
NEG_SLOPE = 0.01      # LeakyReLU default
BN_EPS = 1e-5


# ------------------------------ Pallas kernel ----------------------------------
def _encoder_kernel(x_ref, w0_ref, wlog_ref, fcb_ref, bcast_ref,
                    w1_ref, s1_ref, sh1_ref,
                    w2_ref, s2_ref, sh2_ref, o_ref):
    f32 = jnp.float32
    x = x_ref[...]                                                    # (Cin*15, TB)

    # conv_0 (1x1, no bias), folded with the position identity: one matmul.
    h0 = jnp.dot(w0_ref[...], x, preferred_element_type=f32)         # (480, TB)

    # Attention: per-position Linear(32 -> 1) folded into one matmul; softmax
    # over the 15 positions (sublane axis); broadcast back via a 0/1 matmul.
    logits = jnp.dot(wlog_ref[...], h0,
                     preferred_element_type=f32) + fcb_ref[...]      # (15, TB)
    m = jnp.max(logits, axis=0, keepdims=True)                       # (1, TB)
    e = jnp.exp(logits - m)
    attn = e / jnp.sum(e, axis=0, keepdims=True)                     # (15, TB)
    attn_full = jnp.dot(bcast_ref[...], attn,
                        preferred_element_type=f32)                  # (480, TB)
    y = h0 * attn_full                                               # (480, TB)

    # conv_1 (k=3) as one block-Toeplitz matmul + folded BN + LeakyReLU.
    h1 = jnp.dot(w1_ref[...], y, preferred_element_type=f32)         # (832, TB)
    h1 = h1 * s1_ref[...] + sh1_ref[...]
    h1 = jnp.where(h1 > 0, h1, NEG_SLOPE * h1)

    # conv_2 (k=3) as one block-Toeplitz matmul + folded BN + LeakyReLU.
    h2 = jnp.dot(w2_ref[...], h1, preferred_element_type=f32)        # (110, TB)
    h2 = h2 * s2_ref[...] + sh2_ref[...]
    h2 = jnp.where(h2 > 0, h2, NEG_SLOPE * h2)

    o_ref[...] = h2                                                  # (110, TB)


def cnn_peptide_encoder(x, kernel_params, *, tb_max=512):
    """x: (B, Cin, 15) f32 -> (B, 10, 11) f32."""
    B, Cin, L = x.shape
    assert L == SEQ_LEN, "Attention(32, 15) requires input length 15"
    assert tb_max % 128 == 0
    (w0big, wlog, fcb_col, bcast, w1big, s1r, sh1r, w2big, s2r, sh2r) = kernel_params

    # Batch tile: lane-aligned (multiple of 128), capped so the per-step working
    # set stays well under the scoped-VMEM defaults on v5e/v6e/v7x (~10 MiB @ 512).
    TB = min(tb_max, pl.cdiv(B, 128) * 128)
    num_tiles = pl.cdiv(B, TB)
    B_pad = num_tiles * TB

    # (B, Cin, 15) -> (Cin*15, B_pad): rows c*15+l, lanes = batch (lane-dense).
    x_r = jnp.transpose(x, (1, 2, 0)).reshape(Cin * SEQ_LEN, B)
    if B_pad != B:
        x_r = jnp.pad(x_r, ((0, 0), (0, B_pad - B)))

    def full(a):  # whole-array, grid-invariant block (weights stay resident)
        return pl.BlockSpec(a.shape, lambda i, _nd=a.ndim: (0,) * _nd)

    out_r = pl.pallas_call(
        _encoder_kernel,
        out_shape=jax.ShapeDtypeStruct((C2 * L2, B_pad), jnp.float32),
        grid=(num_tiles,),
        in_specs=[
            pl.BlockSpec((Cin * SEQ_LEN, TB), lambda i: (0, i)),
            full(w0big), full(wlog), full(fcb_col), full(bcast),
            full(w1big), full(s1r), full(sh1r),
            full(w2big), full(s2r), full(sh2r),
        ],
        out_specs=pl.BlockSpec((C2 * L2, TB), lambda i: (0, i)),
        compiler_params=pltpu.CompilerParams(dimension_semantics=("parallel",)),
    )(x_r, w0big, wlog, fcb_col, bcast, w1big, s1r, sh1r, w2big, s2r, sh2r)

    # (110, B_pad) -> (B, 10, 11)
    return jnp.transpose(out_r[:, :B].reshape(C2, L2, B), (2, 0, 1))


# ------------------------------ parameter setup --------------------------------
def init_params(key, input_dim):
    ks = jax.random.split(key, 16)
    f = jnp.float32
    w0 = jax.random.normal(ks[0], (C0, input_dim), f) * 0.2          # conv_0 weight
    fcW = jax.random.normal(ks[1], (SEQ_LEN, C0), f) * 0.2           # fc_i weights
    fcb = jax.random.normal(ks[2], (SEQ_LEN,), f) * 0.1              # fc_i biases
    w1 = jax.random.normal(ks[3], (C1, C0, 3), f) * 0.1              # conv_1 (O,C,K)
    b1 = jax.random.normal(ks[4], (C1,), f) * 0.1
    g1 = 1.0 + 0.1 * jax.random.normal(ks[5], (C1,), f)              # bn_1 gamma
    be1 = 0.1 * jax.random.normal(ks[6], (C1,), f)                   # bn_1 beta
    m1 = 0.1 * jax.random.normal(ks[7], (C1,), f)                    # running mean
    v1 = 0.5 + jax.random.uniform(ks[8], (C1,), f)                   # running var
    w2 = jax.random.normal(ks[9], (C2, C1, 3), f) * 0.1              # conv_2
    b2 = jax.random.normal(ks[10], (C2,), f) * 0.1
    g2 = 1.0 + 0.1 * jax.random.normal(ks[11], (C2,), f)
    be2 = 0.1 * jax.random.normal(ks[12], (C2,), f)
    m2 = 0.1 * jax.random.normal(ks[13], (C2,), f)
    v2 = 0.5 + jax.random.uniform(ks[14], (C2,), f)
    return (w0, fcW, fcb, w1, b1, g1, be1, m1, v1, w2, b2, g2, be2, m2, v2)


def _toeplitz_taps(l_out, l_in, k):
    rows = jnp.arange(l_out)[:, None]
    cols = jnp.arange(l_in)[None, :]
    return jnp.stack([(cols == rows + t).astype(jnp.float32) for t in range(k)])


def fold_params(raw):
    """Glue (host side): fold convs into block-Toeplitz matmuls, the per-position
    FCs into one matmul, and eval-mode BN into per-row scale/shift."""
    (w0, fcW, fcb, w1, b1, g1, be1, m1, v1, w2, b2, g2, be2, m2, v2) = raw
    eye = jnp.eye(SEQ_LEN, dtype=jnp.float32)

    # conv_0: [o*15+l, c*15+l'] = w0[o,c] * delta(l, l')
    w0big = jnp.kron(w0, eye)                                        # (480, Cin*15)
    # attention logits: [l, o*15+l'] = fcW[l,o] * delta(l, l')
    wlog = jnp.einsum('lo,lm->lom', fcW, eye).reshape(SEQ_LEN, C0 * SEQ_LEN)
    fcb_col = fcb.reshape(SEQ_LEN, 1)
    # broadcast attn (15, TB) -> (480, TB) via 0/1 matmul
    bcast = jnp.tile(eye, (C0, 1))                                   # (480, 15)

    # conv_1: [o*13+p, c*15+l] = w1[o, c, l-p] for 0 <= l-p < 3
    t1 = _toeplitz_taps(L1, SEQ_LEN, 3)                              # (3, 13, 15)
    w1big = jnp.einsum('ock,kpl->opcl', w1, t1).reshape(C1 * L1, C0 * SEQ_LEN)
    # conv_2: [o*11+q, c*13+p] = w2[o, c, p-q] for 0 <= p-q < 3
    t2 = _toeplitz_taps(L2, L1, 3)                                   # (3, 11, 13)
    w2big = jnp.einsum('ock,kpl->opcl', w2, t2).reshape(C2 * L2, C1 * L1)

    # eval-mode BN folded with conv bias: y = conv*s + ((bias - mean)*s + beta)
    s1 = g1 / jnp.sqrt(v1 + BN_EPS)
    sh1 = (b1 - m1) * s1 + be1
    s2 = g2 / jnp.sqrt(v2 + BN_EPS)
    sh2 = (b2 - m2) * s2 + be2
    s1r = jnp.repeat(s1, L1).reshape(-1, 1)                          # (832, 1)
    sh1r = jnp.repeat(sh1, L1).reshape(-1, 1)
    s2r = jnp.repeat(s2, L2).reshape(-1, 1)                          # (110, 1)
    sh2r = jnp.repeat(sh2, L2).reshape(-1, 1)
    return (w0big, wlog, fcb_col, bcast, w1big, s1r, sh1r, w2big, s2r, sh2r)


# ------------------------------ pure-JAX reference -----------------------------
def reference(x, raw):
    (w0, fcW, fcb, w1, b1, g1, be1, m1, v1, w2, b2, g2, be2, m2, v2) = raw
    h0 = jnp.einsum('oc,bcl->bol', w0, x)                       # conv_0
    sf = jnp.transpose(h0, (0, 2, 1))                           # (B, 15, 32)
    logits = jnp.einsum('blc,lc->bl', sf, fcW) + fcb            # per-position fc_i
    attn = jax.nn.softmax(logits, axis=1)[..., None]
    y = jnp.transpose(sf * attn, (0, 2, 1))                     # (B, 32, 15)

    def conv1d(z, w, b):
        K = w.shape[2]
        Lout = z.shape[2] - K + 1
        acc = sum(jnp.einsum('oc,bcl->bol', w[:, :, k], z[:, :, k:k + Lout])
                  for k in range(K))
        return acc + b[None, :, None]

    def bn(z, g, be, m, v):
        return (z - m[None, :, None]) / jnp.sqrt(v[None, :, None] + BN_EPS) \
               * g[None, :, None] + be[None, :, None]

    def lrelu(z):
        return jnp.where(z > 0, z, NEG_SLOPE * z)

    y = lrelu(bn(conv1d(y, w1, b1), g1, be1, m1, v1))
    y = lrelu(bn(conv1d(y, w2, b2), g2, be2, m2, v2))
    return y


if __name__ == "__main__":
    key = jax.random.PRNGKey(0)
    kx, kp = jax.random.split(key)

    B, input_dim = 2, 4
    x = jax.random.normal(kx, (B, input_dim, SEQ_LEN), jnp.float32)

    raw = init_params(kp, input_dim)
    kparams = fold_params(raw)

    out = cnn_peptide_encoder(x, kparams)
    out = jax.block_until_ready(out)

    ref = reference(x, raw)
    assert out.shape == (B, C2, L2), out.shape
    assert jnp.allclose(out, ref, rtol=2e-4, atol=2e-4), \
        float(jnp.max(jnp.abs(out - ref)))

    print("KERNEL_OK")
</pallas_src>

<mosaic_0001>
module attributes {stable_mosaic.version = 11 : i64} {
  func.func @_encoder_kernel(%arg0: i32, %arg1: memref<60x128xf32, #tpu.memory_space<vmem>>, %arg2: memref<480x60xf32, #tpu.memory_space<vmem>>, %arg3: memref<15x480xf32, #tpu.memory_space<vmem>>, %arg4: memref<15x1xf32, #tpu.memory_space<vmem>>, %arg5: memref<480x15xf32, #tpu.memory_space<vmem>>, %arg6: memref<832x480xf32, #tpu.memory_space<vmem>>, %arg7: memref<832x1xf32, #tpu.memory_space<vmem>>, %arg8: memref<832x1xf32, #tpu.memory_space<vmem>>, %arg9: memref<110x832xf32, #tpu.memory_space<vmem>>, %arg10: memref<110x1xf32, #tpu.memory_space<vmem>>, %arg11: memref<110x1xf32, #tpu.memory_space<vmem>>, %arg12: memref<110x128xf32, #tpu.memory_space<vmem>>) attributes {dimension_semantics = [#tpu.dimension_semantics<parallel>], iteration_bounds = array<i64: 1>, scalar_prefetch = 0 : i64, scratch_operands = 0 : i64, tpu.core_type = #tpu.core_type<tc>, window_params = [{transform_indices = @transform_0, window_bounds = array<i64: 60, 128>}, {pipeline_mode = #tpu.pipeline_mode<synchronous>, transform_indices = @transform_1, window_bounds = array<i64: 480, 60>}, {pipeline_mode = #tpu.pipeline_mode<synchronous>, transform_indices = @transform_2, window_bounds = array<i64: 15, 480>}, {pipeline_mode = #tpu.pipeline_mode<synchronous>, transform_indices = @transform_3, window_bounds = array<i64: 15, 1>}, {pipeline_mode = #tpu.pipeline_mode<synchronous>, transform_indices = @transform_4, window_bounds = array<i64: 480, 15>}, {pipeline_mode = #tpu.pipeline_mode<synchronous>, transform_indices = @transform_5, window_bounds = array<i64: 832, 480>}, {pipeline_mode = #tpu.pipeline_mode<synchronous>, transform_indices = @transform_6, window_bounds = array<i64: 832, 1>}, {pipeline_mode = #tpu.pipeline_mode<synchronous>, transform_indices = @transform_7, window_bounds = array<i64: 832, 1>}, {pipeline_mode = #tpu.pipeline_mode<synchronous>, transform_indices = @transform_8, window_bounds = array<i64: 110, 832>}, {pipeline_mode = #tpu.pipeline_mode<synchronous>, transform_indices = @transform_9, window_bounds = array<i64: 110, 1>}, {pipeline_mode = #tpu.pipeline_mode<synchronous>, transform_indices = @transform_10, window_bounds = array<i64: 110, 1>}, {transform_indices = @transform_11, window_bounds = array<i64: 110, 128>}]} {
    %c0 = arith.constant 0 : index
    %c0_0 = arith.constant 0 : index
    %0 = vector.load %arg1[%c0, %c0_0] : memref<60x128xf32, #tpu.memory_space<vmem>>, vector<60x128xf32>
    %c0_1 = arith.constant 0 : index
    %c0_2 = arith.constant 0 : index
    %1 = vector.load %arg2[%c0_1, %c0_2] : memref<480x60xf32, #tpu.memory_space<vmem>>, vector<480x60xf32>
    %cst = arith.constant dense<0.000000e+00> : vector<480x128xf32>
    %2 = tpu.matmul %1, %0, %cst {dimension_numbers = #tpu.dot_dimension_numbers<[1], [0], [0], [1], [0, 0, 1, 1], [], []>} : vector<480x60xf32>, vector<60x128xf32>, vector<480x128xf32> -> vector<480x128xf32>
    %c0_3 = arith.constant 0 : index
    %c0_4 = arith.constant 0 : index
    %3 = vector.load %arg3[%c0_3, %c0_4] : memref<15x480xf32, #tpu.memory_space<vmem>>, vector<15x480xf32>
    %cst_5 = arith.constant dense<0.000000e+00> : vector<15x128xf32>
    %4 = tpu.matmul %3, %2, %cst_5 {dimension_numbers = #tpu.dot_dimension_numbers<[1], [0], [0], [1], [0, 0, 1, 1], [], []>} : vector<15x480xf32>, vector<480x128xf32>, vector<15x128xf32> -> vector<15x128xf32>
    %c0_6 = arith.constant 0 : index
    %c0_7 = arith.constant 0 : index
    %5 = vector.load %arg4[%c0_6, %c0_7] : memref<15x1xf32, #tpu.memory_space<vmem>>, vector<15x1xf32>
    %6 = vector.broadcast %5 : vector<15x1xf32> to vector<15x128xf32>
    %7 = arith.addf %4, %6 : vector<15x128xf32>
    %cst_8 = arith.constant dense<0xFF800000> : vector<128xf32>
    %8 = vector.multi_reduction <maximumf>, %7, %cst_8 [0] : vector<15x128xf32> to vector<128xf32>
    %9 = vector.shape_cast %8 : vector<128xf32> to vector<1x128xf32>
    %10 = vector.broadcast %9 : vector<1x128xf32> to vector<15x128xf32>
    %11 = arith.subf %7, %10 : vector<15x128xf32>
    %12 = math.exp %11 : vector<15x128xf32>
    %cst_9 = arith.constant dense<0.000000e+00> : vector<128xf32>
    %13 = vector.multi_reduction <add>, %12, %cst_9 [0] : vector<15x128xf32> to vector<128xf32>
    %14 = vector.shape_cast %13 : vector<128xf32> to vector<1x128xf32>
    %15 = vector.broadcast %14 : vector<1x128xf32> to vector<15x128xf32>
    %16 = arith.divf %12, %15 : vector<15x128xf32>
    %c0_10 = arith.constant 0 : index
    %c0_11 = arith.constant 0 : index
    %17 = vector.load %arg5[%c0_10, %c0_11] : memref<480x15xf32, #tpu.memory_space<vmem>>, vector<480x15xf32>
    %cst_12 = arith.constant dense<0.000000e+00> : vector<480x128xf32>
    %18 = tpu.matmul %17, %16, %cst_12 {dimension_numbers = #tpu.dot_dimension_numbers<[1], [0], [0], [1], [0, 0, 1, 1], [], []>} : vector<480x15xf32>, vector<15x128xf32>, vector<480x128xf32> -> vector<480x128xf32>
    %19 = arith.mulf %2, %18 : vector<480x128xf32>
    %c0_13 = arith.constant 0 : index
    %c0_14 = arith.constant 0 : index
    %20 = vector.load %arg6[%c0_13, %c0_14] : memref<832x480xf32, #tpu.memory_space<vmem>>, vector<832x480xf32>
    %cst_15 = arith.constant dense<0.000000e+00> : vector<832x128xf32>
    %21 = tpu.matmul %20, %19, %cst_15 {dimension_numbers = #tpu.dot_dimension_numbers<[1], [0], [0], [1], [0, 0, 1, 1], [], []>} : vector<832x480xf32>, vector<480x128xf32>, vector<832x128xf32> -> vector<832x128xf32>
    %c0_16 = arith.constant 0 : index
    %c0_17 = arith.constant 0 : index
    %22 = vector.load %arg7[%c0_16, %c0_17] : memref<832x1xf32, #tpu.memory_space<vmem>>, vector<832x1xf32>
    %23 = vector.broadcast %22 : vector<832x1xf32> to vector<832x128xf32>
    %24 = arith.mulf %21, %23 : vector<832x128xf32>
    %c0_18 = arith.constant 0 : index
    %c0_19 = arith.constant 0 : index
    %25 = vector.load %arg8[%c0_18, %c0_19] : memref<832x1xf32, #tpu.memory_space<vmem>>, vector<832x1xf32>
    %26 = vector.broadcast %25 : vector<832x1xf32> to vector<832x128xf32>
    %27 = arith.addf %24, %26 : vector<832x128xf32>
    %cst_20 = arith.constant 0.000000e+00 : f32
    %28 = vector.broadcast %cst_20 : f32 to vector<832x128xf32>
    %29 = arith.cmpf ogt, %27, %28 : vector<832x128xf32>
    %cst_21 = arith.constant 0.00999999977 : f32
    %30 = vector.broadcast %cst_21 : f32 to vector<832x128xf32>
    %31 = arith.mulf %30, %27 : vector<832x128xf32>
    %32 = arith.select %29, %27, %31 : vector<832x128xi1>, vector<832x128xf32>
    %c0_22 = arith.constant 0 : index
    %c0_23 = arith.constant 0 : index
    %33 = vector.load %arg9[%c0_22, %c0_23] : memref<110x832xf32, #tpu.memory_space<vmem>>, vector<110x832xf32>
    %cst_24 = arith.constant dense<0.000000e+00> : vector<110x128xf32>
    %34 = tpu.matmul %33, %32, %cst_24 {dimension_numbers = #tpu.dot_dimension_numbers<[1], [0], [0], [1], [0, 0, 1, 1], [], []>} : vector<110x832xf32>, vector<832x128xf32>, vector<110x128xf32> -> vector<110x128xf32>
    %c0_25 = arith.constant 0 : index
    %c0_26 = arith.constant 0 : index
    %35 = vector.load %arg10[%c0_25, %c0_26] : memref<110x1xf32, #tpu.memory_space<vmem>>, vector<110x1xf32>
    %36 = vector.broadcast %35 : vector<110x1xf32> to vector<110x128xf32>
    %37 = arith.mulf %34, %36 : vector<110x128xf32>
    %c0_27 = arith.constant 0 : index
    %c0_28 = arith.constant 0 : index
    %38 = vector.load %arg11[%c0_27, %c0_28] : memref<110x1xf32, #tpu.memory_space<vmem>>, vector<110x1xf32>
    %39 = vector.broadcast %38 : vector<110x1xf32> to vector<110x128xf32>
    %40 = arith.addf %37, %39 : vector<110x128xf32>
    %cst_29 = arith.constant 0.000000e+00 : f32
    %41 = vector.broadcast %cst_29 : f32 to vector<110x128xf32>
    %42 = arith.cmpf ogt, %40, %41 : vector<110x128xf32>
    %cst_30 = arith.constant 0.00999999977 : f32
    %43 = vector.broadcast %cst_30 : f32 to vector<110x128xf32>
    %44 = arith.mulf %43, %40 : vector<110x128xf32>
    %45 = arith.select %42, %40, %44 : vector<110x128xi1>, vector<110x128xf32>
    %c0_31 = arith.constant 0 : index
    %c0_32 = arith.constant 0 : index
    %46 = vector.load %arg12[%c0_31, %c0_32] : memref<110x128xf32, #tpu.memory_space<vmem>>, vector<110x128xf32>
    tpu.vector_store %arg12[%c0_31, %c0_32], %45 {strides = array<i32>} : memref<110x128xf32, #tpu.memory_space<vmem>>, vector<110x128xf32>,
    return
  }
  func.func @transform_0(%arg0: i32) -> (i32, i32) {
    %c0_i32 = arith.constant 0 : i32
    %c0_i32_0 = arith.constant 0 : i32
    return %c0_i32, %arg0 : i32, i32
  }
  func.func @transform_1(%arg0: i32) -> (i32, i32) {
    %c0_i32 = arith.constant 0 : i32
    %c0_i32_0 = arith.constant 0 : i32
    %c0_i32_1 = arith.constant 0 : i32
    return %c0_i32, %c0_i32_0 : i32, i32
  }
  func.func @transform_2(%arg0: i32) -> (i32, i32) {
    %c0_i32 = arith.constant 0 : i32
    %c0_i32_0 = arith.constant 0 : i32
    %c0_i32_1 = arith.constant 0 : i32
    return %c0_i32, %c0_i32_0 : i32, i32
  }
  func.func @transform_3(%arg0: i32) -> (i32, i32) {
    %c0_i32 = arith.constant 0 : i32
    %c0_i32_0 = arith.constant 0 : i32
    %c0_i32_1 = arith.constant 0 : i32
    return %c0_i32, %c0_i32_0 : i32, i32
  }
  func.func @transform_4(%arg0: i32) -> (i32, i32) {
    %c0_i32 = arith.constant 0 : i32
    %c0_i32_0 = arith.constant 0 : i32
    %c0_i32_1 = arith.constant 0 : i32
    return %c0_i32, %c0_i32_0 : i32, i32
  }
  func.func @transform_5(%arg0: i32) -> (i32, i32) {
    %c0_i32 = arith.constant 0 : i32
    %c0_i32_0 = arith.constant 0 : i32
    %c0_i32_1 = arith.constant 0 : i32
    return %c0_i32, %c0_i32_0 : i32, i32
  }
  func.func @transform_6(%arg0: i32) -> (i32, i32) {
    %c0_i32 = arith.constant 0 : i32
    %c0_i32_0 = arith.constant 0 : i32
    %c0_i32_1 = arith.constant 0 : i32
    return %c0_i32, %c0_i32_0 : i32, i32
  }
  func.func @transform_7(%arg0: i32) -> (i32, i32) {
    %c0_i32 = arith.constant 0 : i32
    %c0_i32_0 = arith.constant 0 : i32
    %c0_i32_1 = arith.constant 0 : i32
    return %c0_i32, %c0_i32_0 : i32, i32
  }
  func.func @transform_8(%arg0: i32) -> (i32, i32) {
    %c0_i32 = arith.constant 0 : i32
    %c0_i32_0 = arith.constant 0 : i32
    %c0_i32_1 = arith.constant 0 : i32
    return %c0_i32, %c0_i32_0 : i32, i32
  }
  func.func @transform_9(%arg0: i32) -> (i32, i32) {
    %c0_i32 = arith.constant 0 : i32
    %c0_i32_0 = arith.constant 0 : i32
    %c0_i32_1 = arith.constant 0 : i32
    return %c0_i32, %c0_i32_0 : i32, i32
  }
  func.func @transform_10(%arg0: i32) -> (i32, i32) {
    %c0_i32 = arith.constant 0 : i32
    %c0_i32_0 = arith.constant 0 : i32
    %c0_i32_1 = arith.constant 0 : i32
    return %c0_i32, %c0_i32_0 : i32, i32
  }
  func.func @transform_11(%arg0: i32) -> (i32, i32) {
    %c0_i32 = arith.constant 0 : i32
    %c0_i32_0 = arith.constant 0 : i32
    return %c0_i32, %arg0 : i32, i32
  }
}

</mosaic_0001>

<llo_original>
// kernel: tpu_custom_call.1
$region0: #{tpu_custom_call.1}
  #allocation0 [shape = 'u32[]', space=smem, size = 0x4, offset = 0x4, fixed_abs, tag = 'smem constant byte address 0x4 - core index']
  #allocation1 [shape = 'u32[144,128]{1,0:T(1,128)}', space=vmem, size = 0x12000, scoped, tag = 'internal scratch']
  %s0 = inlined_call_operand.hbm [shape: f32[60,128], index: 0, kind: input, shape index: {}]
  %s1 = inlined_call_operand.vmem [shape: f32[480,60], index: 1, kind: input, shape index: {}]
  %s2 = inlined_call_operand.hbm [shape: f32[15,480], index: 2, kind: input, shape index: {}]
  %s3 = inlined_call_operand.vmem [shape: f32[15,1], index: 3, kind: input, shape index: {}]
  %s4 = inlined_call_operand.vmem [shape: f32[480,15], index: 4, kind: input, shape index: {}]
  %s5 = inlined_call_operand.hbm [shape: f32[832,480], index: 5, kind: input, shape index: {}]
  %s6 = inlined_call_operand.vmem [shape: f32[832,1], index: 6, kind: input, shape index: {}]
  %s7 = inlined_call_operand.vmem [shape: f32[832,1], index: 7, kind: input, shape index: {}]
  %s8 = inlined_call_operand.vmem [shape: f32[110,832], index: 8, kind: input, shape index: {}]
  %s9 = inlined_call_operand.vmem [shape: f32[110,1], index: 9, kind: input, shape index: {}]
  %s10 = inlined_call_operand.vmem [shape: f32[110,1], index: 10, kind: input, shape index: {}]
  %s11 = inlined_call_operand.hbm [shape: f32[110,128], index: 11, kind: output, shape index: {}]
  %s12 = sld [smem:[#allocation0]]
  $region66: #{tpu_custom_call.1} parent=0
    _
  %s14 = ssub.s32 1, %s12
  %s15 = scalar_select 0, %s14, %s12
  $region1: #{tpu_custom_call.1} parent=0
    #allocation2 [shape = 'u8[32768]{0}', space=vmem, size = 0x8000, scoped, tag = 'input window, operand 0, single buffered']
    #allocation3 [shape = 's32[1]{0}', space=sflag, size = 0x4, scoped, tag = 'scoped memory for tpu_custom_call.1']
    #allocation4 [shape = 's32[1]{0}', space=sflag, size = 0x4, scoped, tag = 'scoped memory for tpu_custom_call.1']
    #allocation5 [shape = 'u8[32768]{0}', space=vmem, size = 0x8000, scoped, tag = 'input window, operand 2, single buffered']
    #allocation6 [shape = 's32[1]{0}', space=sflag, size = 0x4, scoped, tag = 'scoped memory for tpu_custom_call.1']
    #allocation7 [shape = 'u8[1703936]{0}', space=vmem, size = 0x1a0000, scoped, tag = 'input window, operand 5, single buffered']
    #allocation8 [shape = 'u8[57344]{0}', space=vmem, size = 0xe000, scoped, tag = 'output window, operand 0, single buffered']
    %16 = vsyncpa [#allocation3], 0
    %17 = vsyncpa [#allocation6], 0
    %18 = vsyncpa [#allocation4], 0
    // Predicated region
    $region2: #{tpu_custom_call.1} parent=1 // pred_check
      _
    $region3: #{tpu_custom_call.1} parent=1 // pred_check_branch
      %20 = sbr.rel (0) target = $region5
    $region4: #{tpu_custom_call.1} parent=1 // pred_region
      %s22 = ssub.s32 1024, 1024
      %23 = vsyncadd [#allocation3], %s22
      %s24 = sshll.u32 [#allocation2], 4
      %s25 = int_to_ptr.vmem [resolvable:$true] %s24
      %30 = dma.hbm_to_vmem [thread:$0]  %s0, 1024, %s25, [#allocation3], 128, 128, 8
    $region5: #{tpu_custom_call.1} parent=1 // pred_fallthru
      _
    // Predicated region
    $region6: #{tpu_custom_call.1} parent=1 // pred_check
      _
    $region7: #{tpu_custom_call.1} parent=1 // pred_check_branch
      %32 = sbr.rel (0) target = $region9
    $region8: #{tpu_custom_call.1} parent=1 // pred_region
      _
    $region9: #{tpu_custom_call.1} parent=1 // pred_fallthru
      _
    // Predicated region
    $region10: #{tpu_custom_call.1} parent=1 // pred_check
      _
    $region11: #{tpu_custom_call.1} parent=1 // pred_check_branch
      %34 = sbr.rel (0) target = $region13
    $region12: #{tpu_custom_call.1} parent=1 // pred_region
      %s36 = ssub.s32 1024, 1024
      %37 = vsyncadd [#allocation6], %s36
      %s38 = sshll.u32 [#allocation5], 4
      %s39 = int_to_ptr.vmem [resolvable:$true] %s38
      %44 = dma.hbm_to_vmem [thread:$0]  %s2, 1024, %s39, [#allocation6], 512, 512, 32
    $region13: #{tpu_custom_call.1} parent=1 // pred_fallthru
      _
    // Predicated region
    $region14: #{tpu_custom_call.1} parent=1 // pred_check
      _
    $region15: #{tpu_custom_call.1} parent=1 // pred_check_branch
      %46 = sbr.rel (0) target = $region17
    $region16: #{tpu_custom_call.1} parent=1 // pred_region
      _
    $region17: #{tpu_custom_call.1} parent=1 // pred_fallthru
      _
    // Predicated region
    $region18: #{tpu_custom_call.1} parent=1 // pred_check
      _
    $region19: #{tpu_custom_call.1} parent=1 // pred_check_branch
      %48 = sbr.rel (0) target = $region21
    $region20: #{tpu_custom_call.1} parent=1 // pred_region
      _
    $region21: #{tpu_custom_call.1} parent=1 // pred_fallthru
      _
    // Predicated region
    $region22: #{tpu_custom_call.1} parent=1 // pred_check
      _
    $region23: #{tpu_custom_call.1} parent=1 // pred_check_branch
      %50 = sbr.rel (0) target = $region25
    $region24: #{tpu_custom_call.1} parent=1 // pred_region
      %s52 = ssub.s32 53248, 53248
      %53 = vsyncadd [#allocation6], %s52
      %s54 = sshll.u32 [#allocation7], 4
      %s55 = int_to_ptr.vmem [resolvable:$true] %s54
      %60 = dma.hbm_to_vmem [thread:$0]  %s5, 53248, %s55, [#allocation6], 512, 512, 32
    $region25: #{tpu_custom_call.1} parent=1 // pred_fallthru
      _
    // Predicated region
    $region26: #{tpu_custom_call.1} parent=1 // pred_check
      _
    $region27: #{tpu_custom_call.1} parent=1 // pred_check_branch
      %62 = sbr.rel (0) target = $region29
    $region28: #{tpu_custom_call.1} parent=1 // pred_region
      _
    $region29: #{tpu_custom_call.1} parent=1 // pred_fallthru
      _
    // Predicated region
    $region30: #{tpu_custom_call.1} parent=1 // pred_check
      _
    $region31: #{tpu_custom_call.1} parent=1 // pred_check_branch
      %64 = sbr.rel (0) target = $region33
    $region32: #{tpu_custom_call.1} parent=1 // pred_region
      _
    $region33: #{tpu_custom_call.1} parent=1 // pred_fallthru
      _
    // Predicated region
    $region34: #{tpu_custom_call.1} parent=1 // pred_check
      _
    $region35: #{tpu_custom_call.1} parent=1 // pred_check_branch
      %66 = sbr.rel (0) target = $region37
    $region36: #{tpu_custom_call.1} parent=1 // pred_region
      _
    $region37: #{tpu_custom_call.1} parent=1 // pred_fallthru
      _
    // Predicated region
    $region38: #{tpu_custom_call.1} parent=1 // pred_check
      _
    $region39: #{tpu_custom_call.1} parent=1 // pred_check_branch
      %68 = sbr.rel (0) target = $region41
    $region40: #{tpu_custom_call.1} parent=1 // pred_region
      _
    $region41: #{tpu_custom_call.1} parent=1 // pred_fallthru
      _
    // Predicated region
    $region42: #{tpu_custom_call.1} parent=1 // pred_check
      _
    $region43: #{tpu_custom_call.1} parent=1 // pred_check_branch
      %70 = sbr.rel (0) target = $region45
    $region44: #{tpu_custom_call.1} parent=1 // pred_region
      _
    $region45: #{tpu_custom_call.1} parent=1 // pred_fallthru
      _
    // Predicated region
    $region46: #{tpu_custom_call.1} parent=1 // pred_check
      _
    $region47: #{tpu_custom_call.1} parent=1 // pred_check_branch
      %72 = sbr.rel (0) target = $region49
    $region48: #{tpu_custom_call.1} parent=1 // pred_region
      %73 = dma.done [#allocation3], 1024
    $region49: #{tpu_custom_call.1} parent=1 // pred_fallthru
      _
    // Predicated region
    $region50: #{tpu_custom_call.1} parent=1 // pred_check
      _
    $region51: #{tpu_custom_call.1} parent=1 // pred_check_branch
      %75 = sbr.rel (0) target = $region53
    $region52: #{tpu_custom_call.1} parent=1 // pred_region
      %76 = dma.done [#allocation6], 1024
    $region53: #{tpu_custom_call.1} parent=1 // pred_fallthru
      _
    // Predicated region
    $region54: #{tpu_custom_call.1} parent=1 // pred_check
      _
    $region55: #{tpu_custom_call.1} parent=1 // pred_check_branch
      %78 = sbr.rel (0) target = $region57
    $region56: #{tpu_custom_call.1} parent=1 // pred_region
      %79 = dma.done [#allocation6], 53248
    $region57: #{tpu_custom_call.1} parent=1 // pred_fallthru
      _
    %v80 = vld [vmem:[#allocation2] sm:$0xff]
    %v81 = vld [vmem:[#allocation2 + $0x8] sm:$0xff]
    %v82 = vld [vmem:[#allocation2 + $0x10] sm:$0xff]
    %v83 = vld [vmem:[#allocation2 + $0x18] sm:$0xff]
    %v84 = vld [vmem:[#allocation2 + $0x20] sm:$0xff]
    %v85 = vld [vmem:[#allocation2 + $0x28] sm:$0xff]
    %v86 = vld [vmem:[#allocation2 + $0x30] sm:$0xff]
    %v87 = vld [vmem:[#allocation2 + $0x38] sm:$0xf]
    %v88 = vld [vmem:[%s1] sm:$0xff]
    %v89 = vld [vmem:[%s1 + $0x8] sm:$0xff]
    %v90 = vld [vmem:[%s1 + $0x10] sm:$0xff]
    %v91 = vld [vmem:[%s1 + $0x18] sm:$0xff]
    %v92 = vld [vmem:[%s1 + $0x20] sm:$0xff]
    %v93 = vld [vmem:[%s1 + $0x28] sm:$0xff]
    %v94 = vld [vmem:[%s1 + $0x30] sm:$0xff]
    %v95 = vld [vmem:[%s1 + $0x38] sm:$0xff]
    %v96 = vld [vmem:[%s1 + $0x40] sm:$0xff]
    %v97 = vld [vmem:[%s1 + $0x48] sm:$0xff]
    %v98 = vld [vmem:[%s1 + $0x50] sm:$0xff]
    %v99 = vld [vmem:[%s1 + $0x58] sm:$0xff]
    %v100 = vld [vmem:[%s1 + $0x60] sm:$0xff]
    %v101 = vld [vmem:[%s1 + $0x68] sm:$0xff]
    %v102 = vld [vmem:[%s1 + $0x70] sm:$0xff]
    %v103 = vld [vmem:[%s1 + $0x78] sm:$0xff]
    %v104 = vld [vmem:[%s1 + $0x80] sm:$0xff]
    %v105 = vld [vmem:[%s1 + $0x88] sm:$0xff]
    %v106 = vld [vmem:[%s1 + $0x90] sm:$0xff]
    %v107 = vld [vmem:[%s1 + $0x98] sm:$0xff]
    %v108 = vld [vmem:[%s1 + $0xa0] sm:$0xff]
    %v109 = vld [vmem:[%s1 + $0xa8] sm:$0xff]
    %v110 = vld [vmem:[%s1 + $0xb0] sm:$0xff]
    %v111 = vld [vmem:[%s1 + $0xb8] sm:$0xff]
    %v112 = vld [vmem:[%s1 + $0xc0] sm:$0xff]
    %v113 = vld [vmem:[%s1 + $0xc8] sm:$0xff]
    %v114 = vld [vmem:[%s1 + $0xd0] sm:$0xff]
    %v115 = vld [vmem:[%s1 + $0xd8] sm:$0xff]
    %v116 = vld [vmem:[%s1 + $0xe0] sm:$0xff]
    %v117 = vld [vmem:[%s1 + $0xe8] sm:$0xff]
    %v118 = vld [vmem:[%s1 + $0xf0] sm:$0xff]
    %v119 = vld [vmem:[%s1 + $0xf8] sm:$0xff]
    %v120 = vld [vmem:[%s1 + $0x100] sm:$0xff]
    %v121 = vld [vmem:[%s1 + $0x108] sm:$0xff]
    %v122 = vld [vmem:[%s1 + $0x110] sm:$0xff]
    %v123 = vld [vmem:[%s1 + $0x118] sm:$0xff]
    %v124 = vld [vmem:[%s1 + $0x120] sm:$0xff]
    %v125 = vld [vmem:[%s1 + $0x128] sm:$0xff]
    %v126 = vld [vmem:[%s1 + $0x130] sm:$0xff]
    %v127 = vld [vmem:[%s1 + $0x138] sm:$0xff]
    %v128 = vld [vmem:[%s1 + $0x140] sm:$0xff]
    %v129 = vld [vmem:[%s1 + $0x148] sm:$0xff]
    %v130 = vld [vmem:[%s1 + $0x150] sm:$0xff]
    %v131 = vld [vmem:[%s1 + $0x158] sm:$0xff]
    %v132 = vld [vmem:[%s1 + $0x160] sm:$0xff]
    %v133 = vld [vmem:[%s1 + $0x168] sm:$0xff]
    %v134 = vld [vmem:[%s1 + $0x170] sm:$0xff]
    %v135 = vld [vmem:[%s1 + $0x178] sm:$0xff]
    %v136 = vld [vmem:[%s1 + $0x180] sm:$0xff]
    %v137 = vld [vmem:[%s1 + $0x188] sm:$0xff]
    %v138 = vld [vmem:[%s1 + $0x190] sm:$0xff]
    %v139 = vld [vmem:[%s1 + $0x198] sm:$0xff]
    %v140 = vld [vmem:[%s1 + $0x1a0] sm:$0xff]
    %v141 = vld [vmem:[%s1 + $0x1a8] sm:$0xff]
    %v142 = vld [vmem:[%s1 + $0x1b0] sm:$0xff]
    %v143 = vld [vmem:[%s1 + $0x1b8] sm:$0xff]
    %v144 = vld [vmem:[%s1 + $0x1c0] sm:$0xff]
    %v145 = vld [vmem:[%s1 + $0x1c8] sm:$0xff]
    %v146 = vld [vmem:[%s1 + $0x1d0] sm:$0xff]
    %v147 = vld [vmem:[%s1 + $0x1d8] sm:$0xff]
    %vm148 = vcmask 490496
    %v150 = vsel %vm148, %v88, 0
    %v153 = vsel %vm148, %v89, 0
    %v156 = vsel %vm148, %v90, 0
    %v159 = vsel %vm148, %v91, 0
    %v162 = vsel %vm148, %v92, 0
    %v165 = vsel %vm148, %v93, 0
    %v168 = vsel %vm148, %v94, 0
    %v171 = vsel %vm148, %v95, 0
    %v174 = vsel %vm148, %v96, 0
    %v177 = vsel %vm148, %v97, 0
    %v180 = vsel %vm148, %v98, 0
    %v183 = vsel %vm148, %v99, 0
    %v186 = vsel %vm148, %v100, 0
    %v189 = vsel %vm148, %v101, 0
    %v192 = vsel %vm148, %v102, 0
    %v195 = vsel %vm148, %v103, 0
    %v198 = vsel %vm148, %v104, 0
    %v201 = vsel %vm148, %v105, 0
    %v204 = vsel %vm148, %v106, 0
    %v207 = vsel %vm148, %v107, 0
    %v210 = vsel %vm148, %v108, 0
    %v213 = vsel %vm148, %v109, 0
    %v216 = vsel %vm148, %v110, 0
    %v219 = vsel %vm148, %v111, 0
    %v222 = vsel %vm148, %v112, 0
    %v225 = vsel %vm148, %v113, 0
    %v228 = vsel %vm148, %v114, 0
    %v231 = vsel %vm148, %v115, 0
    %v234 = vsel %vm148, %v116, 0
    %v237 = vsel %vm148, %v117, 0
    %v240 = vsel %vm148, %v118, 0
    %v243 = vsel %vm148, %v119, 0
    %v246 = vsel %vm148, %v120, 0
    %v249 = vsel %vm148, %v121, 0
    %v252 = vsel %vm148, %v122, 0
    %v255 = vsel %vm148, %v123, 0
    %v258 = vsel %vm148, %v124, 0
    %v261 = vsel %vm148, %v125, 0
    %v264 = vsel %vm148, %v126, 0
    %v267 = vsel %vm148, %v127, 0
    %v270 = vsel %vm148, %v128, 0
    %v273 = vsel %vm148, %v129, 0
    %v276 = vsel %vm148, %v130, 0
    %v279 = vsel %vm148, %v131, 0
    %v282 = vsel %vm148, %v132, 0
    %v285 = vsel %vm148, %v133, 0
    %v288 = vsel %vm148, %v134, 0
    %v291 = vsel %vm148, %v135, 0
    %v294 = vsel %vm148, %v136, 0
    %v297 = vsel %vm148, %v137, 0
    %v300 = vsel %vm148, %v138, 0
    %v303 = vsel %vm148, %v139, 0
    %v306 = vsel %vm148, %v140, 0
    %v309 = vsel %vm148, %v141, 0
    %v312 = vsel %vm148, %v142, 0
    %v315 = vsel %vm148, %v143, 0
    %v318 = vsel %vm148, %v144, 0
    %v321 = vsel %vm148, %v145, 0
    %v324 = vsel %vm148, %v146, 0
    %v327 = vsel %vm148, %v147, 0
    %vm329 = vcmask 1043456
    %v331 = vsel %vm329, %v87, 0
    %333 = vmatprep.subr.mxu0 0.0
    %334 = vmatpush1.msra.mxu0 %v80
    %335 = vmatprep.subr.mxu0 0.0
    %336 = vmatpush1.msra.mxu0 %v81
    %337 = vmatprep.subr.mxu0 0.0
    %338 = vmatpush1.msra.mxu0 %v82
    %339 = vmatprep.subr.mxu0 0.0
    %340 = vmatpush1.msra.mxu0 %v83
    %341 = vmatprep.subr.mxu0 0.0
    %342 = vmatpush1.msra.mxu0 %v84
    %343 = vmatprep.subr.mxu0 0.0
    %344 = vmatpush1.msra.mxu0 %v85
    %345 = vmatprep.subr.mxu0 0.0
    %346 = vmatpush1.msra.mxu0 %v86
    %347 = vmatprep.subr.mxu0 0.0
    %348 = vmatpush1.msra.mxu0 %v331
    %349 = vmatprep.subr.mxu0 0.0
    %350 = vmatpush1.msra.mxu0 0.0
    %351 = vmatprep.subr.mxu0 0.0
    %352 = vmatpush1.msra.mxu0 0.0
    %353 = vmatprep.subr.mxu0 0.0
    %354 = vmatpush1.msra.mxu0 0.0
    %355 = vmatprep.subr.mxu0 0.0
    %356 = vmatpush1.msra.mxu0 0.0
    %357 = vmatprep.subr.mxu0 0.0
    %358 = vmatpush1.msra.mxu0 0.0
    %359 = vmatprep.subr.mxu0 0.0
    %360 = vmatpush1.msra.mxu0 0.0
    %361 = vmatprep.subr.mxu0 0.0
    %362 = vmatpush1.msra.mxu0 0.0
    %363 = vmatprep.subr.mxu0 0.0
    %364 = vmatpush1.msra.mxu0 0.0
    %365 = vmatprep.subr.mxu0 0.0
    %366 = vmatpush1.msra.mxu0 0.0
    %367 = vmatprep.subr.mxu0 0.0
    %368 = vmatpush1.msra.mxu0 0.0
    %369 = vmatprep.subr.mxu0 0.0
    %370 = vmatpush1.msra.mxu0 0.0
    %371 = vmatprep.subr.mxu0 0.0
    %372 = vmatpush1.msra.mxu0 0.0
    %373 = vmatprep.subr.mxu0 0.0
    %374 = vmatpush1.msra.mxu0 0.0
    %375 = vmatprep.subr.mxu0 0.0
    %376 = vmatpush1.msra.mxu0 0.0
    %377 = vmatprep.subr.mxu0 0.0
    %378 = vmatpush1.msra.mxu0 0.0
    %379 = vmatprep.subr.mxu0 0.0
    %380 = vmatpush1.msra.mxu0 0.0
    %381 = vmatprep.subr.mxu0 0.0
    %382 = vmatpush1.msra.mxu0 0.0
    %383 = vmatprep.subr.mxu0 0.0
    %384 = vmatpush1.msra.mxu0 0.0
    %385 = vmatprep.subr.mxu0 0.0
    %386 = vmatpush1.msra.mxu0 0.0
    %387 = vmatprep.subr.mxu0 0.0
    %388 = vmatpush1.msra.mxu0 0.0
    %389 = vmatprep.subr.mxu0 0.0
    %390 = vmatpush1.msra.mxu0 0.0
    %391 = vmatprep.subr.mxu0 0.0
    %392 = vmatpush1.msra.mxu0 0.0
    %393 = vmatprep.subr.mxu0 0.0
    %394 = vmatpush1.msra.mxu0 0.0
    %395 = vmatprep.subr.mxu0 0.0
    %396 = vmatpush1.msra.mxu0 0.0
    %397 = vmatprep.mubr.f32.mxu0 0.0
    %398 = vmatmul.mubr.f32.gmra.mrb[0].mxu0 %v150
    %v399 = vpop.f32.mrb[0].mxu0
    %v400 = vadd.f32 0.0, %v399
    %v401 = vpop.f32.mrb[0].mxu0
    %402 = vmatprep.mubr.f32.mxu0 0.0
    %403 = vmatmul.mubr.f32.gmra.mrb[0].mxu0 %v153
    %v404 = vpop.f32.mrb[0].mxu0
    %v405 = vadd.f32 0.0, %v404
    %v406 = vpop.f32.mrb[0].mxu0
    %407 = vmatprep.mubr.f32.mxu0 0.0
    %408 = vmatmul.mubr.f32.gmra.mrb[0].mxu0 %v156
    %v409 = vpop.f32.mrb[0].mxu0
    %v410 = vadd.f32 0.0, %v409
    %v411 = vpop.f32.mrb[0].mxu0
    %412 = vmatprep.mubr.f32.mxu0 0.0
    %413 = vmatmul.mubr.f32.gmra.mrb[0].mxu0 %v159
    %v414 = vpop.f32.mrb[0].mxu0
    %v415 = vadd.f32 0.0, %v414
    %v416 = vpop.f32.mrb[0].mxu0
    %417 = vmatprep.mubr.f32.mxu0 0.0
    %418 = vmatmul.mubr.f32.gmra.mrb[0].mxu0 %v162
    %v419 = vpop.f32.mrb[0].mxu0
    %v420 = vadd.f32 0.0, %v419
    %v421 = vpop.f32.mrb[0].mxu0
    %422 = vmatprep.mubr.f32.mxu0 0.0
    %423 = vmatmul.mubr.f32.gmra.mrb[0].mxu0 %v165
    %v424 = vpop.f32.mrb[0].mxu0
    %v425 = vadd.f32 0.0, %v424
    %v426 = vpop.f32.mrb[0].mxu0
    %427 = vmatprep.mubr.f32.mxu0 0.0
    %428 = vmatmul.mubr.f32.gmra.mrb[0].mxu0 %v168
    %v429 = vpop.f32.mrb[0].mxu0
    %v430 = vadd.f32 0.0, %v429
    %v431 = vpop.f32.mrb[0].mxu0
    %432 = vmatprep.mubr.f32.mxu0 0.0
    %433 = vmatmul.mubr.f32.gmra.mrb[0].mxu0 %v171
    %v434 = vpop.f32.mrb[0].mxu0
    %v435 = vadd.f32 0.0, %v434
    %v436 = vpop.f32.mrb[0].mxu0
    %437 = vmatprep.mubr.f32.mxu0 0.0
    %438 = vmatmul.mubr.f32.gmra.mrb[0].mxu0 %v174
    %v439 = vpop.f32.mrb[0].mxu0
    %v440 = vadd.f32 0.0, %v439
    %v441 = vpop.f32.mrb[0].mxu0
    %442 = vmatprep.mubr.f32.mxu0 0.0
    %443 = vmatmul.mubr.f32.gmra.mrb[0].mxu0 %v177
    %v444 = vpop.f32.mrb[0].mxu0
    %v445 = vadd.f32 0.0, %v444
    %v446 = vpop.f32.mrb[0].mxu0
    %447 = vmatprep.mubr.f32.mxu0 0.0
    %448 = vmatmul.mubr.f32.gmra.mrb[0].mxu0 %v180
    %v449 = vpop.f32.mrb[0].mxu0
    %v450 = vadd.f32 0.0, %v449
    %v451 = vpop.f32.mrb[0].mxu0
    %452 = vmatprep.mubr.f32.mxu0 0.0
    %453 = vmatmul.mubr.f32.gmra.mrb[0].mxu0 %v183
    %v454 = vpop.f32.mrb[0].mxu0
    %v455 = vadd.f32 0.0, %v454
    %v456 = vpop.f32.mrb[0].mxu0
    %457 = vmatprep.mubr.f32.mxu0 0.0
    %458 = vmatmul.mubr.f32.gmra.mrb[0].mxu0 %v186
    %v459 = vpop.f32.mrb[0].mxu0
    %v460 = vadd.f32 0.0, %v459
    %v461 = vpop.f32.mrb[0].mxu0
    %462 = vmatprep.mubr.f32.mxu0 0.0
    %463 = vmatmul.mubr.f32.gmra.mrb[0].mxu0 %v189
    %v464 = vpop.f32.mrb[0].mxu0
    %v465 = vadd.f32 0.0, %v464
    %v466 = vpop.f32.mrb[0].mxu0
    %467 = vmatprep.mubr.f32.mxu0 0.0
    %468 = vmatmul.mubr.f32.gmra.mrb[0].mxu0 %v192
    %v469 = vpop.f32.mrb[0].mxu0
    %v470 = vadd.f32 0.0, %v469
    %v471 = vpop.f32.mrb[0].mxu0
    %472 = vmatprep.mubr.f32.mxu0 0.0
    %473 = vmatmul.mubr.f32.gmra.mrb[0].mxu0 %v195
    %v474 = vpop.f32.mrb[0].mxu0
    %v475 = vadd.f32 0.0, %v474
    %v476 = vpop.f32.mrb[0].mxu0
    %477 = vmatprep.mubr.f32.mxu0 0.0
    %478 = vmatmul.mubr.f32.gmra.mrb[0].mxu0 %v198
    %v479 = vpop.f32.mrb[0].mxu0
    %v480 = vadd.f32 0.0, %v479
    %v481 = vpop.f32.mrb[0].mxu0
    %482 = vmatprep.mubr.f32.mxu0 0.0
    %483 = vmatmul.mubr.f32.gmra.mrb[0].mxu0 %v201
    %v484 = vpop.f32.mrb[0].mxu0
    %v485 = vadd.f32 0.0, %v484
    %v486 = vpop.f32.mrb[0].mxu0
    %487 = vmatprep.mubr.f32.mxu0 0.0
    %488 = vmatmul.mubr.f32.gmra.mrb[0].mxu0 %v204
    %v489 = vpop.f32.mrb[0].mxu0
    %v490 = vadd.f32 0.0, %v489
    %v491 = vpop.f32.mrb[0].mxu0
    %492 = vmatprep.mubr.f32.mxu0 0.0
    %493 = vmatmul.mubr.f32.gmra.mrb[0].mxu0 %v207
    %v494 = vpop.f32.mrb[0].mxu0
    %v495 = vadd.f32 0.0, %v494
    %v496 = vpop.f32.mrb[0].mxu0
    %497 = vmatprep.mubr.f32.mxu0 0.0
    %498 = vmatmul.mubr.f32.gmra.mrb[0].mxu0 %v210
    %v499 = vpop.f32.mrb[0].mxu0
    %v500 = vadd.f32 0.0, %v499
    %v501 = vpop.f32.mrb[0].mxu0
    %502 = vmatprep.mubr.f32.mxu0 0.0
    %503 = vmatmul.mubr.f32.gmra.mrb[0].mxu0 %v213
    %v504 = vpop.f32.mrb[0].mxu0
    %v505 = vadd.f32 0.0, %v504
    %v506 = vpop.f32.mrb[0].mxu0
    %507 = vmatprep.mubr.f32.mxu0 0.0
    %508 = vmatmul.mubr.f32.gmra.mrb[0].mxu0 %v216
    %v509 = vpop.f32.mrb[0].mxu0
    %v510 = vadd.f32 0.0, %v509
    %v511 = vpop.f32.mrb[0].mxu0
    %512 = vmatprep.mubr.f32.mxu0 0.0
    %513 = vmatmul.mubr.f32.gmra.mrb[0].mxu0 %v219
    %v514 = vpop.f32.mrb[0].mxu0
    %v515 = vadd.f32 0.0, %v514
    %v516 = vpop.f32.mrb[0].mxu0
    %517 = vmatprep.mubr.f32.mxu0 0.0
    %518 = vmatmul.mubr.f32.gmra.mrb[0].mxu0 %v222
    %v519 = vpop.f32.mrb[0].mxu0
    %v520 = vadd.f32 0.0, %v519
    %v521 = vpop.f32.mrb[0].mxu0
    %522 = vmatprep.mubr.f32.mxu0 0.0
    %523 = vmatmul.mubr.f32.gmra.mrb[0].mxu0 %v225
    %v524 = vpop.f32.mrb[0].mxu0
    %v525 = vadd.f32 0.0, %v524
    %v526 = vpop.f32.mrb[0].mxu0
    %527 = vmatprep.mubr.f32.mxu0 0.0
    %528 = vmatmul.mubr.f32.gmra.mrb[0].mxu0 %v228
    %v529 = vpop.f32.mrb[0].mxu0
    %v530 = vadd.f32 0.0, %v529
    %v531 = vpop.f32.mrb[0].mxu0
    %532 = vmatprep.mubr.f32.mxu0 0.0
    %533 = vmatmul.mubr.f32.gmra.mrb[0].mxu0 %v231
    %v534 = vpop.f32.mrb[0].mxu0
    %v535 = vadd.f32 0.0, %v534
    %v536 = vpop.f32.mrb[0].mxu0
    %537 = vmatprep.mubr.f32.mxu0 0.0
    %538 = vmatmul.mubr.f32.gmra.mrb[0].mxu0 %v234
    %v539 = vpop.f32.mrb[0].mxu0
    %v540 = vadd.f32 0.0, %v539
    %v541 = vpop.f32.mrb[0].mxu0
    %542 = vmatprep.mubr.f32.mxu0 0.0
    %543 = vmatmul.mubr.f32.gmra.mrb[0].mxu0 %v237
    %v544 = vpop.f32.mrb[0].mxu0
    %v545 = vadd.f32 0.0, %v544
    %v546 = vpop.f32.mrb[0].mxu0
    %547 = vmatprep.mubr.f32.mxu0 0.0
    %548 = vmatmul.mubr.f32.gmra.mrb[0].mxu0 %v240
    %v549 = vpop.f32.mrb[0].mxu0
    %v550 = vadd.f32 0.0, %v549
    %v551 = vpop.f32.mrb[0].mxu0
    %552 = vmatprep.mubr.f32.mxu0 0.0
    %553 = vmatmul.mubr.f32.gmra.mrb[0].mxu0 %v243
    %v554 = vpop.f32.mrb[0].mxu0
    %v555 = vadd.f32 0.0, %v554
    %v556 = vpop.f32.mrb[0].mxu0
    %557 = vmatprep.mubr.f32.mxu0 0.0
    %558 = vmatmul.mubr.f32.gmra.mrb[0].mxu0 %v246
    %v559 = vpop.f32.mrb[0].mxu0
    %v560 = vadd.f32 0.0, %v559
    %v561 = vpop.f32.mrb[0].mxu0
    %562 = vmatprep.mubr.f32.mxu0 0.0
    %563 = vmatmul.mubr.f32.gmra.mrb[0].mxu0 %v249
    %v564 = vpop.f32.mrb[0].mxu0
    %v565 = vadd.f32 0.0, %v564
    %v566 = vpop.f32.mrb[0].mxu0
    %567 = vmatprep.mubr.f32.mxu0 0.0
    %568 = vmatmul.mubr.f32.gmra.mrb[0].mxu0 %v252
    %v569 = vpop.f32.mrb[0].mxu0
    %v570 = vadd.f32 0.0, %v569
    %v571 = vpop.f32.mrb[0].mxu0
    %572 = vmatprep.mubr.f32.mxu0 0.0
    %573 = vmatmul.mubr.f32.gmra.mrb[0].mxu0 %v255
    %v574 = vpop.f32.mrb[0].mxu0
    %v575 = vadd.f32 0.0, %v574
    %v576 = vpop.f32.mrb[0].mxu0
    %577 = vmatprep.mubr.f32.mxu0 0.0
    %578 = vmatmul.mubr.f32.gmra.mrb[0].mxu0 %v258
    %v579 = vpop.f32.mrb[0].mxu0
    %v580 = vadd.f32 0.0, %v579
    %v581 = vpop.f32.mrb[0].mxu0
    %582 = vmatprep.mubr.f32.mxu0 0.0
    %583 = vmatmul.mubr.f32.gmra.mrb[0].mxu0 %v261
    %v584 = vpop.f32.mrb[0].mxu0
    %v585 = vadd.f32 0.0, %v584
    %v586 = vpop.f32.mrb[0].mxu0
    %587 = vmatprep.mubr.f32.mxu0 0.0
    %588 = vmatmul.mubr.f32.gmra.mrb[0].mxu0 %v264
    %v589 = vpop.f32.mrb[0].mxu0
    %v590 = vadd.f32 0.0, %v589
    %v591 = vpop.f32.mrb[0].mxu0
    %592 = vmatprep.mubr.f32.mxu0 0.0
    %593 = vmatmul.mubr.f32.gmra.mrb[0].mxu0 %v267
    %v594 = vpop.f32.mrb[0].mxu0
    %v595 = vadd.f32 0.0, %v594
    %v596 = vpop.f32.mrb[0].mxu0
    %597 = vmatprep.mubr.f32.mxu0 0.0
    %598 = vmatmul.mubr.f32.gmra.mrb[0].mxu0 %v270
    %v599 = vpop.f32.mrb[0].mxu0
    %v600 = vadd.f32 0.0, %v599
    %v601 = vpop.f32.mrb[0].mxu0
    %602 = vmatprep.mubr.f32.mxu0 0.0
    %603 = vmatmul.mubr.f32.gmra.mrb[0].mxu0 %v273
    %v604 = vpop.f32.mrb[0].mxu0
    %v605 = vadd.f32 0.0, %v604
    %v606 = vpop.f32.mrb[0].mxu0
    %607 = vmatprep.mubr.f32.mxu0 0.0
    %608 = vmatmul.mubr.f32.gmra.mrb[0].mxu0 %v276
    %v609 = vpop.f32.mrb[0].mxu0
    %v610 = vadd.f32 0.0, %v609
    %v611 = vpop.f32.mrb[0].mxu0
    %612 = vmatprep.mubr.f32.mxu0 0.0
    %613 = vmatmul.mubr.f32.gmra.mrb[0].mxu0 %v279
    %v614 = vpop.f32.mrb[0].mxu0
    %v615 = vadd.f32 0.0, %v614
    %v616 = vpop.f32.mrb[0].mxu0
    %617 = vmatprep.mubr.f32.mxu0 0.0
    %618 = vmatmul.mubr.f32.gmra.mrb[0].mxu0 %v282
    %v619 = vpop.f32.mrb[0].mxu0
    %v620 = vadd.f32 0.0, %v619
    %v621 = vpop.f32.mrb[0].mxu0
    %622 = vmatprep.mubr.f32.mxu0 0.0
    %623 = vmatmul.mubr.f32.gmra.mrb[0].mxu0 %v285
    %v624 = vpop.f32.mrb[0].mxu0
    %v625 = vadd.f32 0.0, %v624
    %v626 = vpop.f32.mrb[0].mxu0
    %627 = vmatprep.mubr.f32.mxu0 0.0
    %628 = vmatmul.mubr.f32.gmra.mrb[0].mxu0 %v288
    %v629 = vpop.f32.mrb[0].mxu0
    %v630 = vadd.f32 0.0, %v629
    %v631 = vpop.f32.mrb[0].mxu0
    %632 = vmatprep.mubr.f32.mxu0 0.0
    %633 = vmatmul.mubr.f32.gmra.mrb[0].mxu0 %v291
    %v634 = vpop.f32.mrb[0].mxu0
    %v635 = vadd.f32 0.0, %v634
    %v636 = vpop.f32.mrb[0].mxu0
    %637 = vmatprep.mubr.f32.mxu0 0.0
    %638 = vmatmul.mubr.f32.gmra.mrb[0].mxu0 %v294
    %v639 = vpop.f32.mrb[0].mxu0
    %v640 = vadd.f32 0.0, %v639
    %v641 = vpop.f32.mrb[0].mxu0
    %642 = vmatprep.mubr.f32.mxu0 0.0
    %643 = vmatmul.mubr.f32.gmra.mrb[0].mxu0 %v297
    %v644 = vpop.f32.mrb[0].mxu0
    %v645 = vadd.f32 0.0, %v644
    %v646 = vpop.f32.mrb[0].mxu0
    %647 = vmatprep.mubr.f32.mxu0 0.0
    %648 = vmatmul.mubr.f32.gmra.mrb[0].mxu0 %v300
    %v649 = vpop.f32.mrb[0].mxu0
    %v650 = vadd.f32 0.0, %v649
    %v651 = vpop.f32.mrb[0].mxu0
    %652 = vmatprep.mubr.f32.mxu0 0.0
    %653 = vmatmul.mubr.f32.gmra.mrb[0].mxu0 %v303
    %v654 = vpop.f32.mrb[0].mxu0
    %v655 = vadd.f32 0.0, %v654
    %v656 = vpop.f32.mrb[0].mxu0
    %657 = vmatprep.mubr.f32.mxu0 0.0
    %658 = vmatmul.mubr.f32.gmra.mrb[0].mxu0 %v306
    %v659 = vpop.f32.mrb[0].mxu0
    %v660 = vadd.f32 0.0, %v659
    %v661 = vpop.f32.mrb[0].mxu0
    %662 = vmatprep.mubr.f32.mxu0 0.0
    %663 = vmatmul.mubr.f32.gmra.mrb[0].mxu0 %v309
    %v664 = vpop.f32.mrb[0].mxu0
    %v665 = vadd.f32 0.0, %v664
    %v666 = vpop.f32.mrb[0].mxu0
    %667 = vmatprep.mubr.f32.mxu0 0.0
    %668 = vmatmul.mubr.f32.gmra.mrb[0].mxu0 %v312
    %v669 = vpop.f32.mrb[0].mxu0
    %v670 = vadd.f32 0.0, %v669
    %v671 = vpop.f32.mrb[0].mxu0
    %672 = vmatprep.mubr.f32.mxu0 0.0
    %673 = vmatmul.mubr.f32.gmra.mrb[0].mxu0 %v315
    %v674 = vpop.f32.mrb[0].mxu0
    %v675 = vadd.f32 0.0, %v674
    %v676 = vpop.f32.mrb[0].mxu0
    %677 = vmatprep.mubr.f32.mxu0 0.0
    %678 = vmatmul.mubr.f32.gmra.mrb[0].mxu0 %v318
    %v679 = vpop.f32.mrb[0].mxu0
    %v680 = vadd.f32 0.0, %v679
    %v681 = vpop.f32.mrb[0].mxu0
    %682 = vmatprep.mubr.f32.mxu0 0.0
    %683 = vmatmul.mubr.f32.gmra.mrb[0].mxu0 %v321
    %v684 = vpop.f32.mrb[0].mxu0
    %v685 = vadd.f32 0.0, %v684
    %v686 = vpop.f32.mrb[0].mxu0
    %687 = vmatprep.mubr.f32.mxu0 0.0
    %688 = vmatmul.mubr.f32.gmra.mrb[0].mxu0 %v324
    %v689 = vpop.f32.mrb[0].mxu0
    %v690 = vadd.f32 0.0, %v689
    %v691 = vpop.f32.mrb[0].mxu0
    %692 = vmatprep.mubr.f32.mxu0 0.0
    %693 = vmatmul.mubr.f32.gmra.mrb[0].mxu0 %v327
    %v694 = vpop.f32.mrb[0].mxu0
    %v695 = vadd.f32 0.0, %v694
    %v696 = vpop.f32.mrb[0].mxu0
    %697 = vdwg.mxu0
    %v698 = vld [vmem:[#allocation5] sm:$0xff]
    %v699 = vld [vmem:[#allocation5 + $0x8] sm:$0xff]
    %v700 = vld [vmem:[#allocation5 + $0x10] sm:$0xff]
    %v701 = vld [vmem:[#allocation5 + $0x18] sm:$0xff]
    %v702 = vld [vmem:[#allocation5 + $0x20] sm:$0x7f]
    %v703 = vld [vmem:[#allocation5 + $0x28] sm:$0x7f]
    %v704 = vld [vmem:[#allocation5 + $0x30] sm:$0x7f]
    %v705 = vld [vmem:[#allocation5 + $0x38] sm:$0x7f]
    %v706 = vld [vmem:[%s3] sm:$0xff]
    %v707 = vld [vmem:[%s3 + $0x8] sm:$0x7f]
    %709 = vset.pattern.permute.xlu0 0
    %710 = vperm.xlu0 %709, %v706
    %v711 = vpop.permute.xlu0 %710
    %714 = vset.pattern.permute.xlu0 0
    %715 = vperm.xlu0 %714, %v707
    %v716 = vpop.permute.xlu0 %715
    %vm718 = vcmask 785408
    %v720 = vsel %vm718, %v701, 0
    %v723 = vsel %vm718, %v705, 0
    %725 = vmatprep.subr.mxu0 0.0
    %726 = vmatpush1.msra.mxu0 %v400
    %727 = vmatprep.subr.mxu0 0.0
    %728 = vmatpush1.msra.mxu0 %v405
    %729 = vmatprep.subr.mxu0 0.0
    %730 = vmatpush1.msra.mxu0 %v410
    %731 = vmatprep.subr.mxu0 0.0
    %732 = vmatpush1.msra.mxu0 %v415
    %733 = vmatprep.subr.mxu0 0.0
    %734 = vmatpush1.msra.mxu0 %v420
    %735 = vmatprep.subr.mxu0 0.0
    %736 = vmatpush1.msra.mxu0 %v425
    %737 = vmatprep.subr.mxu0 0.0
    %738 = vmatpush1.msra.mxu0 %v430
    %739 = vmatprep.subr.mxu0 0.0
    %740 = vmatpush1.msra.mxu0 %v435
    %741 = vmatprep.subr.mxu0 0.0
    %742 = vmatpush1.msra.mxu0 %v440
    %743 = vmatprep.subr.mxu0 0.0
    %744 = vmatpush1.msra.mxu0 %v445
    %745 = vmatprep.subr.mxu0 0.0
    %746 = vmatpush1.msra.mxu0 %v450
    %747 = vmatprep.subr.mxu0 0.0
    %748 = vmatpush1.msra.mxu0 %v455
    %749 = vmatprep.subr.mxu0 0.0
    %750 = vmatpush1.msra.mxu0 %v460
    %751 = vmatprep.subr.mxu0 0.0
    %752 = vmatpush1.msra.mxu0 %v465
    %753 = vmatprep.subr.mxu0 0.0
    %754 = vmatpush1.msra.mxu0 %v470
    %755 = vmatprep.subr.mxu0 0.0
    %756 = vmatpush1.msra.mxu0 %v475
    %757 = vmatprep.subr.mxu0 0.0
    %758 = vmatpush1.msra.mxu0 %v480
    %759 = vmatprep.subr.mxu0 0.0
    %760 = vmatpush1.msra.mxu0 %v485
    %761 = vmatprep.subr.mxu0 0.0
    %762 = vmatpush1.msra.mxu0 %v490
    %763 = vmatprep.subr.mxu0 0.0
    %764 = vmatpush1.msra.mxu0 %v495
    %765 = vmatprep.subr.mxu0 0.0
    %766 = vmatpush1.msra.mxu0 %v500
    %767 = vmatprep.subr.mxu0 0.0
    %768 = vmatpush1.msra.mxu0 %v505
    %769 = vmatprep.subr.mxu0 0.0
    %770 = vmatpush1.msra.mxu0 %v510
    %771 = vmatprep.subr.mxu0 0.0
    %772 = vmatpush1.msra.mxu0 %v515
    %773 = vmatprep.subr.mxu0 0.0
    %774 = vmatpush1.msra.mxu0 %v520
    %775 = vmatprep.subr.mxu0 0.0
    %776 = vmatpush1.msra.mxu0 %v525
    %777 = vmatprep.subr.mxu0 0.0
    %778 = vmatpush1.msra.mxu0 %v530
    %779 = vmatprep.subr.mxu0 0.0
    %780 = vmatpush1.msra.mxu0 %v535
    %781 = vmatprep.subr.mxu0 0.0
    %782 = vmatpush1.msra.mxu0 %v540
    %783 = vmatprep.subr.mxu0 0.0
    %784 = vmatpush1.msra.mxu0 %v545
    %785 = vmatprep.subr.mxu0 0.0
    %786 = vmatpush1.msra.mxu0 %v550
    %787 = vmatprep.subr.mxu0 0.0
    %788 = vmatpush1.msra.mxu0 %v555
    %789 = vmatprep.mubr.f32.mxu0 %v699
    %790 = vmatmul.mubr.f32.gmra.mrb[0].mxu0 %v698
    %v791 = vpop.f32.mrb[0].mxu0
    %v792 = vadd.f32 %v711, %v791
    %v793 = vpop.f32.mrb[0].mxu0
    %794 = vmatprep.mubr.f32.mxu0 %v703
    %795 = vmatmul.mubr.f32.gmra.mrb[0].mxu0 %v702
    %v796 = vpop.f32.mrb[0].mxu0
    %v797 = vadd.f32 %v716, %v796
    %v798 = vpop.f32.mrb[0].mxu0
    %799 = vdwg.mxu0
    %800 = vmatprep.subr.mxu0 0.0
    %801 = vmatpush1.msra.mxu0 %v560
    %802 = vmatprep.subr.mxu0 0.0
    %803 = vmatpush1.msra.mxu0 %v565
    %804 = vmatprep.subr.mxu0 0.0
    %805 = vmatpush1.msra.mxu0 %v570
    %806 = vmatprep.subr.mxu0 0.0
    %807 = vmatpush1.msra.mxu0 %v575
    %808 = vmatprep.subr.mxu0 0.0
    %809 = vmatpush1.msra.mxu0 %v580
    %810 = vmatprep.subr.mxu0 0.0
    %811 = vmatpush1.msra.mxu0 %v585
    %812 = vmatprep.subr.mxu0 0.0
    %813 = vmatpush1.msra.mxu0 %v590
    %814 = vmatprep.subr.mxu0 0.0
    %815 = vmatpush1.msra.mxu0 %v595
    %816 = vmatprep.subr.mxu0 0.0
    %817 = vmatpush1.msra.mxu0 %v600
    %818 = vmatprep.subr.mxu0 0.0
    %819 = vmatpush1.msra.mxu0 %v605
    %820 = vmatprep.subr.mxu0 0.0
    %821 = vmatpush1.msra.mxu0 %v610
    %822 = vmatprep.subr.mxu0 0.0
    %823 = vmatpush1.msra.mxu0 %v615
    %824 = vmatprep.subr.mxu0 0.0
    %825 = vmatpush1.msra.mxu0 %v620
    %826 = vmatprep.subr.mxu0 0.0
    %827 = vmatpush1.msra.mxu0 %v625
    %828 = vmatprep.subr.mxu0 0.0
    %829 = vmatpush1.msra.mxu0 %v630
    %830 = vmatprep.subr.mxu0 0.0
    %831 = vmatpush1.msra.mxu0 %v635
    %832 = vmatprep.subr.mxu0 0.0
    %833 = vmatpush1.msra.mxu0 %v640
    %834 = vmatprep.subr.mxu0 0.0
    %835 = vmatpush1.msra.mxu0 %v645
    %836 = vmatprep.subr.mxu0 0.0
    %837 = vmatpush1.msra.mxu0 %v650
    %838 = vmatprep.subr.mxu0 0.0
    %839 = vmatpush1.msra.mxu0 %v655
    %840 = vmatprep.subr.mxu0 0.0
    %841 = vmatpush1.msra.mxu0 %v660
    %842 = vmatprep.subr.mxu0 0.0
    %843 = vmatpush1.msra.mxu0 %v665
    %844 = vmatprep.subr.mxu0 0.0
    %845 = vmatpush1.msra.mxu0 %v670
    %846 = vmatprep.subr.mxu0 0.0
    %847 = vmatpush1.msra.mxu0 %v675
    %848 = vmatprep.subr.mxu0 0.0
    %849 = vmatpush1.msra.mxu0 %v680
    %850 = vmatprep.subr.mxu0 0.0
    %851 = vmatpush1.msra.mxu0 %v685
    %852 = vmatprep.subr.mxu0 0.0
    %853 = vmatpush1.msra.mxu0 %v690
    %854 = vmatprep.subr.mxu0 0.0
    %855 = vmatpush1.msra.mxu0 %v695
    %856 = vmatprep.subr.mxu0 0.0
    %857 = vmatpush1.msra.mxu0 0.0
    %858 = vmatprep.subr.mxu0 0.0
    %859 = vmatpush1.msra.mxu0 0.0
    %860 = vmatprep.subr.mxu0 0.0
    %861 = vmatpush1.msra.mxu0 0.0
    %862 = vmatprep.subr.mxu0 0.0
    %863 = vmatpush1.msra.mxu0 0.0
    %864 = vmatprep.mubr.f32.mxu0 %v720
    %865 = vmatmul.mubr.f32.gmra.mrb[0].mxu0 %v700
    %v866 = vpop.f32.mrb[0].mxu0
    %v867 = vadd.f32 %v792, %v866
    %v868 = vpop.f32.mrb[0].mxu0
    %869 = vmatprep.mubr.f32.mxu0 %v723
    %870 = vmatmul.mubr.f32.gmra.mrb[0].mxu0 %v704
    %v871 = vpop.f32.mrb[0].mxu0
    %v872 = vadd.f32 %v797, %v871
    %v873 = vpop.f32.mrb[0].mxu0
    %874 = vdwg.mxu0
    %vm875 = vcmask 1046528
    %v876 = vsel %vm875, %v872, -inf
    %v877 = vmax.f32 %v867, %v876
    %v878 = vrot.slane %v877, 4
    %v879 = vmax.f32 %v877, %v878
    %v880 = vrot.slane %v879, 2
    %v881 = vmax.f32 %v879, %v880
    %v882 = vrot.slane %v881, 1
    %v883 = vmax.f32 %v881, %v882
    %v884 = vsub.f32 %v867, %v883
    %v885 = vsub.f32 %v872, %v883
    %v886 = vmul.f32 %v884, 1.442695
    %v887 = vpow.pop %v886
    %v888 = vmul.f32 %v885, 1.442695
    %v889 = vpow.pop %v888
    %v890 = vsel %vm875, %v889, 0.0
    %v891 = vadd.f32 %v887, %v890
    %v892 = vrot.slane %v891, 4
    %v893 = vadd.f32 %v891, %v892
    %v894 = vrot.slane %v893, 2
    %v895 = vadd.f32 %v893, %v894
    %v896 = vrot.slane %v895, 1
    %v897 = vadd.f32 %v895, %v896
    %v898 = vrcp.pop %v897
    %v899 = vmul.f32 %v887, %v898
    %v900 = vmul.f32 %v889, %v898
    %v901 = vld [vmem:[%s4] sm:$0xff]
    %v902 = vld [vmem:[%s4 + $0x8] sm:$0xff]
    %v903 = vld [vmem:[%s4 + $0x10] sm:$0xff]
    %v904 = vld [vmem:[%s4 + $0x18] sm:$0xff]
    %v905 = vld [vmem:[%s4 + $0x20] sm:$0xff]
    %v906 = vld [vmem:[%s4 + $0x28] sm:$0xff]
    %v907 = vld [vmem:[%s4 + $0x30] sm:$0xff]
    %v908 = vld [vmem:[%s4 + $0x38] sm:$0xff]
    %v909 = vld [vmem:[%s4 + $0x40] sm:$0xff]
    %v910 = vld [vmem:[%s4 + $0x48] sm:$0xff]
    %v911 = vld [vmem:[%s4 + $0x50] sm:$0xff]
    %v912 = vld [vmem:[%s4 + $0x58] sm:$0xff]
    %v913 = vld [vmem:[%s4 + $0x60] sm:$0xff]
    %v914 = vld [vmem:[%s4 + $0x68] sm:$0xff]
    %v915 = vld [vmem:[%s4 + $0x70] sm:$0xff]
    %v916 = vld [vmem:[%s4 + $0x78] sm:$0xff]
    %v917 = vld [vmem:[%s4 + $0x80] sm:$0xff]
    %v918 = vld [vmem:[%s4 + $0x88] sm:$0xff]
    %v919 = vld [vmem:[%s4 + $0x90] sm:$0xff]
    %v920 = vld [vmem:[%s4 + $0x98] sm:$0xff]
    %v921 = vld [vmem:[%s4 + $0xa0] sm:$0xff]
    %v922 = vld [vmem:[%s4 + $0xa8] sm:$0xff]
    %v923 = vld [vmem:[%s4 + $0xb0] sm:$0xff]
    %v924 = vld [vmem:[%s4 + $0xb8] sm:$0xff]
    %v925 = vld [vmem:[%s4 + $0xc0] sm:$0xff]
    %v926 = vld [vmem:[%s4 + $0xc8] sm:$0xff]
    %v927 = vld [vmem:[%s4 + $0xd0] sm:$0xff]
    %v928 = vld [vmem:[%s4 + $0xd8] sm:$0xff]
    %v929 = vld [vmem:[%s4 + $0xe0] sm:$0xff]
    %v930 = vld [vmem:[%s4 + $0xe8] sm:$0xff]
    %v931 = vld [vmem:[%s4 + $0xf0] sm:$0xff]
    %v932 = vld [vmem:[%s4 + $0xf8] sm:$0xff]
    %v933 = vld [vmem:[%s4 + $0x100] sm:$0xff]
    %v934 = vld [vmem:[%s4 + $0x108] sm:$0xff]
    %v935 = vld [vmem:[%s4 + $0x110] sm:$0xff]
    %v936 = vld [vmem:[%s4 + $0x118] sm:$0xff]
    %v937 = vld [vmem:[%s4 + $0x120] sm:$0xff]
    %v938 = vld [vmem:[%s4 + $0x128] sm:$0xff]
    %v939 = vld [vmem:[%s4 + $0x130] sm:$0xff]
    %v940 = vld [vmem:[%s4 + $0x138] sm:$0xff]
    %v941 = vld [vmem:[%s4 + $0x140] sm:$0xff]
    %v942 = vld [vmem:[%s4 + $0x148] sm:$0xff]
    %v943 = vld [vmem:[%s4 + $0x150] sm:$0xff]
    %v944 = vld [vmem:[%s4 + $0x158] sm:$0xff]
    %v945 = vld [vmem:[%s4 + $0x160] sm:$0xff]
    %v946 = vld [vmem:[%s4 + $0x168] sm:$0xff]
    %v947 = vld [vmem:[%s4 + $0x170] sm:$0xff]
    %v948 = vld [vmem:[%s4 + $0x178] sm:$0xff]
    %v949 = vld [vmem:[%s4 + $0x180] sm:$0xff]
    %v950 = vld [vmem:[%s4 + $0x188] sm:$0xff]
    %v951 = vld [vmem:[%s4 + $0x190] sm:$0xff]
    %v952 = vld [vmem:[%s4 + $0x198] sm:$0xff]
    %v953 = vld [vmem:[%s4 + $0x1a0] sm:$0xff]
    %v954 = vld [vmem:[%s4 + $0x1a8] sm:$0xff]
    %v955 = vld [vmem:[%s4 + $0x1b0] sm:$0xff]
    %v956 = vld [vmem:[%s4 + $0x1b8] sm:$0xff]
    %v957 = vld [vmem:[%s4 + $0x1c0] sm:$0xff]
    %v958 = vld [vmem:[%s4 + $0x1c8] sm:$0xff]
    %v959 = vld [vmem:[%s4 + $0x1d0] sm:$0xff]
    %v960 = vld [vmem:[%s4 + $0x1d8] sm:$0xff]
    %vm961 = vcmask 121856
    %v963 = vsel %vm961, %v901, 0
    %v966 = vsel %vm961, %v902, 0
    %v969 = vsel %vm961, %v903, 0
    %v972 = vsel %vm961, %v904, 0
    %v975 = vsel %vm961, %v905, 0
    %v978 = vsel %vm961, %v906, 0
    %v981 = vsel %vm961, %v907, 0
    %v984 = vsel %vm961, %v908, 0
    %v987 = vsel %vm961, %v909, 0
    %v990 = vsel %vm961, %v910, 0
    %v993 = vsel %vm961, %v911, 0
    %v996 = vsel %vm961, %v912, 0
    %v999 = vsel %vm961, %v913, 0
    %v1002 = vsel %vm961, %v914, 0
    %v1005 = vsel %vm961, %v915, 0
    %v1008 = vsel %vm961, %v916, 0
    %v1011 = vsel %vm961, %v917, 0
    %v1014 = vsel %vm961, %v918, 0
    %v1017 = vsel %vm961, %v919, 0
    %v1020 = vsel %vm961, %v920, 0
    %v1023 = vsel %vm961, %v921, 0
    %v1026 = vsel %vm961, %v922, 0
    %v1029 = vsel %vm961, %v923, 0
    %v1032 = vsel %vm961, %v924, 0
    %v1035 = vsel %vm961, %v925, 0
    %v1038 = vsel %vm961, %v926, 0
    %v1041 = vsel %vm961, %v927, 0
    %v1044 = vsel %vm961, %v928, 0
    %v1047 = vsel %vm961, %v929, 0
    %v1050 = vsel %vm961, %v930, 0
    %v1053 = vsel %vm961, %v931, 0
    %v1056 = vsel %vm961, %v932, 0
    %v1059 = vsel %vm961, %v933, 0
    %v1062 = vsel %vm961, %v934, 0
    %v1065 = vsel %vm961, %v935, 0
    %v1068 = vsel %vm961, %v936, 0
    %v1071 = vsel %vm961, %v937, 0
    %v1074 = vsel %vm961, %v938, 0
    %v1077 = vsel %vm961, %v939, 0
    %v1080 = vsel %vm961, %v940, 0
    %v1083 = vsel %vm961, %v941, 0
    %v1086 = vsel %vm961, %v942, 0
    %v1089 = vsel %vm961, %v943, 0
    %v1092 = vsel %vm961, %v944, 0
    %v1095 = vsel %vm961, %v945, 0
    %v1098 = vsel %vm961, %v946, 0
    %v1101 = vsel %vm961, %v947, 0
    %v1104 = vsel %vm961, %v948, 0
    %v1107 = vsel %vm961, %v949, 0
    %v1110 = vsel %vm961, %v950, 0
    %v1113 = vsel %vm961, %v951, 0
    %v1116 = vsel %vm961, %v952, 0
    %v1119 = vsel %vm961, %v953, 0
    %v1122 = vsel %vm961, %v954, 0
    %v1125 = vsel %vm961, %v955, 0
    %v1128 = vsel %vm961, %v956, 0
    %v1131 = vsel %vm961, %v957, 0
    %v1134 = vsel %vm961, %v958, 0
    %v1137 = vsel %vm961, %v959, 0
    %v1140 = vsel %vm961, %v960, 0
    %v1143 = vsel %vm875, %v900, 0
    %1145 = vmatprep.subr.mxu0 0.0
    %1146 = vmatpush1.msra.mxu0 %v899
    %1147 = vmatprep.subr.mxu0 0.0
    %1148 = vmatpush1.msra.mxu0 %v1143
    %1149 = vmatprep.subr.mxu0 0.0
    %1150 = vmatpush1.msra.mxu0 0.0
    %1151 = vmatprep.subr.mxu0 0.0
    %1152 = vmatpush1.msra.mxu0 0.0
    %1153 = vmatprep.subr.mxu0 0.0
    %1154 = vmatpush1.msra.mxu0 0.0
    %1155 = vmatprep.subr.mxu0 0.0
    %1156 = vmatpush1.msra.mxu0 0.0
    %1157 = vmatprep.subr.mxu0 0.0
    %1158 = vmatpush1.msra.mxu0 0.0
    %1159 = vmatprep.subr.mxu0 0.0
    %1160 = vmatpush1.msra.mxu0 0.0
    %1161 = vmatprep.subr.mxu0 0.0
    %1162 = vmatpush1.msra.mxu0 0.0
    %1163 = vmatprep.subr.mxu0 0.0
    %1164 = vmatpush1.msra.mxu0 0.0
    %1165 = vmatprep.subr.mxu0 0.0
    %1166 = vmatpush1.msra.mxu0 0.0
    %1167 = vmatprep.subr.mxu0 0.0
    %1168 = vmatpush1.msra.mxu0 0.0
    %1169 = vmatprep.subr.mxu0 0.0
    %1170 = vmatpush1.msra.mxu0 0.0
    %1171 = vmatprep.subr.mxu0 0.0
    %1172 = vmatpush1.msra.mxu0 0.0
    %1173 = vmatprep.subr.mxu0 0.0
    %1174 = vmatpush1.msra.mxu0 0.0
    %1175 = vmatprep.subr.mxu0 0.0
    %1176 = vmatpush1.msra.mxu0 0.0
    %1177 = vmatprep.subr.mxu0 0.0
    %1178 = vmatpush1.msra.mxu0 0.0
    %1179 = vmatprep.subr.mxu0 0.0
    %1180 = vmatpush1.msra.mxu0 0.0
    %1181 = vmatprep.subr.mxu0 0.0
    %1182 = vmatpush1.msra.mxu0 0.0
    %1183 = vmatprep.subr.mxu0 0.0
    %1184 = vmatpush1.msra.mxu0 0.0
    %1185 = vmatprep.subr.mxu0 0.0
    %1186 = vmatpush1.msra.mxu0 0.0
    %1187 = vmatprep.subr.mxu0 0.0
    %1188 = vmatpush1.msra.mxu0 0.0
    %1189 = vmatprep.subr.mxu0 0.0
    %1190 = vmatpush1.msra.mxu0 0.0
    %1191 = vmatprep.subr.mxu0 0.0
    %1192 = vmatpush1.msra.mxu0 0.0
    %1193 = vmatprep.subr.mxu0 0.0
    %1194 = vmatpush1.msra.mxu0 0.0
    %1195 = vmatprep.subr.mxu0 0.0
    %1196 = vmatpush1.msra.mxu0 0.0
    %1197 = vmatprep.subr.mxu0 0.0
    %1198 = vmatpush1.msra.mxu0 0.0
    %1199 = vmatprep.subr.mxu0 0.0
    %1200 = vmatpush1.msra.mxu0 0.0
    %1201 = vmatprep.subr.mxu0 0.0
    %1202 = vmatpush1.msra.mxu0 0.0
    %1203 = vmatprep.subr.mxu0 0.0
    %1204 = vmatpush1.msra.mxu0 0.0
    %1205 = vmatprep.subr.mxu0 0.0
    %1206 = vmatpush1.msra.mxu0 0.0
    %1207 = vmatprep.subr.mxu0 0.0
    %1208 = vmatpush1.msra.mxu0 0.0
    %1209 = vmatprep.mubr.f32.mxu0 0.0
    %1210 = vmatmul.mubr.f32.gmra.mrb[0].mxu0 %v963
    %v1211 = vpop.f32.mrb[0].mxu0
    %v1212 = vadd.f32 0.0, %v1211
    %v1213 = vpop.f32.mrb[0].mxu0
    %1214 = vmatprep.mubr.f32.mxu0 0.0
    %1215 = vmatmul.mubr.f32.gmra.mrb[0].mxu0 %v966
    %v1216 = vpop.f32.mrb[0].mxu0
    %v1217 = vadd.f32 0.0, %v1216
    %v1218 = vpop.f32.mrb[0].mxu0
    %1219 = vmatprep.mubr.f32.mxu0 0.0
    %1220 = vmatmul.mubr.f32.gmra.mrb[0].mxu0 %v969
    %v1221 = vpop.f32.mrb[0].mxu0
    %v1222 = vadd.f32 0.0, %v1221
    %v1223 = vpop.f32.mrb[0].mxu0
    %1224 = vmatprep.mubr.f32.mxu0 0.0
    %1225 = vmatmul.mubr.f32.gmra.mrb[0].mxu0 %v972
    %v1226 = vpop.f32.mrb[0].mxu0
    %v1227 = vadd.f32 0.0, %v1226
    %v1228 = vpop.f32.mrb[0].mxu0
    %1229 = vmatprep.mubr.f32.mxu0 0.0
    %1230 = vmatmul.mubr.f32.gmra.mrb[0].mxu0 %v975
    %v1231 = vpop.f32.mrb[0].mxu0
    %v1232 = vadd.f32 0.0, %v1231
    %v1233 = vpop.f32.mrb[0].mxu0
    %1234 = vmatprep.mubr.f32.mxu0 0.0
    %1235 = vmatmul.mubr.f32.gmra.mrb[0].mxu0 %v978
    %v1236 = vpop.f32.mrb[0].mxu0
    %v1237 = vadd.f32 0.0, %v1236
    %v1238 = vpop.f32.mrb[0].mxu0
    %1239 = vmatprep.mubr.f32.mxu0 0.0
    %1240 = vmatmul.mubr.f32.gmra.mrb[0].mxu0 %v981
    %v1241 = vpop.f32.mrb[0].mxu0
    %v1242 = vadd.f32 0.0, %v1241
    %v1243 = vpop.f32.mrb[0].mxu0
    %1244 = vmatprep.mubr.f32.mxu0 0.0
    %1245 = vmatmul.mubr.f32.gmra.mrb[0].mxu0 %v984
    %v1246 = vpop.f32.mrb[0].mxu0
    %v1247 = vadd.f32 0.0, %v1246
    %v1248 = vpop.f32.mrb[0].mxu0
    %1249 = vmatprep.mubr.f32.mxu0 0.0
    %1250 = vmatmul.mubr.f32.gmra.mrb[0].mxu0 %v987
    %v1251 = vpop.f32.mrb[0].mxu0
    %v1252 = vadd.f32 0.0, %v1251
    %v1253 = vpop.f32.mrb[0].mxu0
    %1254 = vmatprep.mubr.f32.mxu0 0.0
    %1255 = vmatmul.mubr.f32.gmra.mrb[0].mxu0 %v990
    %v1256 = vpop.f32.mrb[0].mxu0
    %v1257 = vadd.f32 0.0, %v1256
    %v1258 = vpop.f32.mrb[0].mxu0
    %1259 = vmatprep.mubr.f32.mxu0 0.0
    %1260 = vmatmul.mubr.f32.gmra.mrb[0].mxu0 %v993
    %v1261 = vpop.f32.mrb[0].mxu0
    %v1262 = vadd.f32 0.0, %v1261
    %v1263 = vpop.f32.mrb[0].mxu0
    %1264 = vmatprep.mubr.f32.mxu0 0.0
    %1265 = vmatmul.mubr.f32.gmra.mrb[0].mxu0 %v996
    %v1266 = vpop.f32.mrb[0].mxu0
    %v1267 = vadd.f32 0.0, %v1266
    %v1268 = vpop.f32.mrb[0].mxu0
    %1269 = vmatprep.mubr.f32.mxu0 0.0
    %1270 = vmatmul.mubr.f32.gmra.mrb[0].mxu0 %v999
    %v1271 = vpop.f32.mrb[0].mxu0
    %v1272 = vadd.f32 0.0, %v1271
    %v1273 = vpop.f32.mrb[0].mxu0
    %1274 = vmatprep.mubr.f32.mxu0 0.0
    %1275 = vmatmul.mubr.f32.gmra.mrb[0].mxu0 %v1002
    %v1276 = vpop.f32.mrb[0].mxu0
    %v1277 = vadd.f32 0.0, %v1276
    %v1278 = vpop.f32.mrb[0].mxu0
    %1279 = vmatprep.mubr.f32.mxu0 0.0
    %1280 = vmatmul.mubr.f32.gmra.mrb[0].mxu0 %v1005
    %v1281 = vpop.f32.mrb[0].mxu0
    %v1282 = vadd.f32 0.0, %v1281
    %v1283 = vpop.f32.mrb[0].mxu0
    %1284 = vmatprep.mubr.f32.mxu0 0.0
    %1285 = vmatmul.mubr.f32.gmra.mrb[0].mxu0 %v1008
    %v1286 = vpop.f32.mrb[0].mxu0
    %v1287 = vadd.f32 0.0, %v1286
    %v1288 = vpop.f32.mrb[0].mxu0
    %1289 = vmatprep.mubr.f32.mxu0 0.0
    %1290 = vmatmul.mubr.f32.gmra.mrb[0].mxu0 %v1011
    %v1291 = vpop.f32.mrb[0].mxu0
    %v1292 = vadd.f32 0.0, %v1291
    %v1293 = vpop.f32.mrb[0].mxu0
    %1294 = vmatprep.mubr.f32.mxu0 0.0
    %1295 = vmatmul.mubr.f32.gmra.mrb[0].mxu0 %v1014
    %v1296 = vpop.f32.mrb[0].mxu0
    %v1297 = vadd.f32 0.0, %v1296
    %v1298 = vpop.f32.mrb[0].mxu0
    %1299 = vmatprep.mubr.f32.mxu0 0.0
    %1300 = vmatmul.mubr.f32.gmra.mrb[0].mxu0 %v1017
    %v1301 = vpop.f32.mrb[0].mxu0
    %v1302 = vadd.f32 0.0, %v1301
    %v1303 = vpop.f32.mrb[0].mxu0
    %1304 = vmatprep.mubr.f32.mxu0 0.0
    %1305 = vmatmul.mubr.f32.gmra.mrb[0].mxu0 %v1020
    %v1306 = vpop.f32.mrb[0].mxu0
    %v1307 = vadd.f32 0.0, %v1306
    %v1308 = vpop.f32.mrb[0].mxu0
    %1309 = vmatprep.mubr.f32.mxu0 0.0
    %1310 = vmatmul.mubr.f32.gmra.mrb[0].mxu0 %v1023
    %v1311 = vpop.f32.mrb[0].mxu0
    %v1312 = vadd.f32 0.0, %v1311
    %v1313 = vpop.f32.mrb[0].mxu0
    %1314 = vmatprep.mubr.f32.mxu0 0.0
    %1315 = vmatmul.mubr.f32.gmra.mrb[0].mxu0 %v1026
    %v1316 = vpop.f32.mrb[0].mxu0
    %v1317 = vadd.f32 0.0, %v1316
    %v1318 = vpop.f32.mrb[0].mxu0
    %1319 = vmatprep.mubr.f32.mxu0 0.0
    %1320 = vmatmul.mubr.f32.gmra.mrb[0].mxu0 %v1029
    %v1321 = vpop.f32.mrb[0].mxu0
    %v1322 = vadd.f32 0.0, %v1321
    %v1323 = vpop.f32.mrb[0].mxu0
    %1324 = vmatprep.mubr.f32.mxu0 0.0
    %1325 = vmatmul.mubr.f32.gmra.mrb[0].mxu0 %v1032
    %v1326 = vpop.f32.mrb[0].mxu0
    %v1327 = vadd.f32 0.0, %v1326
    %v1328 = vpop.f32.mrb[0].mxu0
    %1329 = vmatprep.mubr.f32.mxu0 0.0
    %1330 = vmatmul.mubr.f32.gmra.mrb[0].mxu0 %v1035
    %v1331 = vpop.f32.mrb[0].mxu0
    %v1332 = vadd.f32 0.0, %v1331
    %v1333 = vpop.f32.mrb[0].mxu0
    %1334 = vmatprep.mubr.f32.mxu0 0.0
    %1335 = vmatmul.mubr.f32.gmra.mrb[0].mxu0 %v1038
    %v1336 = vpop.f32.mrb[0].mxu0
    %v1337 = vadd.f32 0.0, %v1336
    %v1338 = vpop.f32.mrb[0].mxu0
    %1339 = vmatprep.mubr.f32.mxu0 0.0
    %1340 = vmatmul.mubr.f32.gmra.mrb[0].mxu0 %v1041
    %v1341 = vpop.f32.mrb[0].mxu0
    %v1342 = vadd.f32 0.0, %v1341
    %v1343 = vpop.f32.mrb[0].mxu0
    %1344 = vmatprep.mubr.f32.mxu0 0.0
    %1345 = vmatmul.mubr.f32.gmra.mrb[0].mxu0 %v1044
    %v1346 = vpop.f32.mrb[0].mxu0
    %v1347 = vadd.f32 0.0, %v1346
    %v1348 = vpop.f32.mrb[0].mxu0
    %1349 = vmatprep.mubr.f32.mxu0 0.0
    %1350 = vmatmul.mubr.f32.gmra.mrb[0].mxu0 %v1047
    %v1351 = vpop.f32.mrb[0].mxu0
    %v1352 = vadd.f32 0.0, %v1351
    %v1353 = vpop.f32.mrb[0].mxu0
    %1354 = vmatprep.mubr.f32.mxu0 0.0
    %1355 = vmatmul.mubr.f32.gmra.mrb[0].mxu0 %v1050
    %v1356 = vpop.f32.mrb[0].mxu0
    %v1357 = vadd.f32 0.0, %v1356
    %v1358 = vpop.f32.mrb[0].mxu0
    %1359 = vmatprep.mubr.f32.mxu0 0.0
    %1360 = vmatmul.mubr.f32.gmra.mrb[0].mxu0 %v1053
    %v1361 = vpop.f32.mrb[0].mxu0
    %v1362 = vadd.f32 0.0, %v1361
    %v1363 = vpop.f32.mrb[0].mxu0
    %1364 = vmatprep.mubr.f32.mxu0 0.0
    %1365 = vmatmul.mubr.f32.gmra.mrb[0].mxu0 %v1056
    %v1366 = vpop.f32.mrb[0].mxu0
    %v1367 = vadd.f32 0.0, %v1366
    %v1368 = vpop.f32.mrb[0].mxu0
    %1369 = vmatprep.mubr.f32.mxu0 0.0
    %1370 = vmatmul.mubr.f32.gmra.mrb[0].mxu0 %v1059
    %v1371 = vpop.f32.mrb[0].mxu0
    %v1372 = vadd.f32 0.0, %v1371
    %v1373 = vpop.f32.mrb[0].mxu0
    %1374 = vmatprep.mubr.f32.mxu0 0.0
    %1375 = vmatmul.mubr.f32.gmra.mrb[0].mxu0 %v1062
    %v1376 = vpop.f32.mrb[0].mxu0
    %v1377 = vadd.f32 0.0, %v1376
    %v1378 = vpop.f32.mrb[0].mxu0
    %1379 = vmatprep.mubr.f32.mxu0 0.0
    %1380 = vmatmul.mubr.f32.gmra.mrb[0].mxu0 %v1065
    %v1381 = vpop.f32.mrb[0].mxu0
    %v1382 = vadd.f32 0.0, %v1381
    %v1383 = vpop.f32.mrb[0].mxu0
    %1384 = vmatprep.mubr.f32.mxu0 0.0
    %1385 = vmatmul.mubr.f32.gmra.mrb[0].mxu0 %v1068
    %v1386 = vpop.f32.mrb[0].mxu0
    %v1387 = vadd.f32 0.0, %v1386
    %v1388 = vpop.f32.mrb[0].mxu0
    %1389 = vmatprep.mubr.f32.mxu0 0.0
    %1390 = vmatmul.mubr.f32.gmra.mrb[0].mxu0 %v1071
    %v1391 = vpop.f32.mrb[0].mxu0
    %v1392 = vadd.f32 0.0, %v1391
    %v1393 = vpop.f32.mrb[0].mxu0
    %1394 = vmatprep.mubr.f32.mxu0 0.0
    %1395 = vmatmul.mubr.f32.gmra.mrb[0].mxu0 %v1074
    %v1396 = vpop.f32.mrb[0].mxu0
    %v1397 = vadd.f32 0.0, %v1396
    %v1398 = vpop.f32.mrb[0].mxu0
    %1399 = vmatprep.mubr.f32.mxu0 0.0
    %1400 = vmatmul.mubr.f32.gmra.mrb[0].mxu0 %v1077
    %v1401 = vpop.f32.mrb[0].mxu0
    %v1402 = vadd.f32 0.0, %v1401
    %v1403 = vpop.f32.mrb[0].mxu0
    %1404 = vmatprep.mubr.f32.mxu0 0.0
    %1405 = vmatmul.mubr.f32.gmra.mrb[0].mxu0 %v1080
    %v1406 = vpop.f32.mrb[0].mxu0
    %v1407 = vadd.f32 0.0, %v1406
    %v1408 = vpop.f32.mrb[0].mxu0
    %1409 = vmatprep.mubr.f32.mxu0 0.0
    %1410 = vmatmul.mubr.f32.gmra.mrb[0].mxu0 %v1083
    %v1411 = vpop.f32.mrb[0].mxu0
    %v1412 = vadd.f32 0.0, %v1411
    %v1413 = vpop.f32.mrb[0].mxu0
    %1414 = vmatprep.mubr.f32.mxu0 0.0
    %1415 = vmatmul.mubr.f32.gmra.mrb[0].mxu0 %v1086
    %v1416 = vpop.f32.mrb[0].mxu0
    %v1417 = vadd.f32 0.0, %v1416
    %v1418 = vpop.f32.mrb[0].mxu0
    %1419 = vmatprep.mubr.f32.mxu0 0.0
    %1420 = vmatmul.mubr.f32.gmra.mrb[0].mxu0 %v1089
    %v1421 = vpop.f32.mrb[0].mxu0
    %v1422 = vadd.f32 0.0, %v1421
    %v1423 = vpop.f32.mrb[0].mxu0
    %1424 = vmatprep.mubr.f32.mxu0 0.0
    %1425 = vmatmul.mubr.f32.gmra.mrb[0].mxu0 %v1092
    %v1426 = vpop.f32.mrb[0].mxu0
    %v1427 = vadd.f32 0.0, %v1426
    %v1428 = vpop.f32.mrb[0].mxu0
    %1429 = vmatprep.mubr.f32.mxu0 0.0
    %1430 = vmatmul.mubr.f32.gmra.mrb[0].mxu0 %v1095
    %v1431 = vpop.f32.mrb[0].mxu0
    %v1432 = vadd.f32 0.0, %v1431
    %v1433 = vpop.f32.mrb[0].mxu0
    %1434 = vmatprep.mubr.f32.mxu0 0.0
    %1435 = vmatmul.mubr.f32.gmra.mrb[0].mxu0 %v1098
    %v1436 = vpop.f32.mrb[0].mxu0
    %v1437 = vadd.f32 0.0, %v1436
    %v1438 = vpop.f32.mrb[0].mxu0
    %1439 = vmatprep.mubr.f32.mxu0 0.0
    %1440 = vmatmul.mubr.f32.gmra.mrb[0].mxu0 %v1101
    %v1441 = vpop.f32.mrb[0].mxu0
    %v1442 = vadd.f32 0.0, %v1441
    %v1443 = vpop.f32.mrb[0].mxu0
    %1444 = vmatprep.mubr.f32.mxu0 0.0
    %1445 = vmatmul.mubr.f32.gmra.mrb[0].mxu0 %v1104
    %v1446 = vpop.f32.mrb[0].mxu0
    %v1447 = vadd.f32 0.0, %v1446
    %v1448 = vpop.f32.mrb[0].mxu0
    %1449 = vmatprep.mubr.f32.mxu0 0.0
    %1450 = vmatmul.mubr.f32.gmra.mrb[0].mxu0 %v1107
    %v1451 = vpop.f32.mrb[0].mxu0
    %v1452 = vadd.f32 0.0, %v1451
    %v1453 = vpop.f32.mrb[0].mxu0
    %1454 = vmatprep.mubr.f32.mxu0 0.0
    %1455 = vmatmul.mubr.f32.gmra.mrb[0].mxu0 %v1110
    %v1456 = vpop.f32.mrb[0].mxu0
    %v1457 = vadd.f32 0.0, %v1456
    %v1458 = vpop.f32.mrb[0].mxu0
    %1459 = vmatprep.mubr.f32.mxu0 0.0
    %1460 = vmatmul.mubr.f32.gmra.mrb[0].mxu0 %v1113
    %v1461 = vpop.f32.mrb[0].mxu0
    %v1462 = vadd.f32 0.0, %v1461
    %v1463 = vpop.f32.mrb[0].mxu0
    %1464 = vmatprep.mubr.f32.mxu0 0.0
    %1465 = vmatmul.mubr.f32.gmra.mrb[0].mxu0 %v1116
    %v1466 = vpop.f32.mrb[0].mxu0
    %v1467 = vadd.f32 0.0, %v1466
    %v1468 = vpop.f32.mrb[0].mxu0
    %1469 = vmatprep.mubr.f32.mxu0 0.0
    %1470 = vmatmul.mubr.f32.gmra.mrb[0].mxu0 %v1119
    %v1471 = vpop.f32.mrb[0].mxu0
    %v1472 = vadd.f32 0.0, %v1471
    %v1473 = vpop.f32.mrb[0].mxu0
    %1474 = vmatprep.mubr.f32.mxu0 0.0
    %1475 = vmatmul.mubr.f32.gmra.mrb[0].mxu0 %v1122
    %v1476 = vpop.f32.mrb[0].mxu0
    %v1477 = vadd.f32 0.0, %v1476
    %v1478 = vpop.f32.mrb[0].mxu0
    %1479 = vmatprep.mubr.f32.mxu0 0.0
    %1480 = vmatmul.mubr.f32.gmra.mrb[0].mxu0 %v1125
    %v1481 = vpop.f32.mrb[0].mxu0
    %v1482 = vadd.f32 0.0, %v1481
    %v1483 = vpop.f32.mrb[0].mxu0
    %1484 = vmatprep.mubr.f32.mxu0 0.0
    %1485 = vmatmul.mubr.f32.gmra.mrb[0].mxu0 %v1128
    %v1486 = vpop.f32.mrb[0].mxu0
    %v1487 = vadd.f32 0.0, %v1486
    %v1488 = vpop.f32.mrb[0].mxu0
    %1489 = vmatprep.mubr.f32.mxu0 0.0
    %1490 = vmatmul.mubr.f32.gmra.mrb[0].mxu0 %v1131
    %v1491 = vpop.f32.mrb[0].mxu0
    %v1492 = vadd.f32 0.0, %v1491
    %v1493 = vpop.f32.mrb[0].mxu0
    %1494 = vmatprep.mubr.f32.mxu0 0.0
    %1495 = vmatmul.mubr.f32.gmra.mrb[0].mxu0 %v1134
    %v1496 = vpop.f32.mrb[0].mxu0
    %v1497 = vadd.f32 0.0, %v1496
    %v1498 = vpop.f32.mrb[0].mxu0
    %1499 = vmatprep.mubr.f32.mxu0 0.0
    %1500 = vmatmul.mubr.f32.gmra.mrb[0].mxu0 %v1137
    %v1501 = vpop.f32.mrb[0].mxu0
    %v1502 = vadd.f32 0.0, %v1501
    %v1503 = vpop.f32.mrb[0].mxu0
    %1504 = vmatprep.mubr.f32.mxu0 0.0
    %1505 = vmatmul.mubr.f32.gmra.mrb[0].mxu0 %v1140
    %v1506 = vpop.f32.mrb[0].mxu0
    %v1507 = vadd.f32 0.0, %v1506
    %v1508 = vpop.f32.mrb[0].mxu0
    %1509 = vdwg.mxu0
    %v1510 = vmul.f32 %v400, %v1212
    %v1511 = vmul.f32 %v405, %v1217
    %v1512 = vmul.f32 %v410, %v1222
    %v1513 = vmul.f32 %v415, %v1227
    %v1514 = vmul.f32 %v420, %v1232
    %v1515 = vmul.f32 %v425, %v1237
    %v1516 = vmul.f32 %v430, %v1242
    %v1517 = vmul.f32 %v435, %v1247
    %v1518 = vmul.f32 %v440, %v1252
    %v1519 = vmul.f32 %v445, %v1257
    %v1520 = vmul.f32 %v450, %v1262
    %v1521 = vmul.f32 %v455, %v1267
    %v1522 = vmul.f32 %v460, %v1272
    %v1523 = vmul.f32 %v465, %v1277
    %v1524 = vmul.f32 %v470, %v1282
    %v1525 = vmul.f32 %v475, %v1287
    %v1526 = vmul.f32 %v480, %v1292
    %v1527 = vmul.f32 %v485, %v1297
    %v1528 = vmul.f32 %v490, %v1302
    %v1529 = vmul.f32 %v495, %v1307
    %v1530 = vmul.f32 %v500, %v1312
    %v1531 = vmul.f32 %v505, %v1317
    %v1532 = vmul.f32 %v510, %v1322
    %v1533 = vmul.f32 %v515, %v1327
    %v1534 = vmul.f32 %v520, %v1332
    %v1535 = vmul.f32 %v525, %v1337
    %v1536 = vmul.f32 %v530, %v1342
    %v1537 = vmul.f32 %v535, %v1347
    %v1538 = vmul.f32 %v540, %v1352
    %v1539 = vmul.f32 %v545, %v1357
    %v1540 = vmul.f32 %v550, %v1362
    %v1541 = vmul.f32 %v555, %v1367
    %v1542 = vmul.f32 %v560, %v1372
    %v1543 = vmul.f32 %v565, %v1377
    %v1544 = vmul.f32 %v570, %v1382
    %v1545 = vmul.f32 %v575, %v1387
    %v1546 = vmul.f32 %v580, %v1392
    %v1547 = vmul.f32 %v585, %v1397
    %v1548 = vmul.f32 %v590, %v1402
    %v1549 = vmul.f32 %v595, %v1407
    %v1550 = vmul.f32 %v600, %v1412
    %v1551 = vmul.f32 %v605, %v1417
    %v1552 = vmul.f32 %v610, %v1422
    %v1553 = vmul.f32 %v615, %v1427
    %v1554 = vmul.f32 %v620, %v1432
    %v1555 = vmul.f32 %v625, %v1437
    %v1556 = vmul.f32 %v630, %v1442
    %v1557 = vmul.f32 %v635, %v1447
    %v1558 = vmul.f32 %v640, %v1452
    %v1559 = vmul.f32 %v645, %v1457
    %v1560 = vmul.f32 %v650, %v1462
    %v1561 = vmul.f32 %v655, %v1467
    %v1562 = vmul.f32 %v660, %v1472
    %v1563 = vmul.f32 %v665, %v1477
    %v1564 = vmul.f32 %v670, %v1482
    %v1565 = vmul.f32 %v675, %v1487
    %v1566 = vmul.f32 %v680, %v1492
    %v1567 = vmul.f32 %v685, %v1497
    %v1568 = vmul.f32 %v690, %v1502
    %v1569 = vmul.f32 %v695, %v1507
    %v1570 = vld [vmem:[#allocation7] sm:$0xff]
    %v1571 = vld [vmem:[#allocation7 + $0x8] sm:$0xff]
    %v1572 = vld [vmem:[#allocation7 + $0x10] sm:$0xff]
    %v1573 = vld [vmem:[#allocation7 + $0x18] sm:$0xff]
    %v1574 = vld [vmem:[#allocation7 + $0x20] sm:$0xff]
    %v1575 = vld [vmem:[#allocation7 + $0x28] sm:$0xff]
    %v1576 = vld [vmem:[#allocation7 + $0x30] sm:$0xff]
    %v1577 = vld [vmem:[#allocation7 + $0x38] sm:$0xff]
    %v1578 = vld [vmem:[#allocation7 + $0x40] sm:$0xff]
    %v1579 = vld [vmem:[#allocation7 + $0x48] sm:$0xff]
    %v1580 = vld [vmem:[#allocation7 + $0x50] sm:$0xff]
    %v1581 = vld [vmem:[#allocation7 + $0x58] sm:$0xff]
    %v1582 = vld [vmem:[#allocation7 + $0x60] sm:$0xff]
    %v1583 = vld [vmem:[#allocation7 + $0x68] sm:$0xff]
    %v1584 = vld [vmem:[#allocation7 + $0x70] sm:$0xff]
    %v1585 = vld [vmem:[#allocation7 + $0x78] sm:$0xff]
    %v1586 = vld [vmem:[#allocation7 + $0x80] sm:$0xff]
    %v1587 = vld [vmem:[#allocation7 + $0x88] sm:$0xff]
    %v1588 = vld [vmem:[#allocation7 + $0x90] sm:$0xff]
    %v1589 = vld [vmem:[#allocation7 + $0x98] sm:$0xff]
    %v1590 = vld [vmem:[#allocation7 + $0xa0] sm:$0xff]
    %v1591 = vld [vmem:[#allocation7 + $0xa8] sm:$0xff]
    %v1592 = vld [vmem:[#allocation7 + $0xb0] sm:$0xff]
    %v1593 = vld [vmem:[#allocation7 + $0xb8] sm:$0xff]
    %v1594 = vld [vmem:[#allocation7 + $0xc0] sm:$0xff]
    %v1595 = vld [vmem:[#allocation7 + $0xc8] sm:$0xff]
    %v1596 = vld [vmem:[#allocation7 + $0xd0] sm:$0xff]
    %v1597 = vld [vmem:[#allocation7 + $0xd8] sm:$0xff]
    %v1598 = vld [vmem:[#allocation7 + $0xe0] sm:$0xff]
    %v1599 = vld [vmem:[#allocation7 + $0xe8] sm:$0xff]
    %v1600 = vld [vmem:[#allocation7 + $0xf0] sm:$0xff]
    %v1601 = vld [vmem:[#allocation7 + $0xf8] sm:$0xff]
    %v1602 = vld [vmem:[#allocation7 + $0x100] sm:$0xff]
    %v1603 = vld [vmem:[#allocation7 + $0x108] sm:$0xff]
    %v1604 = vld [vmem:[#allocation7 + $0x110] sm:$0xff]
    %v1605 = vld [vmem:[#allocation7 + $0x118] sm:$0xff]
    %v1606 = vld [vmem:[#allocation7 + $0x120] sm:$0xff]
    %v1607 = vld [vmem:[#allocation7 + $0x128] sm:$0xff]
    %v1608 = vld [vmem:[#allocation7 + $0x130] sm:$0xff]
    %v1609 = vld [vmem:[#allocation7 + $0x138] sm:$0xff]
    %v1610 = vld [vmem:[#allocation7 + $0x140] sm:$0xff]
    %v1611 = vld [vmem:[#allocation7 + $0x148] sm:$0xff]
    %v1612 = vld [vmem:[#allocation7 + $0x150] sm:$0xff]
    %v1613 = vld [vmem:[#allocation7 + $0x158] sm:$0xff]
    %v1614 = vld [vmem:[#allocation7 + $0x160] sm:$0xff]
    %v1615 = vld [vmem:[#allocation7 + $0x168] sm:$0xff]
    %v1616 = vld [vmem:[#allocation7 + $0x170] sm:$0xff]
    %v1617 = vld [vmem:[#allocation7 + $0x178] sm:$0xff]
    %v1618 = vld [vmem:[#allocation7 + $0x180] sm:$0xff]
    %v1619 = vld [vmem:[#allocation7 + $0x188] sm:$0xff]
    %v1620 = vld [vmem:[#allocation7 + $0x190] sm:$0xff]
    %v1621 = vld [vmem:[#allocation7 + $0x198] sm:$0xff]
    %v1622 = vld [vmem:[#allocation7 + $0x1a0] sm:$0xff]
    %v1623 = vld [vmem:[#allocation7 + $0x1a8] sm:$0xff]
    %v1624 = vld [vmem:[#allocation7 + $0x1b0] sm:$0xff]
    %v1625 = vld [vmem:[#allocation7 + $0x1b8] sm:$0xff]
    %v1626 = vld [vmem:[#allocation7 + $0x1c0] sm:$0xff]
    %v1627 = vld [vmem:[#allocation7 + $0x1c8] sm:$0xff]
    %v1628 = vld [vmem:[#allocation7 + $0x1d0] sm:$0xff]
    %v1629 = vld [vmem:[#allocation7 + $0x1d8] sm:$0xff]
    %v1630 = vld [vmem:[#allocation7 + $0x1e0] sm:$0xff]
    %v1631 = vld [vmem:[#allocation7 + $0x1e8] sm:$0xff]
    %v1632 = vld [vmem:[#allocation7 + $0x1f0] sm:$0xff]
    %v1633 = vld [vmem:[#allocation7 + $0x1f8] sm:$0xff]
    %v1634 = vld [vmem:[#allocation7 + $0x200] sm:$0xff]
    %v1635 = vld [vmem:[#allocation7 + $0x208] sm:$0xff]
    %v1636 = vld [vmem:[#allocation7 + $0x210] sm:$0xff]
    %v1637 = vld [vmem:[#allocation7 + $0x218] sm:$0xff]
    %v1638 = vld [vmem:[#allocation7 + $0x220] sm:$0xff]
    %v1639 = vld [vmem:[#allocation7 + $0x228] sm:$0xff]
    %v1640 = vld [vmem:[#allocation7 + $0x230] sm:$0xff]
    %v1641 = vld [vmem:[#allocation7 + $0x238] sm:$0xff]
    %v1642 = vld [vmem:[#allocation7 + $0x240] sm:$0xff]
    %v1643 = vld [vmem:[#allocation7 + $0x248] sm:$0xff]
    %v1644 = vld [vmem:[#allocation7 + $0x250] sm:$0xff]
    %v1645 = vld [vmem:[#allocation7 + $0x258] sm:$0xff]
    %v1646 = vld [vmem:[#allocation7 + $0x260] sm:$0xff]
    %v1647 = vld [vmem:[#allocation7 + $0x268] sm:$0xff]
    %v1648 = vld [vmem:[#allocation7 + $0x270] sm:$0xff]
    %v1649 = vld [vmem:[#allocation7 + $0x278] sm:$0xff]
    %v1650 = vld [vmem:[#allocation7 + $0x280] sm:$0xff]
    %v1651 = vld [vmem:[#allocation7 + $0x288] sm:$0xff]
    %v1652 = vld [vmem:[#allocation7 + $0x290] sm:$0xff]
    %v1653 = vld [vmem:[#allocation7 + $0x298] sm:$0xff]
    %v1654 = vld [vmem:[#allocation7 + $0x2a0] sm:$0xff]
    %v1655 = vld [vmem:[#allocation7 + $0x2a8] sm:$0xff]
    %v1656 = vld [vmem:[#allocation7 + $0x2b0] sm:$0xff]
    %v1657 = vld [vmem:[#allocation7 + $0x2b8] sm:$0xff]
    %v1658 = vld [vmem:[#allocation7 + $0x2c0] sm:$0xff]
    %v1659 = vld [vmem:[#allocation7 + $0x2c8] sm:$0xff]
    %v1660 = vld [vmem:[#allocation7 + $0x2d0] sm:$0xff]
    %v1661 = vld [vmem:[#allocation7 + $0x2d8] sm:$0xff]
    %v1662 = vld [vmem:[#allocation7 + $0x2e0] sm:$0xff]
    %v1663 = vld [vmem:[#allocation7 + $0x2e8] sm:$0xff]
    %v1664 = vld [vmem:[#allocation7 + $0x2f0] sm:$0xff]
    %v1665 = vld [vmem:[#allocation7 + $0x2f8] sm:$0xff]
    %v1666 = vld [vmem:[#allocation7 + $0x300] sm:$0xff]
    %v1667 = vld [vmem:[#allocation7 + $0x308] sm:$0xff]
    %v1668 = vld [vmem:[#allocation7 + $0x310] sm:$0xff]
    %v1669 = vld [vmem:[#allocation7 + $0x318] sm:$0xff]
    %v1670 = vld [vmem:[#allocation7 + $0x320] sm:$0xff]
    %v1671 = vld [vmem:[#allocation7 + $0x328] sm:$0xff]
    %v1672 = vld [vmem:[#allocation7 + $0x330] sm:$0xff]
    %v1673 = vld [vmem:[#allocation7 + $0x338] sm:$0xff]
    %v1674 = vld [vmem:[#allocation7 + $0x340] sm:$0xff]
    %v1675 = vld [vmem:[#allocation7 + $0x348] sm:$0xff]
    %v1676 = vld [vmem:[#allocation7 + $0x350] sm:$0xff]
    %v1677 = vld [vmem:[#allocation7 + $0x358] sm:$0xff]
    %v1678 = vld [vmem:[#allocation7 + $0x360] sm:$0xff]
    %v1679 = vld [vmem:[#allocation7 + $0x368] sm:$0xff]
    %v1680 = vld [vmem:[#allocation7 + $0x370] sm:$0xff]
    %v1681 = vld [vmem:[#allocation7 + $0x378] sm:$0xff]
    %v1682 = vld [vmem:[#allocation7 + $0x380] sm:$0xff]
    %v1683 = vld [vmem:[#allocation7 + $0x388] sm:$0xff]
    %v1684 = vld [vmem:[#allocation7 + $0x390] sm:$0xff]
    %v1685 = vld [vmem:[#allocation7 + $0x398] sm:$0xff]
    %v1686 = vld [vmem:[#allocation7 + $0x3a0] sm:$0xff]
    %v1687 = vld [vmem:[#allocation7 + $0x3a8] sm:$0xff]
    %v1688 = vld [vmem:[#allocation7 + $0x3b0] sm:$0xff]
    %v1689 = vld [vmem:[#allocation7 + $0x3b8] sm:$0xff]
    %v1690 = vld [vmem:[#allocation7 + $0x3c0] sm:$0xff]
    %v1691 = vld [vmem:[#allocation7 + $0x3c8] sm:$0xff]
    %v1692 = vld [vmem:[#allocation7 + $0x3d0] sm:$0xff]
    %v1693 = vld [vmem:[#allocation7 + $0x3d8] sm:$0xff]
    %v1694 = vld [vmem:[#allocation7 + $0x3e0] sm:$0xff]
    %v1695 = vld [vmem:[#allocation7 + $0x3e8] sm:$0xff]
    %v1696 = vld [vmem:[#allocation7 + $0x3f0] sm:$0xff]
    %v1697 = vld [vmem:[#allocation7 + $0x3f8] sm:$0xff]
    %v1698 = vld [vmem:[#allocation7 + $0x400] sm:$0xff]
    %v1699 = vld [vmem:[#allocation7 + $0x408] sm:$0xff]
    %v1700 = vld [vmem:[#allocation7 + $0x410] sm:$0xff]
    %v1701 = vld [vmem:[#allocation7 + $0x418] sm:$0xff]
    %v1702 = vld [vmem:[#allocation7 + $0x420] sm:$0xff]
    %v1703 = vld [vmem:[#allocation7 + $0x428] sm:$0xff]
    %v1704 = vld [vmem:[#allocation7 + $0x430] sm:$0xff]
    %v1705 = vld [vmem:[#allocation7 + $0x438] sm:$0xff]
    %v1706 = vld [vmem:[#allocation7 + $0x440] sm:$0xff]
    %v1707 = vld [vmem:[#allocation7 + $0x448] sm:$0xff]
    %v1708 = vld [vmem:[#allocation7 + $0x450] sm:$0xff]
    %v1709 = vld [vmem:[#allocation7 + $0x458] sm:$0xff]
    %v1710 = vld [vmem:[#allocation7 + $0x460] sm:$0xff]
    %v1711 = vld [vmem:[#allocation7 + $0x468] sm:$0xff]
    %v1712 = vld [vmem:[#allocation7 + $0x470] sm:$0xff]
    %v1713 = vld [vmem:[#allocation7 + $0x478] sm:$0xff]
    %v1714 = vld [vmem:[#allocation7 + $0x480] sm:$0xff]
    %v1715 = vld [vmem:[#allocation7 + $0x488] sm:$0xff]
    %v1716 = vld [vmem:[#allocation7 + $0x490] sm:$0xff]
    %v1717 = vld [vmem:[#allocation7 + $0x498] sm:$0xff]
    %v1718 = vld [vmem:[#allocation7 + $0x4a0] sm:$0xff]
    %v1719 = vld [vmem:[#allocation7 + $0x4a8] sm:$0xff]
    %v1720 = vld [vmem:[#allocation7 + $0x4b0] sm:$0xff]
    %v1721 = vld [vmem:[#allocation7 + $0x4b8] sm:$0xff]
    %v1722 = vld [vmem:[#allocation7 + $0x4c0] sm:$0xff]
    %v1723 = vld [vmem:[#allocation7 + $0x4c8] sm:$0xff]
    %v1724 = vld [vmem:[#allocation7 + $0x4d0] sm:$0xff]
    %v1725 = vld [vmem:[#allocation7 + $0x4d8] sm:$0xff]
    %v1726 = vld [vmem:[#allocation7 + $0x4e0] sm:$0xff]
    %v1727 = vld [vmem:[#allocation7 + $0x4e8] sm:$0xff]
    %v1728 = vld [vmem:[#allocation7 + $0x4f0] sm:$0xff]
    %v1729 = vld [vmem:[#allocation7 + $0x4f8] sm:$0xff]
    %v1730 = vld [vmem:[#allocation7 + $0x500] sm:$0xff]
    %v1731 = vld [vmem:[#allocation7 + $0x508] sm:$0xff]
    %v1732 = vld [vmem:[#allocation7 + $0x510] sm:$0xff]
    %v1733 = vld [vmem:[#allocation7 + $0x518] sm:$0xff]
    %v1734 = vld [vmem:[#allocation7 + $0x520] sm:$0xff]
    %v1735 = vld [vmem:[#allocation7 + $0x528] sm:$0xff]
    %v1736 = vld [vmem:[#allocation7 + $0x530] sm:$0xff]
    %v1737 = vld [vmem:[#allocation7 + $0x538] sm:$0xff]
    %v1738 = vld [vmem:[#allocation7 + $0x540] sm:$0xff]
    %v1739 = vld [vmem:[#allocation7 + $0x548] sm:$0xff]
    %v1740 = vld [vmem:[#allocation7 + $0x550] sm:$0xff]
    %v1741 = vld [vmem:[#allocation7 + $0x558] sm:$0xff]
    %v1742 = vld [vmem:[#allocation7 + $0x560] sm:$0xff]
    %v1743 = vld [vmem:[#allocation7 + $0x568] sm:$0xff]
    %v1744 = vld [vmem:[#allocation7 + $0x570] sm:$0xff]
    %v1745 = vld [vmem:[#allocation7 + $0x578] sm:$0xff]
    %v1746 = vld [vmem:[#allocation7 + $0x580] sm:$0xff]
    %v1747 = vld [vmem:[#allocation7 + $0x588] sm:$0xff]
    %v1748 = vld [vmem:[#allocation7 + $0x590] sm:$0xff]
    %v1749 = vld [vmem:[#allocation7 + $0x598] sm:$0xff]
    %v1750 = vld [vmem:[#allocation7 + $0x5a0] sm:$0xff]
    %v1751 = vld [vmem:[#allocation7 + $0x5a8] sm:$0xff]
    %v1752 = vld [vmem:[#allocation7 + $0x5b0] sm:$0xff]
    %v1753 = vld [vmem:[#allocation7 + $0x5b8] sm:$0xff]
    %v1754 = vld [vmem:[#allocation7 + $0x5c0] sm:$0xff]
    %v1755 = vld [vmem:[#allocation7 + $0x5c8] sm:$0xff]
    %v1756 = vld [vmem:[#allocation7 + $0x5d0] sm:$0xff]
    %v1757 = vld [vmem:[#allocation7 + $0x5d8] sm:$0xff]
    %v1758 = vld [vmem:[#allocation7 + $0x5e0] sm:$0xff]
    %v1759 = vld [vmem:[#allocation7 + $0x5e8] sm:$0xff]
    %v1760 = vld [vmem:[#allocation7 + $0x5f0] sm:$0xff]
    %v1761 = vld [vmem:[#allocation7 + $0x5f8] sm:$0xff]
    %v1762 = vld [vmem:[#allocation7 + $0x600] sm:$0xff]
    %v1763 = vld [vmem:[#allocation7 + $0x608] sm:$0xff]
    %v1764 = vld [vmem:[#allocation7 + $0x610] sm:$0xff]
    %v1765 = vld [vmem:[#allocation7 + $0x618] sm:$0xff]
    %v1766 = vld [vmem:[#allocation7 + $0x620] sm:$0xff]
    %v1767 = vld [vmem:[#allocation7 + $0x628] sm:$0xff]
    %v1768 = vld [vmem:[#allocation7 + $0x630] sm:$0xff]
    %v1769 = vld [vmem:[#allocation7 + $0x638] sm:$0xff]
    %v1770 = vld [vmem:[#allocation7 + $0x640] sm:$0xff]
    %v1771 = vld [vmem:[#allocation7 + $0x648] sm:$0xff]
    %v1772 = vld [vmem:[#allocation7 + $0x650] sm:$0xff]
    %v1773 = vld [vmem:[#allocation7 + $0x658] sm:$0xff]
    %v1774 = vld [vmem:[#allocation7 + $0x660] sm:$0xff]
    %v1775 = vld [vmem:[#allocation7 + $0x668] sm:$0xff]
    %v1776 = vld [vmem:[#allocation7 + $0x670] sm:$0xff]
    %v1777 = vld [vmem:[#allocation7 + $0x678] sm:$0xff]
    %v1778 = vld [vmem:[#allocation7 + $0x680] sm:$0xff]
    %v1779 = vld [vmem:[#allocation7 + $0x688] sm:$0xff]
    %v1780 = vld [vmem:[#allocation7 + $0x690] sm:$0xff]
    %v1781 = vld [vmem:[#allocation7 + $0x698] sm:$0xff]
    %v1782 = vld [vmem:[#allocation7 + $0x6a0] sm:$0xff]
    %v1783 = vld [vmem:[#allocation7 + $0x6a8] sm:$0xff]
    %v1784 = vld [vmem:[#allocation7 + $0x6b0] sm:$0xff]
    %v1785 = vld [vmem:[#allocation7 + $0x6b8] sm:$0xff]
    %v1786 = vld [vmem:[#allocation7 + $0x6c0] sm:$0xff]
    %v1787 = vld [vmem:[#allocation7 + $0x6c8] sm:$0xff]
    %v1788 = vld [vmem:[#allocation7 + $0x6d0] sm:$0xff]
    %v1789 = vld [vmem:[#allocation7 + $0x6d8] sm:$0xff]
    %v1790 = vld [vmem:[#allocation7 + $0x6e0] sm:$0xff]
    %v1791 = vld [vmem:[#allocation7 + $0x6e8] sm:$0xff]
    %v1792 = vld [vmem:[#allocation7 + $0x6f0] sm:$0xff]
    %v1793 = vld [vmem:[#allocation7 + $0x6f8] sm:$0xff]
    %v1794 = vld [vmem:[#allocation7 + $0x700] sm:$0xff]
    %v1795 = vld [vmem:[#allocation7 + $0x708] sm:$0xff]
    %v1796 = vld [vmem:[#allocation7 + $0x710] sm:$0xff]
    %v1797 = vld [vmem:[#allocation7 + $0x718] sm:$0xff]
    %v1798 = vld [vmem:[#allocation7 + $0x720] sm:$0xff]
    %v1799 = vld [vmem:[#allocation7 + $0x728] sm:$0xff]
    %v1800 = vld [vmem:[#allocation7 + $0x730] sm:$0xff]
    %v1801 = vld [vmem:[#allocation7 + $0x738] sm:$0xff]
    %v1802 = vld [vmem:[#allocation7 + $0x740] sm:$0xff]
    %v1803 = vld [vmem:[#allocation7 + $0x748] sm:$0xff]
    %v1804 = vld [vmem:[#allocation7 + $0x750] sm:$0xff]
    %v1805 = vld [vmem:[#allocation7 + $0x758] sm:$0xff]
    %v1806 = vld [vmem:[#allocation7 + $0x760] sm:$0xff]
    %v1807 = vld [vmem:[#allocation7 + $0x768] sm:$0xff]
    %v1808 = vld [vmem:[#allocation7 + $0x770] sm:$0xff]
    %v1809 = vld [vmem:[#allocation7 + $0x778] sm:$0xff]
    %v1810 = vld [vmem:[#allocation7 + $0x780] sm:$0xff]
    %v1811 = vld [vmem:[#allocation7 + $0x788] sm:$0xff]
    %v1812 = vld [vmem:[#allocation7 + $0x790] sm:$0xff]
    %v1813 = vld [vmem:[#allocation7 + $0x798] sm:$0xff]
    %v1814 = vld [vmem:[#allocation7 + $0x7a0] sm:$0xff]
    %v1815 = vld [vmem:[#allocation7 + $0x7a8] sm:$0xff]
    %v1816 = vld [vmem:[#allocation7 + $0x7b0] sm:$0xff]
    %v1817 = vld [vmem:[#allocation7 + $0x7b8] sm:$0xff]
    %v1818 = vld [vmem:[#allocation7 + $0x7c0] sm:$0xff]
    %v1819 = vld [vmem:[#allocation7 + $0x7c8] sm:$0xff]
    %v1820 = vld [vmem:[#allocation7 + $0x7d0] sm:$0xff]
    %v1821 = vld [vmem:[#allocation7 + $0x7d8] sm:$0xff]
    %v1822 = vld [vmem:[#allocation7 + $0x7e0] sm:$0xff]
    %v1823 = vld [vmem:[#allocation7 + $0x7e8] sm:$0xff]
    %v1824 = vld [vmem:[#allocation7 + $0x7f0] sm:$0xff]
    %v1825 = vld [vmem:[#allocation7 + $0x7f8] sm:$0xff]
    %v1826 = vld [vmem:[#allocation7 + $0x800] sm:$0xff]
    %v1827 = vld [vmem:[#allocation7 + $0x808] sm:$0xff]
    %v1828 = vld [vmem:[#allocation7 + $0x810] sm:$0xff]
    %v1829 = vld [vmem:[#allocation7 + $0x818] sm:$0xff]
    %v1830 = vld [vmem:[#allocation7 + $0x820] sm:$0xff]
    %v1831 = vld [vmem:[#allocation7 + $0x828] sm:$0xff]
    %v1832 = vld [vmem:[#allocation7 + $0x830] sm:$0xff]
    %v1833 = vld [vmem:[#allocation7 + $0x838] sm:$0xff]
    %v1834 = vld [vmem:[#allocation7 + $0x840] sm:$0xff]
    %v1835 = vld [vmem:[#allocation7 + $0x848] sm:$0xff]
    %v1836 = vld [vmem:[#allocation7 + $0x850] sm:$0xff]
    %v1837 = vld [vmem:[#allocation7 + $0x858] sm:$0xff]
    %v1838 = vld [vmem:[#allocation7 + $0x860] sm:$0xff]
    %v1839 = vld [vmem:[#allocation7 + $0x868] sm:$0xff]
    %v1840 = vld [vmem:[#allocation7 + $0x870] sm:$0xff]
    %v1841 = vld [vmem:[#allocation7 + $0x878] sm:$0xff]
    %v1842 = vld [vmem:[#allocation7 + $0x880] sm:$0xff]
    %v1843 = vld [vmem:[#allocation7 + $0x888] sm:$0xff]
    %v1844 = vld [vmem:[#allocation7 + $0x890] sm:$0xff]
    %v1845 = vld [vmem:[#allocation7 + $0x898] sm:$0xff]
    %v1846 = vld [vmem:[#allocation7 + $0x8a0] sm:$0xff]
    %v1847 = vld [vmem:[#allocation7 + $0x8a8] sm:$0xff]
    %v1848 = vld [vmem:[#allocation7 + $0x8b0] sm:$0xff]
    %v1849 = vld [vmem:[#allocation7 + $0x8b8] sm:$0xff]
    %v1850 = vld [vmem:[#allocation7 + $0x8c0] sm:$0xff]
    %v1851 = vld [vmem:[#allocation7 + $0x8c8] sm:$0xff]
    %v1852 = vld [vmem:[#allocation7 + $0x8d0] sm:$0xff]
    %v1853 = vld [vmem:[#allocation7 + $0x8d8] sm:$0xff]
    %v1854 = vld [vmem:[#allocation7 + $0x8e0] sm:$0xff]
    %v1855 = vld [vmem:[#allocation7 + $0x8e8] sm:$0xff]
    %v1856 = vld [vmem:[#allocation7 + $0x8f0] sm:$0xff]
    %v1857 = vld [vmem:[#allocation7 + $0x8f8] sm:$0xff]
    %v1858 = vld [vmem:[#allocation7 + $0x900] sm:$0xff]
    %v1859 = vld [vmem:[#allocation7 + $0x908] sm:$0xff]
    %v1860 = vld [vmem:[#allocation7 + $0x910] sm:$0xff]
    %v1861 = vld [vmem:[#allocation7 + $0x918] sm:$0xff]
    %v1862 = vld [vmem:[#allocation7 + $0x920] sm:$0xff]
    %v1863 = vld [vmem:[#allocation7 + $0x928] sm:$0xff]
    %v1864 = vld [vmem:[#allocation7 + $0x930] sm:$0xff]
    %v1865 = vld [vmem:[#allocation7 + $0x938] sm:$0xff]
    %v1866 = vld [vmem:[#allocation7 + $0x940] sm:$0xff]
    %v1867 = vld [vmem:[#allocation7 + $0x948] sm:$0xff]
    %v1868 = vld [vmem:[#allocation7 + $0x950] sm:$0xff]
    %v1869 = vld [vmem:[#allocation7 + $0x958] sm:$0xff]
    %v1870 = vld [vmem:[#allocation7 + $0x960] sm:$0xff]
    %v1871 = vld [vmem:[#allocation7 + $0x968] sm:$0xff]
    %v1872 = vld [vmem:[#allocation7 + $0x970] sm:$0xff]
    %v1873 = vld [vmem:[#allocation7 + $0x978] sm:$0xff]
    %v1874 = vld [vmem:[#allocation7 + $0x980] sm:$0xff]
    %v1875 = vld [vmem:[#allocation7 + $0x988] sm:$0xff]
    %v1876 = vld [vmem:[#allocation7 + $0x990] sm:$0xff]
    %v1877 = vld [vmem:[#allocation7 + $0x998] sm:$0xff]
    %v1878 = vld [vmem:[#allocation7 + $0x9a0] sm:$0xff]
    %v1879 = vld [vmem:[#allocation7 + $0x9a8] sm:$0xff]
    %v1880 = vld [vmem:[#allocation7 + $0x9b0] sm:$0xff]
    %v1881 = vld [vmem:[#allocation7 + $0x9b8] sm:$0xff]
    %v1882 = vld [vmem:[#allocation7 + $0x9c0] sm:$0xff]
    %v1883 = vld [vmem:[#allocation7 + $0x9c8] sm:$0xff]
    %v1884 = vld [vmem:[#allocation7 + $0x9d0] sm:$0xff]
    %v1885 = vld [vmem:[#allocation7 + $0x9d8] sm:$0xff]
    %v1886 = vld [vmem:[#allocation7 + $0x9e0] sm:$0xff]
    %v1887 = vld [vmem:[#allocation7 + $0x9e8] sm:$0xff]
    %v1888 = vld [vmem:[#allocation7 + $0x9f0] sm:$0xff]
    %v1889 = vld [vmem:[#allocation7 + $0x9f8] sm:$0xff]
    %v1890 = vld [vmem:[#allocation7 + $0xa00] sm:$0xff]
    %v1891 = vld [vmem:[#allocation7 + $0xa08] sm:$0xff]
    %v1892 = vld [vmem:[#allocation7 + $0xa10] sm:$0xff]
    %v1893 = vld [vmem:[#allocation7 + $0xa18] sm:$0xff]
    %v1894 = vld [vmem:[#allocation7 + $0xa20] sm:$0xff]
    %v1895 = vld [vmem:[#allocation7 + $0xa28] sm:$0xff]
    %v1896 = vld [vmem:[#allocation7 + $0xa30] sm:$0xff]
    %v1897 = vld [vmem:[#allocation7 + $0xa38] sm:$0xff]
    %v1898 = vld [vmem:[#allocation7 + $0xa40] sm:$0xff]
    %v1899 = vld [vmem:[#allocation7 + $0xa48] sm:$0xff]
    %v1900 = vld [vmem:[#allocation7 + $0xa50] sm:$0xff]
    %v1901 = vld [vmem:[#allocation7 + $0xa58] sm:$0xff]
    %v1902 = vld [vmem:[#allocation7 + $0xa60] sm:$0xff]
    %v1903 = vld [vmem:[#allocation7 + $0xa68] sm:$0xff]
    %v1904 = vld [vmem:[#allocation7 + $0xa70] sm:$0xff]
    %v1905 = vld [vmem:[#allocation7 + $0xa78] sm:$0xff]
    %v1906 = vld [vmem:[#allocation7 + $0xa80] sm:$0xff]
    %v1907 = vld [vmem:[#allocation7 + $0xa88] sm:$0xff]
    %v1908 = vld [vmem:[#allocation7 + $0xa90] sm:$0xff]
    %v1909 = vld [vmem:[#allocation7 + $0xa98] sm:$0xff]
    %v1910 = vld [vmem:[#allocation7 + $0xaa0] sm:$0xff]
    %v1911 = vld [vmem:[#allocation7 + $0xaa8] sm:$0xff]
    %v1912 = vld [vmem:[#allocation7 + $0xab0] sm:$0xff]
    %v1913 = vld [vmem:[#allocation7 + $0xab8] sm:$0xff]
    %v1914 = vld [vmem:[#allocation7 + $0xac0] sm:$0xff]
    %v1915 = vld [vmem:[#allocation7 + $0xac8] sm:$0xff]
    %v1916 = vld [vmem:[#allocation7 + $0xad0] sm:$0xff]
    %v1917 = vld [vmem:[#allocation7 + $0xad8] sm:$0xff]
    %v1918 = vld [vmem:[#allocation7 + $0xae0] sm:$0xff]
    %v1919 = vld [vmem:[#allocation7 + $0xae8] sm:$0xff]
    %v1920 = vld [vmem:[#allocation7 + $0xaf0] sm:$0xff]
    %v1921 = vld [vmem:[#allocation7 + $0xaf8] sm:$0xff]
    %v1922 = vld [vmem:[#allocation7 + $0xb00] sm:$0xff]
    %v1923 = vld [vmem:[#allocation7 + $0xb08] sm:$0xff]
    %v1924 = vld [vmem:[#allocation7 + $0xb10] sm:$0xff]
    %v1925 = vld [vmem:[#allocation7 + $0xb18] sm:$0xff]
    %v1926 = vld [vmem:[#allocation7 + $0xb20] sm:$0xff]
    %v1927 = vld [vmem:[#allocation7 + $0xb28] sm:$0xff]
    %v1928 = vld [vmem:[#allocation7 + $0xb30] sm:$0xff]
    %v1929 = vld [vmem:[#allocation7 + $0xb38] sm:$0xff]
    %v1930 = vld [vmem:[#allocation7 + $0xb40] sm:$0xff]
    %v1931 = vld [vmem:[#allocation7 + $0xb48] sm:$0xff]
    %v1932 = vld [vmem:[#allocation7 + $0xb50] sm:$0xff]
    %v1933 = vld [vmem:[#allocation7 + $0xb58] sm:$0xff]
    %v1934 = vld [vmem:[#allocation7 + $0xb60] sm:$0xff]
    %v1935 = vld [vmem:[#allocation7 + $0xb68] sm:$0xff]
    %v1936 = vld [vmem:[#allocation7 + $0xb70] sm:$0xff]
    %v1937 = vld [vmem:[#allocation7 + $0xb78] sm:$0xff]
    %v1938 = vld [vmem:[#allocation7 + $0xb80] sm:$0xff]
    %v1939 = vld [vmem:[#allocation7 + $0xb88] sm:$0xff]
    %v1940 = vld [vmem:[#allocation7 + $0xb90] sm:$0xff]
    %v1941 = vld [vmem:[#allocation7 + $0xb98] sm:$0xff]
    %v1942 = vld [vmem:[#allocation7 + $0xba0] sm:$0xff]
    %v1943 = vld [vmem:[#allocation7 + $0xba8] sm:$0xff]
    %v1944 = vld [vmem:[#allocation7 + $0xbb0] sm:$0xff]
    %v1945 = vld [vmem:[#allocation7 + $0xbb8] sm:$0xff]
    %v1946 = vld [vmem:[#allocation7 + $0xbc0] sm:$0xff]
    %v1947 = vld [vmem:[#allocation7 + $0xbc8] sm:$0xff]
    %v1948 = vld [vmem:[#allocation7 + $0xbd0] sm:$0xff]
    %v1949 = vld [vmem:[#allocation7 + $0xbd8] sm:$0xff]
    %v1950 = vld [vmem:[#allocation7 + $0xbe0] sm:$0xff]
    %v1951 = vld [vmem:[#allocation7 + $0xbe8] sm:$0xff]
    %v1952 = vld [vmem:[#allocation7 + $0xbf0] sm:$0xff]
    %v1953 = vld [vmem:[#allocation7 + $0xbf8] sm:$0xff]
    %v1954 = vld [vmem:[#allocation7 + $0xc00] sm:$0xff]
    %v1955 = vld [vmem:[#allocation7 + $0xc08] sm:$0xff]
    %v1956 = vld [vmem:[#allocation7 + $0xc10] sm:$0xff]
    %v1957 = vld [vmem:[#allocation7 + $0xc18] sm:$0xff]
    %v1958 = vld [vmem:[#allocation7 + $0xc20] sm:$0xff]
    %v1959 = vld [vmem:[#allocation7 + $0xc28] sm:$0xff]
    %v1960 = vld [vmem:[#allocation7 + $0xc30] sm:$0xff]
    %v1961 = vld [vmem:[#allocation7 + $0xc38] sm:$0xff]
    %v1962 = vld [vmem:[#allocation7 + $0xc40] sm:$0xff]
    %v1963 = vld [vmem:[#allocation7 + $0xc48] sm:$0xff]
    %v1964 = vld [vmem:[#allocation7 + $0xc50] sm:$0xff]
    %v1965 = vld [vmem:[#allocation7 + $0xc58] sm:$0xff]
    %v1966 = vld [vmem:[#allocation7 + $0xc60] sm:$0xff]
    %v1967 = vld [vmem:[#allocation7 + $0xc68] sm:$0xff]
    %v1968 = vld [vmem:[#allocation7 + $0xc70] sm:$0xff]
    %v1969 = vld [vmem:[#allocation7 + $0xc78] sm:$0xff]
    %v1970 = vld [vmem:[#allocation7 + $0xc80] sm:$0xff]
    %v1971 = vld [vmem:[#allocation7 + $0xc88] sm:$0xff]
    %v1972 = vld [vmem:[#allocation7 + $0xc90] sm:$0xff]
    %v1973 = vld [vmem:[#allocation7 + $0xc98] sm:$0xff]
    %v1974 = vld [vmem:[#allocation7 + $0xca0] sm:$0xff]
    %v1975 = vld [vmem:[#allocation7 + $0xca8] sm:$0xff]
    %v1976 = vld [vmem:[#allocation7 + $0xcb0] sm:$0xff]
    %v1977 = vld [vmem:[#allocation7 + $0xcb8] sm:$0xff]
    %v1978 = vld [vmem:[#allocation7 + $0xcc0] sm:$0xff]
    %v1979 = vld [vmem:[#allocation7 + $0xcc8] sm:$0xff]
    %v1980 = vld [vmem:[#allocation7 + $0xcd0] sm:$0xff]
    %v1981 = vld [vmem:[#allocation7 + $0xcd8] sm:$0xff]
    %v1982 = vld [vmem:[#allocation7 + $0xce0] sm:$0xff]
    %v1983 = vld [vmem:[#allocation7 + $0xce8] sm:$0xff]
    %v1984 = vld [vmem:[#allocation7 + $0xcf0] sm:$0xff]
    %v1985 = vld [vmem:[#allocation7 + $0xcf8] sm:$0xff]
    %v1987 = vsel %vm718, %v1573, 0
    %v1990 = vsel %vm718, %v1577, 0
    %v1993 = vsel %vm718, %v1581, 0
    %v1996 = vsel %vm718, %v1585, 0
    %v1999 = vsel %vm718, %v1589, 0
    %v2002 = vsel %vm718, %v1593, 0
    %v2005 = vsel %vm718, %v1597, 0
    %v2008 = vsel %vm718, %v1601, 0
    %v2011 = vsel %vm718, %v1605, 0
    %v2014 = vsel %vm718, %v1609, 0
    %v2017 = vsel %vm718, %v1613, 0
    %v2020 = vsel %vm718, %v1617, 0
    %v2023 = vsel %vm718, %v1621, 0
    %v2026 = vsel %vm718, %v1625, 0
    %v2029 = vsel %vm718, %v1629, 0
    %v2032 = vsel %vm718, %v1633, 0
    %v2035 = vsel %vm718, %v1637, 0
    %v2038 = vsel %vm718, %v1641, 0
    %v2041 = vsel %vm718, %v1645, 0
    %v2044 = vsel %vm718, %v1649, 0
    %v2047 = vsel %vm718, %v1653, 0
    %v2050 = vsel %vm718, %v1657, 0
    %v2053 = vsel %vm718, %v1661, 0
    %v2056 = vsel %vm718, %v1665, 0
    %v2059 = vsel %vm718, %v1669, 0
    %v2062 = vsel %vm718, %v1673, 0
    %v2065 = vsel %vm718, %v1677, 0
    %v2068 = vsel %vm718, %v1681, 0
    %v2071 = vsel %vm718, %v1685, 0
    %v2074 = vsel %vm718, %v1689, 0
    %v2077 = vsel %vm718, %v1693, 0
    %v2080 = vsel %vm718, %v1697, 0
    %v2083 = vsel %vm718, %v1701, 0
    %v2086 = vsel %vm718, %v1705, 0
    %v2089 = vsel %vm718, %v1709, 0
    %v2092 = vsel %vm718, %v1713, 0
    %v2095 = vsel %vm718, %v1717, 0
    %v2098 = vsel %vm718, %v1721, 0
    %v2101 = vsel %vm718, %v1725, 0
    %v2104 = vsel %vm718, %v1729, 0
    %v2107 = vsel %vm718, %v1733, 0
    %v2110 = vsel %vm718, %v1737, 0
    %v2113 = vsel %vm718, %v1741, 0
    %v2116 = vsel %vm718, %v1745, 0
    %v2119 = vsel %vm718, %v1749, 0
    %v2122 = vsel %vm718, %v1753, 0
    %v2125 = vsel %vm718, %v1757, 0
    %v2128 = vsel %vm718, %v1761, 0
    %v2131 = vsel %vm718, %v1765, 0
    %v2134 = vsel %vm718, %v1769, 0
    %v2137 = vsel %vm718, %v1773, 0
    %v2140 = vsel %vm718, %v1777, 0
    %v2143 = vsel %vm718, %v1781, 0
    %v2146 = vsel %vm718, %v1785, 0
    %v2149 = vsel %vm718, %v1789, 0
    %v2152 = vsel %vm718, %v1793, 0
    %v2155 = vsel %vm718, %v1797, 0
    %v2158 = vsel %vm718, %v1801, 0
    %v2161 = vsel %vm718, %v1805, 0
    %v2164 = vsel %vm718, %v1809, 0
    %v2167 = vsel %vm718, %v1813, 0
    %v2170 = vsel %vm718, %v1817, 0
    %v2173 = vsel %vm718, %v1821, 0
    %v2176 = vsel %vm718, %v1825, 0
    %v2179 = vsel %vm718, %v1829, 0
    %v2182 = vsel %vm718, %v1833, 0
    %v2185 = vsel %vm718, %v1837, 0
    %v2188 = vsel %vm718, %v1841, 0
    %v2191 = vsel %vm718, %v1845, 0
    %v2194 = vsel %vm718, %v1849, 0
    %v2197 = vsel %vm718, %v1853, 0
    %v2200 = vsel %vm718, %v1857, 0
    %v2203 = vsel %vm718, %v1861, 0
    %v2206 = vsel %vm718, %v1865, 0
    %v2209 = vsel %vm718, %v1869, 0
    %v2212 = vsel %vm718, %v1873, 0
    %v2215 = vsel %vm718, %v1877, 0
    %v2218 = vsel %vm718, %v1881, 0
    %v2221 = vsel %vm718, %v1885, 0
    %v2224 = vsel %vm718, %v1889, 0
    %v2227 = vsel %vm718, %v1893, 0
    %v2230 = vsel %vm718, %v1897, 0
    %v2233 = vsel %vm718, %v1901, 0
    %v2236 = vsel %vm718, %v1905, 0
    %v2239 = vsel %vm718, %v1909, 0
    %v2242 = vsel %vm718, %v1913, 0
    %v2245 = vsel %vm718, %v1917, 0
    %v2248 = vsel %vm718, %v1921, 0
    %v2251 = vsel %vm718, %v1925, 0
    %v2254 = vsel %vm718, %v1929, 0
    %v2257 = vsel %vm718, %v1933, 0
    %v2260 = vsel %vm718, %v1937, 0
    %v2263 = vsel %vm718, %v1941, 0
    %v2266 = vsel %vm718, %v1945, 0
    %v2269 = vsel %vm718, %v1949, 0
    %v2272 = vsel %vm718, %v1953, 0
    %v2275 = vsel %vm718, %v1957, 0
    %v2278 = vsel %vm718, %v1961, 0
    %v2281 = vsel %vm718, %v1965, 0
    %v2284 = vsel %vm718, %v1969, 0
    %v2287 = vsel %vm718, %v1973, 0
    %v2290 = vsel %vm718, %v1977, 0
    %v2293 = vsel %vm718, %v1981, 0
    %v2296 = vsel %vm718, %v1985, 0
    %2298 = vmatprep.subr.mxu0 0.0
    %2299 = vmatpush1.msra.mxu0 %v1510
    %2300 = vmatprep.subr.mxu0 0.0
    %2301 = vmatpush1.msra.mxu0 %v1511
    %2302 = vmatprep.subr.mxu0 0.0
    %2303 = vmatpush1.msra.mxu0 %v1512
    %2304 = vmatprep.subr.mxu0 0.0
    %2305 = vmatpush1.msra.mxu0 %v1513
    %2306 = vmatprep.subr.mxu0 0.0
    %2307 = vmatpush1.msra.mxu0 %v1514
    %2308 = vmatprep.subr.mxu0 0.0
    %2309 = vmatpush1.msra.mxu0 %v1515
    %2310 = vmatprep.subr.mxu0 0.0
    %2311 = vmatpush1.msra.mxu0 %v1516
    %2312 = vmatprep.subr.mxu0 0.0
    %2313 = vmatpush1.msra.mxu0 %v1517
    %2314 = vmatprep.subr.mxu0 0.0
    %2315 = vmatpush1.msra.mxu0 %v1518
    %2316 = vmatprep.subr.mxu0 0.0
    %2317 = vmatpush1.msra.mxu0 %v1519
    %2318 = vmatprep.subr.mxu0 0.0
    %2319 = vmatpush1.msra.mxu0 %v1520
    %2320 = vmatprep.subr.mxu0 0.0
    %2321 = vmatpush1.msra.mxu0 %v1521
    %2322 = vmatprep.subr.mxu0 0.0
    %2323 = vmatpush1.msra.mxu0 %v1522
    %2324 = vmatprep.subr.mxu0 0.0
    %2325 = vmatpush1.msra.mxu0 %v1523
    %2326 = vmatprep.subr.mxu0 0.0
    %2327 = vmatpush1.msra.mxu0 %v1524
    %2328 = vmatprep.subr.mxu0 0.0
    %2329 = vmatpush1.msra.mxu0 %v1525
    %2330 = vmatprep.subr.mxu0 0.0
    %2331 = vmatpush1.msra.mxu0 %v1526
    %2332 = vmatprep.subr.mxu0 0.0
    %2333 = vmatpush1.msra.mxu0 %v1527
    %2334 = vmatprep.subr.mxu0 0.0
    %2335 = vmatpush1.msra.mxu0 %v1528
    %2336 = vmatprep.subr.mxu0 0.0
    %2337 = vmatpush1.msra.mxu0 %v1529
    %2338 = vmatprep.subr.mxu0 0.0
    %2339 = vmatpush1.msra.mxu0 %v1530
    %2340 = vmatprep.subr.mxu0 0.0
    %2341 = vmatpush1.msra.mxu0 %v1531
    %2342 = vmatprep.subr.mxu0 0.0
    %2343 = vmatpush1.msra.mxu0 %v1532
    %2344 = vmatprep.subr.mxu0 0.0
    %2345 = vmatpush1.msra.mxu0 %v1533
    %2346 = vmatprep.subr.mxu0 0.0
    %2347 = vmatpush1.msra.mxu0 %v1534
    %2348 = vmatprep.subr.mxu0 0.0
    %2349 = vmatpush1.msra.mxu0 %v1535
    %2350 = vmatprep.subr.mxu0 0.0
    %2351 = vmatpush1.msra.mxu0 %v1536
    %2352 = vmatprep.subr.mxu0 0.0
    %2353 = vmatpush1.msra.mxu0 %v1537
    %2354 = vmatprep.subr.mxu0 0.0
    %2355 = vmatpush1.msra.mxu0 %v1538
    %2356 = vmatprep.subr.mxu0 0.0
    %2357 = vmatpush1.msra.mxu0 %v1539
    %2358 = vmatprep.subr.mxu0 0.0
    %2359 = vmatpush1.msra.mxu0 %v1540
    %2360 = vmatprep.subr.mxu0 0.0
    %2361 = vmatpush1.msra.mxu0 %v1541
    %2362 = vmatprep.mubr.f32.mxu0 %v1571
    %2363 = vmatmul.mubr.f32.gmra.mrb[0].mxu0 %v1570
    %v2364 = vpop.f32.mrb[0].mxu0
    %v2365 = vadd.f32 0.0, %v2364
    %v2366 = vpop.f32.mrb[0].mxu0
    %2367 = vmatprep.mubr.f32.mxu0 %v1575
    %2368 = vmatmul.mubr.f32.gmra.mrb[0].mxu0 %v1574
    %v2369 = vpop.f32.mrb[0].mxu0
    %v2370 = vadd.f32 0.0, %v2369
    %v2371 = vpop.f32.mrb[0].mxu0
    %2372 = vmatprep.mubr.f32.mxu0 %v1579
    %2373 = vmatmul.mubr.f32.gmra.mrb[0].mxu0 %v1578
    %v2374 = vpop.f32.mrb[0].mxu0
    %v2375 = vadd.f32 0.0, %v2374
    %v2376 = vpop.f32.mrb[0].mxu0
    %2377 = vmatprep.mubr.f32.mxu0 %v1583
    %2378 = vmatmul.mubr.f32.gmra.mrb[0].mxu0 %v1582
    %v2379 = vpop.f32.mrb[0].mxu0
    %v2380 = vadd.f32 0.0, %v2379
    %v2381 = vpop.f32.mrb[0].mxu0
    %2382 = vmatprep.mubr.f32.mxu0 %v1587
    %2383 = vmatmul.mubr.f32.gmra.mrb[0].mxu0 %v1586
    %v2384 = vpop.f32.mrb[0].mxu0
    %v2385 = vadd.f32 0.0, %v2384
    %v2386 = vpop.f32.mrb[0].mxu0
    %2387 = vmatprep.mubr.f32.mxu0 %v1591
    %2388 = vmatmul.mubr.f32.gmra.mrb[0].mxu0 %v1590
    %v2389 = vpop.f32.mrb[0].mxu0
    %v2390 = vadd.f32 0.0, %v2389
    %v2391 = vpop.f32.mrb[0].mxu0
    %2392 = vmatprep.mubr.f32.mxu0 %v1595
    %2393 = vmatmul.mubr.f32.gmra.mrb[0].mxu0 %v1594
    %v2394 = vpop.f32.mrb[0].mxu0
    %v2395 = vadd.f32 0.0, %v2394
    %v2396 = vpop.f32.mrb[0].mxu0
    %2397 = vmatprep.mubr.f32.mxu0 %v1599
    %2398 = vmatmul.mubr.f32.gmra.mrb[0].mxu0 %v1598
    %v2399 = vpop.f32.mrb[0].mxu0
    %v2400 = vadd.f32 0.0, %v2399
    %v2401 = vpop.f32.mrb[0].mxu0
    %2402 = vmatprep.mubr.f32.mxu0 %v1603
    %2403 = vmatmul.mubr.f32.gmra.mrb[0].mxu0 %v1602
    %v2404 = vpop.f32.mrb[0].mxu0
    %v2405 = vadd.f32 0.0, %v2404
    %v2406 = vpop.f32.mrb[0].mxu0
    %2407 = vmatprep.mubr.f32.mxu0 %v1607
    %2408 = vmatmul.mubr.f32.gmra.mrb[0].mxu0 %v1606
    %v2409 = vpop.f32.mrb[0].mxu0
    %v2410 = vadd.f32 0.0, %v2409
    %v2411 = vpop.f32.mrb[0].mxu0
    %2412 = vmatprep.mubr.f32.mxu0 %v1611
    %2413 = vmatmul.mubr.f32.gmra.mrb[0].mxu0 %v1610
    %v2414 = vpop.f32.mrb[0].mxu0
    %v2415 = vadd.f32 0.0, %v2414
    %v2416 = vpop.f32.mrb[0].mxu0
    %2417 = vmatprep.mubr.f32.mxu0 %v1615
    %2418 = vmatmul.mubr.f32.gmra.mrb[0].mxu0 %v1614
    %v2419 = vpop.f32.mrb[0].mxu0
    %v2420 = vadd.f32 0.0, %v2419
    %v2421 = vpop.f32.mrb[0].mxu0
    %2422 = vmatprep.mubr.f32.mxu0 %v1619
    %2423 = vmatmul.mubr.f32.gmra.mrb[0].mxu0 %v1618
    %v2424 = vpop.f32.mrb[0].mxu0
    %v2425 = vadd.f32 0.0, %v2424
    %v2426 = vpop.f32.mrb[0].mxu0
    %2427 = vmatprep.mubr.f32.mxu0 %v1623
    %2428 = vmatmul.mubr.f32.gmra.mrb[0].mxu0 %v1622
    %v2429 = vpop.f32.mrb[0].mxu0
    %v2430 = vadd.f32 0.0, %v2429
    %v2431 = vpop.f32.mrb[0].mxu0
    %2432 = vmatprep.mubr.f32.mxu0 %v1627
    %2433 = vmatmul.mubr.f32.gmra.mrb[0].mxu0 %v1626
    %v2434 = vpop.f32.mrb[0].mxu0
    %v2435 = vadd.f32 0.0, %v2434
    %v2436 = vpop.f32.mrb[0].mxu0
    %2437 = vmatprep.mubr.f32.mxu0 %v1631
    %2438 = vmatmul.mubr.f32.gmra.mrb[0].mxu0 %v1630
    %v2439 = vpop.f32.mrb[0].mxu0
    %v2440 = vadd.f32 0.0, %v2439
    %v2441 = vpop.f32.mrb[0].mxu0
    %2442 = vmatprep.mubr.f32.mxu0 %v1635
    %2443 = vmatmul.mubr.f32.gmra.mrb[0].mxu0 %v1634
    %v2444 = vpop.f32.mrb[0].mxu0
    %v2445 = vadd.f32 0.0, %v2444
    %v2446 = vpop.f32.mrb[0].mxu0
    %2447 = vmatprep.mubr.f32.mxu0 %v1639
    %2448 = vmatmul.mubr.f32.gmra.mrb[0].mxu0 %v1638
    %v2449 = vpop.f32.mrb[0].mxu0
    %v2450 = vadd.f32 0.0, %v2449
    %v2451 = vpop.f32.mrb[0].mxu0
    %2452 = vmatprep.mubr.f32.mxu0 %v1643
    %2453 = vmatmul.mubr.f32.gmra.mrb[0].mxu0 %v1642
    %v2454 = vpop.f32.mrb[0].mxu0
    %v2455 = vadd.f32 0.0, %v2454
    %v2456 = vpop.f32.mrb[0].mxu0
    %2457 = vmatprep.mubr.f32.mxu0 %v1647
    %2458 = vmatmul.mubr.f32.gmra.mrb[0].mxu0 %v1646
    %v2459 = vpop.f32.mrb[0].mxu0
    %v2460 = vadd.f32 0.0, %v2459
    %v2461 = vpop.f32.mrb[0].mxu0
    %2462 = vmatprep.mubr.f32.mxu0 %v1651
    %2463 = vmatmul.mubr.f32.gmra.mrb[0].mxu0 %v1650
    %v2464 = vpop.f32.mrb[0].mxu0
    %v2465 = vadd.f32 0.0, %v2464
    %v2466 = vpop.f32.mrb[0].mxu0
    %2467 = vmatprep.mubr.f32.mxu0 %v1655
    %2468 = vmatmul.mubr.f32.gmra.mrb[0].mxu0 %v1654
    %v2469 = vpop.f32.mrb[0].mxu0
    %v2470 = vadd.f32 0.0, %v2469
    %v2471 = vpop.f32.mrb[0].mxu0
    %2472 = vmatprep.mubr.f32.mxu0 %v1659
    %2473 = vmatmul.mubr.f32.gmra.mrb[0].mxu0 %v1658
    %v2474 = vpop.f32.mrb[0].mxu0
    %v2475 = vadd.f32 0.0, %v2474
    %v2476 = vpop.f32.mrb[0].mxu0
    %2477 = vmatprep.mubr.f32.mxu0 %v1663
    %2478 = vmatmul.mubr.f32.gmra.mrb[0].mxu0 %v1662
    %v2479 = vpop.f32.mrb[0].mxu0
    %v2480 = vadd.f32 0.0, %v2479
    %v2481 = vpop.f32.mrb[0].mxu0
    %2482 = vmatprep.mubr.f32.mxu0 %v1667
    %2483 = vmatmul.mubr.f32.gmra.mrb[0].mxu0 %v1666
    %v2484 = vpop.f32.mrb[0].mxu0
    %v2485 = vadd.f32 0.0, %v2484
    %v2486 = vpop.f32.mrb[0].mxu0
    %2487 = vmatprep.mubr.f32.mxu0 %v1671
    %2488 = vmatmul.mubr.f32.gmra.mrb[0].mxu0 %v1670
    %v2489 = vpop.f32.mrb[0].mxu0
    %v2490 = vadd.f32 0.0, %v2489
    %v2491 = vpop.f32.mrb[0].mxu0
    %2492 = vmatprep.mubr.f32.mxu0 %v1675
    %2493 = vmatmul.mubr.f32.gmra.mrb[0].mxu0 %v1674
    %v2494 = vpop.f32.mrb[0].mxu0
    %v2495 = vadd.f32 0.0, %v2494
    %v2496 = vpop.f32.mrb[0].mxu0
    %2497 = vmatprep.mubr.f32.mxu0 %v1679
    %2498 = vmatmul.mubr.f32.gmra.mrb[0].mxu0 %v1678
    %v2499 = vpop.f32.mrb[0].mxu0
    %v2500 = vadd.f32 0.0, %v2499
    %v2501 = vpop.f32.mrb[0].mxu0
    %2502 = vmatprep.mubr.f32.mxu0 %v1683
    %2503 = vmatmul.mubr.f32.gmra.mrb[0].mxu0 %v1682
    %v2504 = vpop.f32.mrb[0].mxu0
    %v2505 = vadd.f32 0.0, %v2504
    %v2506 = vpop.f32.mrb[0].mxu0
    %2507 = vmatprep.mubr.f32.mxu0 %v1687
    %2508 = vmatmul.mubr.f32.gmra.mrb[0].mxu0 %v1686
    %v2509 = vpop.f32.mrb[0].mxu0
    %v2510 = vadd.f32 0.0, %v2509
    %v2511 = vpop.f32.mrb[0].mxu0
    %2512 = vmatprep.mubr.f32.mxu0 %v1691
    %2513 = vmatmul.mubr.f32.gmra.mrb[0].mxu0 %v1690
    %v2514 = vpop.f32.mrb[0].mxu0
    %v2515 = vadd.f32 0.0, %v2514
    %v2516 = vpop.f32.mrb[0].mxu0
    %2517 = vmatprep.mubr.f32.mxu0 %v1695
    %2518 = vmatmul.mubr.f32.gmra.mrb[0].mxu0 %v1694
    %v2519 = vpop.f32.mrb[0].mxu0
    %v2520 = vadd.f32 0.0, %v2519
    %v2521 = vpop.f32.mrb[0].mxu0
    %2522 = vmatprep.mubr.f32.mxu0 %v1699
    %2523 = vmatmul.mubr.f32.gmra.mrb[0].mxu0 %v1698
    %v2524 = vpop.f32.mrb[0].mxu0
    %v2525 = vadd.f32 0.0, %v2524
    %v2526 = vpop.f32.mrb[0].mxu0
    %2527 = vmatprep.mubr.f32.mxu0 %v1703
    %2528 = vmatmul.mubr.f32.gmra.mrb[0].mxu0 %v1702
    %v2529 = vpop.f32.mrb[0].mxu0
    %v2530 = vadd.f32 0.0, %v2529
    %v2531 = vpop.f32.mrb[0].mxu0
    %2532 = vmatprep.mubr.f32.mxu0 %v1707
    %2533 = vmatmul.mubr.f32.gmra.mrb[0].mxu0 %v1706
    %v2534 = vpop.f32.mrb[0].mxu0
    %v2535 = vadd.f32 0.0, %v2534
    %v2536 = vpop.f32.mrb[0].mxu0
    %2537 = vmatprep.mubr.f32.mxu0 %v1711
    %2538 = vmatmul.mubr.f32.gmra.mrb[0].mxu0 %v1710
    %v2539 = vpop.f32.mrb[0].mxu0
    %v2540 = vadd.f32 0.0, %v2539
    %v2541 = vpop.f32.mrb[0].mxu0
    %2542 = vmatprep.mubr.f32.mxu0 %v1715
    %2543 = vmatmul.mubr.f32.gmra.mrb[0].mxu0 %v1714
    %v2544 = vpop.f32.mrb[0].mxu0
    %v2545 = vadd.f32 0.0, %v2544
    %v2546 = vpop.f32.mrb[0].mxu0
    %2547 = vmatprep.mubr.f32.mxu0 %v1719
    %2548 = vmatmul.mubr.f32.gmra.mrb[0].mxu0 %v1718
    %v2549 = vpop.f32.mrb[0].mxu0
    %v2550 = vadd.f32 0.0, %v2549
    %v2551 = vpop.f32.mrb[0].mxu0
    %2552 = vmatprep.mubr.f32.mxu0 %v1723
    %2553 = vmatmul.mubr.f32.gmra.mrb[0].mxu0 %v1722
    %v2554 = vpop.f32.mrb[0].mxu0
    %v2555 = vadd.f32 0.0, %v2554
    %v2556 = vpop.f32.mrb[0].mxu0
    %2557 = vmatprep.mubr.f32.mxu0 %v1727
    %2558 = vmatmul.mubr.f32.gmra.mrb[0].mxu0 %v1726
    %v2559 = vpop.f32.mrb[0].mxu0
    %v2560 = vadd.f32 0.0, %v2559
    %v2561 = vpop.f32.mrb[0].mxu0
    %2562 = vmatprep.mubr.f32.mxu0 %v1731
    %2563 = vmatmul.mubr.f32.gmra.mrb[0].mxu0 %v1730
    %v2564 = vpop.f32.mrb[0].mxu0
    %v2565 = vadd.f32 0.0, %v2564
    %v2566 = vpop.f32.mrb[0].mxu0
    %2567 = vmatprep.mubr.f32.mxu0 %v1735
    %2568 = vmatmul.mubr.f32.gmra.mrb[0].mxu0 %v1734
    %v2569 = vpop.f32.mrb[0].mxu0
    %v2570 = vadd.f32 0.0, %v2569
    %v2571 = vpop.f32.mrb[0].mxu0
    %2572 = vmatprep.mubr.f32.mxu0 %v1739
    %2573 = vmatmul.mubr.f32.gmra.mrb[0].mxu0 %v1738
    %v2574 = vpop.f32.mrb[0].mxu0
    %v2575 = vadd.f32 0.0, %v2574
    %v2576 = vpop.f32.mrb[0].mxu0
    %2577 = vmatprep.mubr.f32.mxu0 %v1743
    %2578 = vmatmul.mubr.f32.gmra.mrb[0].mxu0 %v1742
    %v2579 = vpop.f32.mrb[0].mxu0
    %v2580 = vadd.f32 0.0, %v2579
    %v2581 = vpop.f32.mrb[0].mxu0
    %2582 = vmatprep.mubr.f32.mxu0 %v1747
    %2583 = vmatmul.mubr.f32.gmra.mrb[0].mxu0 %v1746
    %v2584 = vpop.f32.mrb[0].mxu0
    %v2585 = vadd.f32 0.0, %v2584
    %v2586 = vpop.f32.mrb[0].mxu0
    %2587 = vmatprep.mubr.f32.mxu0 %v1751
    %2588 = vmatmul.mubr.f32.gmra.mrb[0].mxu0 %v1750
    %v2589 = vpop.f32.mrb[0].mxu0
    %v2590 = vadd.f32 0.0, %v2589
    %v2591 = vpop.f32.mrb[0].mxu0
    %2592 = vmatprep.mubr.f32.mxu0 %v1755
    %2593 = vmatmul.mubr.f32.gmra.mrb[0].mxu0 %v1754
    %v2594 = vpop.f32.mrb[0].mxu0
    %v2595 = vadd.f32 0.0, %v2594
    %v2596 = vpop.f32.mrb[0].mxu0
    %2597 = vmatprep.mubr.f32.mxu0 %v1759
    %2598 = vmatmul.mubr.f32.gmra.mrb[0].mxu0 %v1758
    %v2599 = vpop.f32.mrb[0].mxu0
    %v2600 = vadd.f32 0.0, %v2599
    %v2601 = vpop.f32.mrb[0].mxu0
    %2602 = vmatprep.mubr.f32.mxu0 %v1763
    %2603 = vmatmul.mubr.f32.gmra.mrb[0].mxu0 %v1762
    %v2604 = vpop.f32.mrb[0].mxu0
    %v2605 = vadd.f32 0.0, %v2604
    %v2606 = vpop.f32.mrb[0].mxu0
    %2607 = vmatprep.mubr.f32.mxu0 %v1767
    %2608 = vmatmul.mubr.f32.gmra.mrb[0].mxu0 %v1766
    %v2609 = vpop.f32.mrb[0].mxu0
    %v2610 = vadd.f32 0.0, %v2609
    %v2611 = vpop.f32.mrb[0].mxu0
    %2612 = vmatprep.mubr.f32.mxu0 %v1771
    %2613 = vmatmul.mubr.f32.gmra.mrb[0].mxu0 %v1770
    %v2614 = vpop.f32.mrb[0].mxu0
    %v2615 = vadd.f32 0.0, %v2614
    %v2616 = vpop.f32.mrb[0].mxu0
    %2617 = vmatprep.mubr.f32.mxu0 %v1775
    %2618 = vmatmul.mubr.f32.gmra.mrb[0].mxu0 %v1774
    %v2619 = vpop.f32.mrb[0].mxu0
    %v2620 = vadd.f32 0.0, %v2619
    %v2621 = vpop.f32.mrb[0].mxu0
    %2622 = vmatprep.mubr.f32.mxu0 %v1779
    %2623 = vmatmul.mubr.f32.gmra.mrb[0].mxu0 %v1778
    %v2624 = vpop.f32.mrb[0].mxu0
    %v2625 = vadd.f32 0.0, %v2624
    %v2626 = vpop.f32.mrb[0].mxu0
    %2627 = vmatprep.mubr.f32.mxu0 %v1783
    %2628 = vmatmul.mubr.f32.gmra.mrb[0].mxu0 %v1782
    %v2629 = vpop.f32.mrb[0].mxu0
    %v2630 = vadd.f32 0.0, %v2629
    %v2631 = vpop.f32.mrb[0].mxu0
    %2632 = vmatprep.mubr.f32.mxu0 %v1787
    %2633 = vmatmul.mubr.f32.gmra.mrb[0].mxu0 %v1786
    %v2634 = vpop.f32.mrb[0].mxu0
    %v2635 = vadd.f32 0.0, %v2634
    %v2636 = vpop.f32.mrb[0].mxu0
    %2637 = vmatprep.mubr.f32.mxu0 %v1791
    %2638 = vmatmul.mubr.f32.gmra.mrb[0].mxu0 %v1790
    %v2639 = vpop.f32.mrb[0].mxu0
    %v2640 = vadd.f32 0.0, %v2639
    %v2641 = vpop.f32.mrb[0].mxu0
    %2642 = vmatprep.mubr.f32.mxu0 %v1795
    %2643 = vmatmul.mubr.f32.gmra.mrb[0].mxu0 %v1794
    %v2644 = vpop.f32.mrb[0].mxu0
    %v2645 = vadd.f32 0.0, %v2644
    %v2646 = vpop.f32.mrb[0].mxu0
    %2647 = vmatprep.mubr.f32.mxu0 %v1799
    %2648 = vmatmul.mubr.f32.gmra.mrb[0].mxu0 %v1798
    %v2649 = vpop.f32.mrb[0].mxu0
    %v2650 = vadd.f32 0.0, %v2649
    %v2651 = vpop.f32.mrb[0].mxu0
    %2652 = vmatprep.mubr.f32.mxu0 %v1803
    %2653 = vmatmul.mubr.f32.gmra.mrb[0].mxu0 %v1802
    %v2654 = vpop.f32.mrb[0].mxu0
    %v2655 = vadd.f32 0.0, %v2654
    %v2656 = vpop.f32.mrb[0].mxu0
    %2657 = vmatprep.mubr.f32.mxu0 %v1807
    %2658 = vmatmul.mubr.f32.gmra.mrb[0].mxu0 %v1806
    %v2659 = vpop.f32.mrb[0].mxu0
    %v2660 = vadd.f32 0.0, %v2659
    %v2661 = vpop.f32.mrb[0].mxu0
    %2662 = vmatprep.mubr.f32.mxu0 %v1811
    %2663 = vmatmul.mubr.f32.gmra.mrb[0].mxu0 %v1810
    %v2664 = vpop.f32.mrb[0].mxu0
    %v2665 = vadd.f32 0.0, %v2664
    %v2666 = vpop.f32.mrb[0].mxu0
    %2667 = vmatprep.mubr.f32.mxu0 %v1815
    %2668 = vmatmul.mubr.f32.gmra.mrb[0].mxu0 %v1814
    %v2669 = vpop.f32.mrb[0].mxu0
    %v2670 = vadd.f32 0.0, %v2669
    %v2671 = vpop.f32.mrb[0].mxu0
    %2672 = vmatprep.mubr.f32.mxu0 %v1819
    %2673 = vmatmul.mubr.f32.gmra.mrb[0].mxu0 %v1818
    %v2674 = vpop.f32.mrb[0].mxu0
    %v2675 = vadd.f32 0.0, %v2674
    %v2676 = vpop.f32.mrb[0].mxu0
    %2677 = vmatprep.mubr.f32.mxu0 %v1823
    %2678 = vmatmul.mubr.f32.gmra.mrb[0].mxu0 %v1822
    %v2679 = vpop.f32.mrb[0].mxu0
    %v2680 = vadd.f32 0.0, %v2679
    %v2681 = vpop.f32.mrb[0].mxu0
    %2682 = vmatprep.mubr.f32.mxu0 %v1827
    %2683 = vmatmul.mubr.f32.gmra.mrb[0].mxu0 %v1826
    %v2684 = vpop.f32.mrb[0].mxu0
    %v2685 = vadd.f32 0.0, %v2684
    %v2686 = vpop.f32.mrb[0].mxu0
    %2687 = vmatprep.mubr.f32.mxu0 %v1831
    %2688 = vmatmul.mubr.f32.gmra.mrb[0].mxu0 %v1830
    %v2689 = vpop.f32.mrb[0].mxu0
    %v2690 = vadd.f32 0.0, %v2689
    %v2691 = vpop.f32.mrb[0].mxu0
    %2692 = vmatprep.mubr.f32.mxu0 %v1835
    %2693 = vmatmul.mubr.f32.gmra.mrb[0].mxu0 %v1834
    %v2694 = vpop.f32.mrb[0].mxu0
    %v2695 = vadd.f32 0.0, %v2694
    %v2696 = vpop.f32.mrb[0].mxu0
    %2697 = vmatprep.mubr.f32.mxu0 %v1839
    %2698 = vmatmul.mubr.f32.gmra.mrb[0].mxu0 %v1838
    %v2699 = vpop.f32.mrb[0].mxu0
    %v2700 = vadd.f32 0.0, %v2699
    %v2701 = vpop.f32.mrb[0].mxu0
    %2702 = vmatprep.mubr.f32.mxu0 %v1843
    %2703 = vmatmul.mubr.f32.gmra.mrb[0].mxu0 %v1842
    %v2704 = vpop.f32.mrb[0].mxu0
    %v2705 = vadd.f32 0.0, %v2704
    %v2706 = vpop.f32.mrb[0].mxu0
    %2707 = vmatprep.mubr.f32.mxu0 %v1847
    %2708 = vmatmul.mubr.f32.gmra.mrb[0].mxu0 %v1846
    %v2709 = vpop.f32.mrb[0].mxu0
    %v2710 = vadd.f32 0.0, %v2709
    %v2711 = vpop.f32.mrb[0].mxu0
    %2712 = vmatprep.mubr.f32.mxu0 %v1851
    %2713 = vmatmul.mubr.f32.gmra.mrb[0].mxu0 %v1850
    %v2714 = vpop.f32.mrb[0].mxu0
    %v2715 = vadd.f32 0.0, %v2714
    %v2716 = vpop.f32.mrb[0].mxu0
    %2717 = vmatprep.mubr.f32.mxu0 %v1855
    %2718 = vmatmul.mubr.f32.gmra.mrb[0].mxu0 %v1854
    %v2719 = vpop.f32.mrb[0].mxu0
    %v2720 = vadd.f32 0.0, %v2719
    %v2721 = vpop.f32.mrb[0].mxu0
    %2722 = vmatprep.mubr.f32.mxu0 %v1859
    %2723 = vmatmul.mubr.f32.gmra.mrb[0].mxu0 %v1858
    %v2724 = vpop.f32.mrb[0].mxu0
    %v2725 = vadd.f32 0.0, %v2724
    %v2726 = vpop.f32.mrb[0].mxu0
    %2727 = vmatprep.mubr.f32.mxu0 %v1863
    %2728 = vmatmul.mubr.f32.gmra.mrb[0].mxu0 %v1862
    %v2729 = vpop.f32.mrb[0].mxu0
    %v2730 = vadd.f32 0.0, %v2729
    %v2731 = vpop.f32.mrb[0].mxu0
    %2732 = vmatprep.mubr.f32.mxu0 %v1867
    %2733 = vmatmul.mubr.f32.gmra.mrb[0].mxu0 %v1866
    %v2734 = vpop.f32.mrb[0].mxu0
    %v2735 = vadd.f32 0.0, %v2734
    %v2736 = vpop.f32.mrb[0].mxu0
    %2737 = vmatprep.mubr.f32.mxu0 %v1871
    %2738 = vmatmul.mubr.f32.gmra.mrb[0].mxu0 %v1870
    %v2739 = vpop.f32.mrb[0].mxu0
    %v2740 = vadd.f32 0.0, %v2739
    %v2741 = vpop.f32.mrb[0].mxu0
    %2742 = vmatprep.mubr.f32.mxu0 %v1875
    %2743 = vmatmul.mubr.f32.gmra.mrb[0].mxu0 %v1874
    %v2744 = vpop.f32.mrb[0].mxu0
    %v2745 = vadd.f32 0.0, %v2744
    %v2746 = vpop.f32.mrb[0].mxu0
    %2747 = vmatprep.mubr.f32.mxu0 %v1879
    %2748 = vmatmul.mubr.f32.gmra.mrb[0].mxu0 %v1878
    %v2749 = vpop.f32.mrb[0].mxu0
    %v2750 = vadd.f32 0.0, %v2749
    %v2751 = vpop.f32.mrb[0].mxu0
    %2752 = vmatprep.mubr.f32.mxu0 %v1883
    %2753 = vmatmul.mubr.f32.gmra.mrb[0].mxu0 %v1882
    %v2754 = vpop.f32.mrb[0].mxu0
    %v2755 = vadd.f32 0.0, %v2754
    %v2756 = vpop.f32.mrb[0].mxu0
    %2757 = vmatprep.mubr.f32.mxu0 %v1887
    %2758 = vmatmul.mubr.f32.gmra.mrb[0].mxu0 %v1886
    %v2759 = vpop.f32.mrb[0].mxu0
    %v2760 = vadd.f32 0.0, %v2759
    %v2761 = vpop.f32.mrb[0].mxu0
    %2762 = vmatprep.mubr.f32.mxu0 %v1891
    %2763 = vmatmul.mubr.f32.gmra.mrb[0].mxu0 %v1890
    %v2764 = vpop.f32.mrb[0].mxu0
    %v2765 = vadd.f32 0.0, %v2764
    %v2766 = vpop.f32.mrb[0].mxu0
    %2767 = vmatprep.mubr.f32.mxu0 %v1895
    %2768 = vmatmul.mubr.f32.gmra.mrb[0].mxu0 %v1894
    %v2769 = vpop.f32.mrb[0].mxu0
    %v2770 = vadd.f32 0.0, %v2769
    %v2771 = vpop.f32.mrb[0].mxu0
    %2772 = vmatprep.mubr.f32.mxu0 %v1899
    %2773 = vmatmul.mubr.f32.gmra.mrb[0].mxu0 %v1898
    %v2774 = vpop.f32.mrb[0].mxu0
    %v2775 = vadd.f32 0.0, %v2774
    %v2776 = vpop.f32.mrb[0].mxu0
    %2777 = vmatprep.mubr.f32.mxu0 %v1903
    %2778 = vmatmul.mubr.f32.gmra.mrb[0].mxu0 %v1902
    %v2779 = vpop.f32.mrb[0].mxu0
    %v2780 = vadd.f32 0.0, %v2779
    %v2781 = vpop.f32.mrb[0].mxu0
    %2782 = vmatprep.mubr.f32.mxu0 %v1907
    %2783 = vmatmul.mubr.f32.gmra.mrb[0].mxu0 %v1906
    %v2784 = vpop.f32.mrb[0].mxu0
    %v2785 = vadd.f32 0.0, %v2784
    %v2786 = vpop.f32.mrb[0].mxu0
    %2787 = vmatprep.mubr.f32.mxu0 %v1911
    %2788 = vmatmul.mubr.f32.gmra.mrb[0].mxu0 %v1910
    %v2789 = vpop.f32.mrb[0].mxu0
    %v2790 = vadd.f32 0.0, %v2789
    %v2791 = vpop.f32.mrb[0].mxu0
    %2792 = vmatprep.mubr.f32.mxu0 %v1915
    %2793 = vmatmul.mubr.f32.gmra.mrb[0].mxu0 %v1914
    %v2794 = vpop.f32.mrb[0].mxu0
    %v2795 = vadd.f32 0.0, %v2794
    %v2796 = vpop.f32.mrb[0].mxu0
    %2797 = vmatprep.mubr.f32.mxu0 %v1919
    %2798 = vmatmul.mubr.f32.gmra.mrb[0].mxu0 %v1918
    %v2799 = vpop.f32.mrb[0].mxu0
    %v2800 = vadd.f32 0.0, %v2799
    %v2801 = vpop.f32.mrb[0].mxu0
    %2802 = vmatprep.mubr.f32.mxu0 %v1923
    %2803 = vmatmul.mubr.f32.gmra.mrb[0].mxu0 %v1922
    %v2804 = vpop.f32.mrb[0].mxu0
    %v2805 = vadd.f32 0.0, %v2804
    %v2806 = vpop.f32.mrb[0].mxu0
    %2807 = vmatprep.mubr.f32.mxu0 %v1927
    %2808 = vmatmul.mubr.f32.gmra.mrb[0].mxu0 %v1926
    %v2809 = vpop.f32.mrb[0].mxu0
    %v2810 = vadd.f32 0.0, %v2809
    %v2811 = vpop.f32.mrb[0].mxu0
    %2812 = vmatprep.mubr.f32.mxu0 %v1931
    %2813 = vmatmul.mubr.f32.gmra.mrb[0].mxu0 %v1930
    %v2814 = vpop.f32.mrb[0].mxu0
    %v2815 = vadd.f32 0.0, %v2814
    %v2816 = vpop.f32.mrb[0].mxu0
    %2817 = vmatprep.mubr.f32.mxu0 %v1935
    %2818 = vmatmul.mubr.f32.gmra.mrb[0].mxu0 %v1934
    %v2819 = vpop.f32.mrb[0].mxu0
    %v2820 = vadd.f32 0.0, %v2819
    %v2821 = vpop.f32.mrb[0].mxu0
    %2822 = vmatprep.mubr.f32.mxu0 %v1939
    %2823 = vmatmul.mubr.f32.gmra.mrb[0].mxu0 %v1938
    %v2824 = vpop.f32.mrb[0].mxu0
    %v2825 = vadd.f32 0.0, %v2824
    %v2826 = vpop.f32.mrb[0].mxu0
    %2827 = vmatprep.mubr.f32.mxu0 %v1943
    %2828 = vmatmul.mubr.f32.gmra.mrb[0].mxu0 %v1942
    %v2829 = vpop.f32.mrb[0].mxu0
    %v2830 = vadd.f32 0.0, %v2829
    %v2831 = vpop.f32.mrb[0].mxu0
    %2832 = vmatprep.mubr.f32.mxu0 %v1947
    %2833 = vmatmul.mubr.f32.gmra.mrb[0].mxu0 %v1946
    %v2834 = vpop.f32.mrb[0].mxu0
    %v2835 = vadd.f32 0.0, %v2834
    %v2836 = vpop.f32.mrb[0].mxu0
    %2837 = vmatprep.mubr.f32.mxu0 %v1951
    %2838 = vmatmul.mubr.f32.gmra.mrb[0].mxu0 %v1950
    %v2839 = vpop.f32.mrb[0].mxu0
    %v2840 = vadd.f32 0.0, %v2839
    %v2841 = vpop.f32.mrb[0].mxu0
    %2842 = vmatprep.mubr.f32.mxu0 %v1955
    %2843 = vmatmul.mubr.f32.gmra.mrb[0].mxu0 %v1954
    %v2844 = vpop.f32.mrb[0].mxu0
    %v2845 = vadd.f32 0.0, %v2844
    %v2846 = vpop.f32.mrb[0].mxu0
    %2847 = vmatprep.mubr.f32.mxu0 %v1959
    %2848 = vmatmul.mubr.f32.gmra.mrb[0].mxu0 %v1958
    %v2849 = vpop.f32.mrb[0].mxu0
    %v2850 = vadd.f32 0.0, %v2849
    %v2851 = vpop.f32.mrb[0].mxu0
    %2852 = vmatprep.mubr.f32.mxu0 %v1963
    %2853 = vmatmul.mubr.f32.gmra.mrb[0].mxu0 %v1962
    %v2854 = vpop.f32.mrb[0].mxu0
    %v2855 = vadd.f32 0.0, %v2854
    %v2856 = vpop.f32.mrb[0].mxu0
    %2857 = vmatprep.mubr.f32.mxu0 %v1967
    %2858 = vmatmul.mubr.f32.gmra.mrb[0].mxu0 %v1966
    %v2859 = vpop.f32.mrb[0].mxu0
    %v2860 = vadd.f32 0.0, %v2859
    %v2861 = vpop.f32.mrb[0].mxu0
    %2862 = vmatprep.mubr.f32.mxu0 %v1971
    %2863 = vmatmul.mubr.f32.gmra.mrb[0].mxu0 %v1970
    %v2864 = vpop.f32.mrb[0].mxu0
    %v2865 = vadd.f32 0.0, %v2864
    %v2866 = vpop.f32.mrb[0].mxu0
    %2867 = vmatprep.mubr.f32.mxu0 %v1975
    %2868 = vmatmul.mubr.f32.gmra.mrb[0].mxu0 %v1974
    %v2869 = vpop.f32.mrb[0].mxu0
    %v2870 = vadd.f32 0.0, %v2869
    %v2871 = vpop.f32.mrb[0].mxu0
    %2872 = vmatprep.mubr.f32.mxu0 %v1979
    %2873 = vmatmul.mubr.f32.gmra.mrb[0].mxu0 %v1978
    %v2874 = vpop.f32.mrb[0].mxu0
    %v2875 = vadd.f32 0.0, %v2874
    %v2876 = vpop.f32.mrb[0].mxu0
    %2877 = vmatprep.mubr.f32.mxu0 %v1983
    %2878 = vmatmul.mubr.f32.gmra.mrb[0].mxu0 %v1982
    %v2879 = vpop.f32.mrb[0].mxu0
    %v2880 = vadd.f32 0.0, %v2879
    %v2881 = vpop.f32.mrb[0].mxu0
    %2882 = vdwg.mxu0
    %2883 = vmatprep.subr.mxu0 0.0
    %2884 = vmatpush1.msra.mxu0 %v1542
    %2885 = vmatprep.subr.mxu0 0.0
    %2886 = vmatpush1.msra.mxu0 %v1543
    %2887 = vmatprep.subr.mxu0 0.0
    %2888 = vmatpush1.msra.mxu0 %v1544
    %2889 = vmatprep.subr.mxu0 0.0
    %2890 = vmatpush1.msra.mxu0 %v1545
    %2891 = vmatprep.subr.mxu0 0.0
    %2892 = vmatpush1.msra.mxu0 %v1546
    %2893 = vmatprep.subr.mxu0 0.0
    %2894 = vmatpush1.msra.mxu0 %v1547
    %2895 = vmatprep.subr.mxu0 0.0
    %2896 = vmatpush1.msra.mxu0 %v1548
    %2897 = vmatprep.subr.mxu0 0.0
    %2898 = vmatpush1.msra.mxu0 %v1549
    %2899 = vmatprep.subr.mxu0 0.0
    %2900 = vmatpush1.msra.mxu0 %v1550
    %2901 = vmatprep.subr.mxu0 0.0
    %2902 = vmatpush1.msra.mxu0 %v1551
    %2903 = vmatprep.subr.mxu0 0.0
    %2904 = vmatpush1.msra.mxu0 %v1552
    %2905 = vmatprep.subr.mxu0 0.0
    %2906 = vmatpush1.msra.mxu0 %v1553
    %2907 = vmatprep.subr.mxu0 0.0
    %2908 = vmatpush1.msra.mxu0 %v1554
    %2909 = vmatprep.subr.mxu0 0.0
    %2910 = vmatpush1.msra.mxu0 %v1555
    %2911 = vmatprep.subr.mxu0 0.0
    %2912 = vmatpush1.msra.mxu0 %v1556
    %2913 = vmatprep.subr.mxu0 0.0
    %2914 = vmatpush1.msra.mxu0 %v1557
    %2915 = vmatprep.subr.mxu0 0.0
    %2916 = vmatpush1.msra.mxu0 %v1558
    %2917 = vmatprep.subr.mxu0 0.0
    %2918 = vmatpush1.msra.mxu0 %v1559
    %2919 = vmatprep.subr.mxu0 0.0
    %2920 = vmatpush1.msra.mxu0 %v1560
    %2921 = vmatprep.subr.mxu0 0.0
    %2922 = vmatpush1.msra.mxu0 %v1561
    %2923 = vmatprep.subr.mxu0 0.0
    %2924 = vmatpush1.msra.mxu0 %v1562
    %2925 = vmatprep.subr.mxu0 0.0
    %2926 = vmatpush1.msra.mxu0 %v1563
    %2927 = vmatprep.subr.mxu0 0.0
    %2928 = vmatpush1.msra.mxu0 %v1564
    %2929 = vmatprep.subr.mxu0 0.0
    %2930 = vmatpush1.msra.mxu0 %v1565
    %2931 = vmatprep.subr.mxu0 0.0
    %2932 = vmatpush1.msra.mxu0 %v1566
    %2933 = vmatprep.subr.mxu0 0.0
    %2934 = vmatpush1.msra.mxu0 %v1567
    %2935 = vmatprep.subr.mxu0 0.0
    %2936 = vmatpush1.msra.mxu0 %v1568
    %2937 = vmatprep.subr.mxu0 0.0
    %2938 = vmatpush1.msra.mxu0 %v1569
    %2939 = vmatprep.subr.mxu0 0.0
    %2940 = vmatpush1.msra.mxu0 0.0
    %2941 = vmatprep.subr.mxu0 0.0
    %2942 = vmatpush1.msra.mxu0 0.0
    %2943 = vmatprep.subr.mxu0 0.0
    %2944 = vmatpush1.msra.mxu0 0.0
    %2945 = vmatprep.subr.mxu0 0.0
    %2946 = vmatpush1.msra.mxu0 0.0
    %2947 = vmatprep.mubr.f32.mxu0 %v1987
    %2948 = vmatmul.mubr.f32.gmra.mrb[0].mxu0 %v1572
    %v2949 = vpop.f32.mrb[0].mxu0
    %v2950 = vadd.f32 %v2365, %v2949
    %v2951 = vpop.f32.mrb[0].mxu0
    %2952 = vmatprep.mubr.f32.mxu0 %v1990
    %2953 = vmatmul.mubr.f32.gmra.mrb[0].mxu0 %v1576
    %v2954 = vpop.f32.mrb[0].mxu0
    %v2955 = vadd.f32 %v2370, %v2954
    %v2956 = vpop.f32.mrb[0].mxu0
    %2957 = vmatprep.mubr.f32.mxu0 %v1993
    %2958 = vmatmul.mubr.f32.gmra.mrb[0].mxu0 %v1580
    %v2959 = vpop.f32.mrb[0].mxu0
    %v2960 = vadd.f32 %v2375, %v2959
    %v2961 = vpop.f32.mrb[0].mxu0
    %2962 = vmatprep.mubr.f32.mxu0 %v1996
    %2963 = vmatmul.mubr.f32.gmra.mrb[0].mxu0 %v1584
    %v2964 = vpop.f32.mrb[0].mxu0
    %v2965 = vadd.f32 %v2380, %v2964
    %v2966 = vpop.f32.mrb[0].mxu0
    %2967 = vmatprep.mubr.f32.mxu0 %v1999
    %2968 = vmatmul.mubr.f32.gmra.mrb[0].mxu0 %v1588
    %v2969 = vpop.f32.mrb[0].mxu0
    %v2970 = vadd.f32 %v2385, %v2969
    %v2971 = vpop.f32.mrb[0].mxu0
    %2972 = vmatprep.mubr.f32.mxu0 %v2002
    %2973 = vmatmul.mubr.f32.gmra.mrb[0].mxu0 %v1592
    %v2974 = vpop.f32.mrb[0].mxu0
    %v2975 = vadd.f32 %v2390, %v2974
    %v2976 = vpop.f32.mrb[0].mxu0
    %2977 = vmatprep.mubr.f32.mxu0 %v2005
    %2978 = vmatmul.mubr.f32.gmra.mrb[0].mxu0 %v1596
    %v2979 = vpop.f32.mrb[0].mxu0
    %v2980 = vadd.f32 %v2395, %v2979
    %v2981 = vpop.f32.mrb[0].mxu0
    %2982 = vmatprep.mubr.f32.mxu0 %v2008
    %2983 = vmatmul.mubr.f32.gmra.mrb[0].mxu0 %v1600
    %v2984 = vpop.f32.mrb[0].mxu0
    %v2985 = vadd.f32 %v2400, %v2984
    %v2986 = vpop.f32.mrb[0].mxu0
    %2987 = vmatprep.mubr.f32.mxu0 %v2011
    %2988 = vmatmul.mubr.f32.gmra.mrb[0].mxu0 %v1604
    %v2989 = vpop.f32.mrb[0].mxu0
    %v2990 = vadd.f32 %v2405, %v2989
    %v2991 = vpop.f32.mrb[0].mxu0
    %2992 = vmatprep.mubr.f32.mxu0 %v2014
    %2993 = vmatmul.mubr.f32.gmra.mrb[0].mxu0 %v1608
    %v2994 = vpop.f32.mrb[0].mxu0
    %v2995 = vadd.f32 %v2410, %v2994
    %v2996 = vpop.f32.mrb[0].mxu0
    %2997 = vmatprep.mubr.f32.mxu0 %v2017
    %2998 = vmatmul.mubr.f32.gmra.mrb[0].mxu0 %v1612
    %v2999 = vpop.f32.mrb[0].mxu0
    %v3000 = vadd.f32 %v2415, %v2999
    %v3001 = vpop.f32.mrb[0].mxu0
    %3002 = vmatprep.mubr.f32.mxu0 %v2020
    %3003 = vmatmul.mubr.f32.gmra.mrb[0].mxu0 %v1616
    %v3004 = vpop.f32.mrb[0].mxu0
    %v3005 = vadd.f32 %v2420, %v3004
    %v3006 = vpop.f32.mrb[0].mxu0
    %3007 = vmatprep.mubr.f32.mxu0 %v2023
    %3008 = vmatmul.mubr.f32.gmra.mrb[0].mxu0 %v1620
    %v3009 = vpop.f32.mrb[0].mxu0
    %v3010 = vadd.f32 %v2425, %v3009
    %v3011 = vpop.f32.mrb[0].mxu0
    %3012 = vmatprep.mubr.f32.mxu0 %v2026
    %3013 = vmatmul.mubr.f32.gmra.mrb[0].mxu0 %v1624
    %v3014 = vpop.f32.mrb[0].mxu0
    %v3015 = vadd.f32 %v2430, %v3014
    %v3016 = vpop.f32.mrb[0].mxu0
    %3017 = vmatprep.mubr.f32.mxu0 %v2029
    %3018 = vmatmul.mubr.f32.gmra.mrb[0].mxu0 %v1628
    %v3019 = vpop.f32.mrb[0].mxu0
    %v3020 = vadd.f32 %v2435, %v3019
    %v3021 = vpop.f32.mrb[0].mxu0
    %3022 = vmatprep.mubr.f32.mxu0 %v2032
    %3023 = vmatmul.mubr.f32.gmra.mrb[0].mxu0 %v1632
    %v3024 = vpop.f32.mrb[0].mxu0
    %v3025 = vadd.f32 %v2440, %v3024
    %v3026 = vpop.f32.mrb[0].mxu0
    %3027 = vmatprep.mubr.f32.mxu0 %v2035
    %3028 = vmatmul.mubr.f32.gmra.mrb[0].mxu0 %v1636
    %v3029 = vpop.f32.mrb[0].mxu0
    %v3030 = vadd.f32 %v2445, %v3029
    %v3031 = vpop.f32.mrb[0].mxu0
    %3032 = vmatprep.mubr.f32.mxu0 %v2038
    %3033 = vmatmul.mubr.f32.gmra.mrb[0].mxu0 %v1640
    %v3034 = vpop.f32.mrb[0].mxu0
    %v3035 = vadd.f32 %v2450, %v3034
    %v3036 = vpop.f32.mrb[0].mxu0
    %3037 = vmatprep.mubr.f32.mxu0 %v2041
    %3038 = vmatmul.mubr.f32.gmra.mrb[0].mxu0 %v1644
    %v3039 = vpop.f32.mrb[0].mxu0
    %v3040 = vadd.f32 %v2455, %v3039
    %v3041 = vpop.f32.mrb[0].mxu0
    %3042 = vmatprep.mubr.f32.mxu0 %v2044
    %3043 = vmatmul.mubr.f32.gmra.mrb[0].mxu0 %v1648
    %v3044 = vpop.f32.mrb[0].mxu0
    %v3045 = vadd.f32 %v2460, %v3044
    %v3046 = vpop.f32.mrb[0].mxu0
    %3047 = vmatprep.mubr.f32.mxu0 %v2047
    %3048 = vmatmul.mubr.f32.gmra.mrb[0].mxu0 %v1652
    %v3049 = vpop.f32.mrb[0].mxu0
    %v3050 = vadd.f32 %v2465, %v3049
    %v3051 = vpop.f32.mrb[0].mxu0
    %3052 = vmatprep.mubr.f32.mxu0 %v2050
    %3053 = vmatmul.mubr.f32.gmra.mrb[0].mxu0 %v1656
    %v3054 = vpop.f32.mrb[0].mxu0
    %v3055 = vadd.f32 %v2470, %v3054
    %v3056 = vpop.f32.mrb[0].mxu0
    %3057 = vmatprep.mubr.f32.mxu0 %v2053
    %3058 = vmatmul.mubr.f32.gmra.mrb[0].mxu0 %v1660
    %v3059 = vpop.f32.mrb[0].mxu0
    %v3060 = vadd.f32 %v2475, %v3059
    %v3061 = vpop.f32.mrb[0].mxu0
    %3062 = vmatprep.mubr.f32.mxu0 %v2056
    %3063 = vmatmul.mubr.f32.gmra.mrb[0].mxu0 %v1664
    %v3064 = vpop.f32.mrb[0].mxu0
    %v3065 = vadd.f32 %v2480, %v3064
    %v3066 = vpop.f32.mrb[0].mxu0
    %3067 = vmatprep.mubr.f32.mxu0 %v2059
    %3068 = vmatmul.mubr.f32.gmra.mrb[0].mxu0 %v1668
    %v3069 = vpop.f32.mrb[0].mxu0
    %v3070 = vadd.f32 %v2485, %v3069
    %v3071 = vpop.f32.mrb[0].mxu0
    %3072 = vmatprep.mubr.f32.mxu0 %v2062
    %3073 = vmatmul.mubr.f32.gmra.mrb[0].mxu0 %v1672
    %v3074 = vpop.f32.mrb[0].mxu0
    %v3075 = vadd.f32 %v2490, %v3074
    %v3076 = vpop.f32.mrb[0].mxu0
    %3077 = vmatprep.mubr.f32.mxu0 %v2065
    %3078 = vmatmul.mubr.f32.gmra.mrb[0].mxu0 %v1676
    %v3079 = vpop.f32.mrb[0].mxu0
    %v3080 = vadd.f32 %v2495, %v3079
    %v3081 = vpop.f32.mrb[0].mxu0
    %3082 = vmatprep.mubr.f32.mxu0 %v2068
    %3083 = vmatmul.mubr.f32.gmra.mrb[0].mxu0 %v1680
    %v3084 = vpop.f32.mrb[0].mxu0
    %v3085 = vadd.f32 %v2500, %v3084
    %v3086 = vpop.f32.mrb[0].mxu0
    %3087 = vmatprep.mubr.f32.mxu0 %v2071
    %3088 = vmatmul.mubr.f32.gmra.mrb[0].mxu0 %v1684
    %v3089 = vpop.f32.mrb[0].mxu0
    %v3090 = vadd.f32 %v2505, %v3089
    %v3091 = vpop.f32.mrb[0].mxu0
    %3092 = vmatprep.mubr.f32.mxu0 %v2074
    %3093 = vmatmul.mubr.f32.gmra.mrb[0].mxu0 %v1688
    %v3094 = vpop.f32.mrb[0].mxu0
    %v3095 = vadd.f32 %v2510, %v3094
    %v3096 = vpop.f32.mrb[0].mxu0
    %3097 = vmatprep.mubr.f32.mxu0 %v2077
    %3098 = vmatmul.mubr.f32.gmra.mrb[0].mxu0 %v1692
    %v3099 = vpop.f32.mrb[0].mxu0
    %v3100 = vadd.f32 %v2515, %v3099
    %v3101 = vpop.f32.mrb[0].mxu0
    %3102 = vmatprep.mubr.f32.mxu0 %v2080
    %3103 = vmatmul.mubr.f32.gmra.mrb[0].mxu0 %v1696
    %v3104 = vpop.f32.mrb[0].mxu0
    %v3105 = vadd.f32 %v2520, %v3104
    %v3106 = vpop.f32.mrb[0].mxu0
    %3107 = vmatprep.mubr.f32.mxu0 %v2083
    %3108 = vmatmul.mubr.f32.gmra.mrb[0].mxu0 %v1700
    %v3109 = vpop.f32.mrb[0].mxu0
    %v3110 = vadd.f32 %v2525, %v3109
    %v3111 = vpop.f32.mrb[0].mxu0
    %3112 = vmatprep.mubr.f32.mxu0 %v2086
    %3113 = vmatmul.mubr.f32.gmra.mrb[0].mxu0 %v1704
    %v3114 = vpop.f32.mrb[0].mxu0
    %v3115 = vadd.f32 %v2530, %v3114
    %v3116 = vpop.f32.mrb[0].mxu0
    %3117 = vmatprep.mubr.f32.mxu0 %v2089
    %3118 = vmatmul.mubr.f32.gmra.mrb[0].mxu0 %v1708
    %v3119 = vpop.f32.mrb[0].mxu0
    %v3120 = vadd.f32 %v2535, %v3119
    %v3121 = vpop.f32.mrb[0].mxu0
    %3122 = vmatprep.mubr.f32.mxu0 %v2092
    %3123 = vmatmul.mubr.f32.gmra.mrb[0].mxu0 %v1712
    %v3124 = vpop.f32.mrb[0].mxu0
    %v3125 = vadd.f32 %v2540, %v3124
    %v3126 = vpop.f32.mrb[0].mxu0
    %3127 = vmatprep.mubr.f32.mxu0 %v2095
    %3128 = vmatmul.mubr.f32.gmra.mrb[0].mxu0 %v1716
    %v3129 = vpop.f32.mrb[0].mxu0
    %v3130 = vadd.f32 %v2545, %v3129
    %v3131 = vpop.f32.mrb[0].mxu0
    %3132 = vmatprep.mubr.f32.mxu0 %v2098
    %3133 = vmatmul.mubr.f32.gmra.mrb[0].mxu0 %v1720
    %v3134 = vpop.f32.mrb[0].mxu0
    %v3135 = vadd.f32 %v2550, %v3134
    %v3136 = vpop.f32.mrb[0].mxu0
    %3137 = vmatprep.mubr.f32.mxu0 %v2101
    %3138 = vmatmul.mubr.f32.gmra.mrb[0].mxu0 %v1724
    %v3139 = vpop.f32.mrb[0].mxu0
    %v3140 = vadd.f32 %v2555, %v3139
    %v3141 = vpop.f32.mrb[0].mxu0
    %3142 = vmatprep.mubr.f32.mxu0 %v2104
    %3143 = vmatmul.mubr.f32.gmra.mrb[0].mxu0 %v1728
    %v3144 = vpop.f32.mrb[0].mxu0
    %v3145 = vadd.f32 %v2560, %v3144
    %v3146 = vpop.f32.mrb[0].mxu0
    %3147 = vmatprep.mubr.f32.mxu0 %v2107
    %3148 = vmatmul.mubr.f32.gmra.mrb[0].mxu0 %v1732
    %v3149 = vpop.f32.mrb[0].mxu0
    %v3150 = vadd.f32 %v2565, %v3149
    %v3151 = vpop.f32.mrb[0].mxu0
    %3152 = vmatprep.mubr.f32.mxu0 %v2110
    %3153 = vmatmul.mubr.f32.gmra.mrb[0].mxu0 %v1736
    %v3154 = vpop.f32.mrb[0].mxu0
    %v3155 = vadd.f32 %v2570, %v3154
    %v3156 = vpop.f32.mrb[0].mxu0
    %3157 = vmatprep.mubr.f32.mxu0 %v2113
    %3158 = vmatmul.mubr.f32.gmra.mrb[0].mxu0 %v1740
    %v3159 = vpop.f32.mrb[0].mxu0
    %v3160 = vadd.f32 %v2575, %v3159
    %v3161 = vpop.f32.mrb[0].mxu0
    %3162 = vmatprep.mubr.f32.mxu0 %v2116
    %3163 = vmatmul.mubr.f32.gmra.mrb[0].mxu0 %v1744
    %v3164 = vpop.f32.mrb[0].mxu0
    %v3165 = vadd.f32 %v2580, %v3164
    %v3166 = vpop.f32.mrb[0].mxu0
    %3167 = vmatprep.mubr.f32.mxu0 %v2119
    %3168 = vmatmul.mubr.f32.gmra.mrb[0].mxu0 %v1748
    %v3169 = vpop.f32.mrb[0].mxu0
    %v3170 = vadd.f32 %v2585, %v3169
    %v3171 = vpop.f32.mrb[0].mxu0
    %3172 = vmatprep.mubr.f32.mxu0 %v2122
    %3173 = vmatmul.mubr.f32.gmra.mrb[0].mxu0 %v1752
    %v3174 = vpop.f32.mrb[0].mxu0
    %v3175 = vadd.f32 %v2590, %v3174
    %v3176 = vpop.f32.mrb[0].mxu0
    %3177 = vmatprep.mubr.f32.mxu0 %v2125
    %3178 = vmatmul.mubr.f32.gmra.mrb[0].mxu0 %v1756
    %v3179 = vpop.f32.mrb[0].mxu0
    %v3180 = vadd.f32 %v2595, %v3179
    %v3181 = vpop.f32.mrb[0].mxu0
    %3182 = vmatprep.mubr.f32.mxu0 %v2128
    %3183 = vmatmul.mubr.f32.gmra.mrb[0].mxu0 %v1760
    %v3184 = vpop.f32.mrb[0].mxu0
    %v3185 = vadd.f32 %v2600, %v3184
    %v3186 = vpop.f32.mrb[0].mxu0
    %3187 = vmatprep.mubr.f32.mxu0 %v2131
    %3188 = vmatmul.mubr.f32.gmra.mrb[0].mxu0 %v1764
    %v3189 = vpop.f32.mrb[0].mxu0
    %v3190 = vadd.f32 %v2605, %v3189
    %v3191 = vpop.f32.mrb[0].mxu0
    %3192 = vmatprep.mubr.f32.mxu0 %v2134
    %3193 = vmatmul.mubr.f32.gmra.mrb[0].mxu0 %v1768
    %v3194 = vpop.f32.mrb[0].mxu0
    %v3195 = vadd.f32 %v2610, %v3194
    %v3196 = vpop.f32.mrb[0].mxu0
    %3197 = vmatprep.mubr.f32.mxu0 %v2137
    %3198 = vmatmul.mubr.f32.gmra.mrb[0].mxu0 %v1772
    %v3199 = vpop.f32.mrb[0].mxu0
    %v3200 = vadd.f32 %v2615, %v3199
    %v3201 = vpop.f32.mrb[0].mxu0
    %3202 = vmatprep.mubr.f32.mxu0 %v2140
    %3203 = vmatmul.mubr.f32.gmra.mrb[0].mxu0 %v1776
    %v3204 = vpop.f32.mrb[0].mxu0
    %v3205 = vadd.f32 %v2620, %v3204
    %v3206 = vpop.f32.mrb[0].mxu0
    %3207 = vmatprep.mubr.f32.mxu0 %v2143
    %3208 = vmatmul.mubr.f32.gmra.mrb[0].mxu0 %v1780
    %v3209 = vpop.f32.mrb[0].mxu0
    %v3210 = vadd.f32 %v2625, %v3209
    %v3211 = vpop.f32.mrb[0].mxu0
    %3212 = vmatprep.mubr.f32.mxu0 %v2146
    %3213 = vmatmul.mubr.f32.gmra.mrb[0].mxu0 %v1784
    %v3214 = vpop.f32.mrb[0].mxu0
    %v3215 = vadd.f32 %v2630, %v3214
    %v3216 = vpop.f32.mrb[0].mxu0
    %3217 = vmatprep.mubr.f32.mxu0 %v2149
    %3218 = vmatmul.mubr.f32.gmra.mrb[0].mxu0 %v1788
    %v3219 = vpop.f32.mrb[0].mxu0
    %v3220 = vadd.f32 %v2635, %v3219
    %v3221 = vpop.f32.mrb[0].mxu0
    %3222 = vmatprep.mubr.f32.mxu0 %v2152
    %3223 = vmatmul.mubr.f32.gmra.mrb[0].mxu0 %v1792
    %v3224 = vpop.f32.mrb[0].mxu0
    %v3225 = vadd.f32 %v2640, %v3224
    %v3226 = vpop.f32.mrb[0].mxu0
    %3227 = vmatprep.mubr.f32.mxu0 %v2155
    %3228 = vmatmul.mubr.f32.gmra.mrb[0].mxu0 %v1796
    %v3229 = vpop.f32.mrb[0].mxu0
    %v3230 = vadd.f32 %v2645, %v3229
    %v3231 = vpop.f32.mrb[0].mxu0
    %3232 = vmatprep.mubr.f32.mxu0 %v2158
    %3233 = vmatmul.mubr.f32.gmra.mrb[0].mxu0 %v1800
    %v3234 = vpop.f32.mrb[0].mxu0
    %v3235 = vadd.f32 %v2650, %v3234
    %v3236 = vpop.f32.mrb[0].mxu0
    %3237 = vmatprep.mubr.f32.mxu0 %v2161
    %3238 = vmatmul.mubr.f32.gmra.mrb[0].mxu0 %v1804
    %v3239 = vpop.f32.mrb[0].mxu0
    %v3240 = vadd.f32 %v2655, %v3239
    %v3241 = vpop.f32.mrb[0].mxu0
    %3242 = vmatprep.mubr.f32.mxu0 %v2164
    %3243 = vmatmul.mubr.f32.gmra.mrb[0].mxu0 %v1808
    %v3244 = vpop.f32.mrb[0].mxu0
    %v3245 = vadd.f32 %v2660, %v3244
    %v3246 = vpop.f32.mrb[0].mxu0
    %3247 = vmatprep.mubr.f32.mxu0 %v2167
    %3248 = vmatmul.mubr.f32.gmra.mrb[0].mxu0 %v1812
    %v3249 = vpop.f32.mrb[0].mxu0
    %v3250 = vadd.f32 %v2665, %v3249
    %v3251 = vpop.f32.mrb[0].mxu0
    %3252 = vmatprep.mubr.f32.mxu0 %v2170
    %3253 = vmatmul.mubr.f32.gmra.mrb[0].mxu0 %v1816
    %v3254 = vpop.f32.mrb[0].mxu0
    %v3255 = vadd.f32 %v2670, %v3254
    %v3256 = vpop.f32.mrb[0].mxu0
    %3257 = vmatprep.mubr.f32.mxu0 %v2173
    %3258 = vmatmul.mubr.f32.gmra.mrb[0].mxu0 %v1820
    %v3259 = vpop.f32.mrb[0].mxu0
    %v3260 = vadd.f32 %v2675, %v3259
    %v3261 = vpop.f32.mrb[0].mxu0
    %3262 = vmatprep.mubr.f32.mxu0 %v2176
    %3263 = vmatmul.mubr.f32.gmra.mrb[0].mxu0 %v1824
    %v3264 = vpop.f32.mrb[0].mxu0
    %v3265 = vadd.f32 %v2680, %v3264
    %v3266 = vpop.f32.mrb[0].mxu0
    %3267 = vmatprep.mubr.f32.mxu0 %v2179
    %3268 = vmatmul.mubr.f32.gmra.mrb[0].mxu0 %v1828
    %v3269 = vpop.f32.mrb[0].mxu0
    %v3270 = vadd.f32 %v2685, %v3269
    %v3271 = vpop.f32.mrb[0].mxu0
    %3272 = vmatprep.mubr.f32.mxu0 %v2182
    %3273 = vmatmul.mubr.f32.gmra.mrb[0].mxu0 %v1832
    %v3274 = vpop.f32.mrb[0].mxu0
    %v3275 = vadd.f32 %v2690, %v3274
    %v3276 = vpop.f32.mrb[0].mxu0
    %3277 = vmatprep.mubr.f32.mxu0 %v2185
    %3278 = vmatmul.mubr.f32.gmra.mrb[0].mxu0 %v1836
    %v3279 = vpop.f32.mrb[0].mxu0
    %v3280 = vadd.f32 %v2695, %v3279
    %v3281 = vpop.f32.mrb[0].mxu0
    %3282 = vmatprep.mubr.f32.mxu0 %v2188
    %3283 = vmatmul.mubr.f32.gmra.mrb[0].mxu0 %v1840
    %v3284 = vpop.f32.mrb[0].mxu0
    %v3285 = vadd.f32 %v2700, %v3284
    %v3286 = vpop.f32.mrb[0].mxu0
    %3287 = vmatprep.mubr.f32.mxu0 %v2191
    %3288 = vmatmul.mubr.f32.gmra.mrb[0].mxu0 %v1844
    %v3289 = vpop.f32.mrb[0].mxu0
    %v3290 = vadd.f32 %v2705, %v3289
    %v3291 = vpop.f32.mrb[0].mxu0
    %3292 = vmatprep.mubr.f32.mxu0 %v2194
    %3293 = vmatmul.mubr.f32.gmra.mrb[0].mxu0 %v1848
    %v3294 = vpop.f32.mrb[0].mxu0
    %v3295 = vadd.f32 %v2710, %v3294
    %v3296 = vpop.f32.mrb[0].mxu0
    %3297 = vmatprep.mubr.f32.mxu0 %v2197
    %3298 = vmatmul.mubr.f32.gmra.mrb[0].mxu0 %v1852
    %v3299 = vpop.f32.mrb[0].mxu0
    %v3300 = vadd.f32 %v2715, %v3299
    %v3301 = vpop.f32.mrb[0].mxu0
    %3302 = vmatprep.mubr.f32.mxu0 %v2200
    %3303 = vmatmul.mubr.f32.gmra.mrb[0].mxu0 %v1856
    %v3304 = vpop.f32.mrb[0].mxu0
    %v3305 = vadd.f32 %v2720, %v3304
    %v3306 = vpop.f32.mrb[0].mxu0
    %3307 = vmatprep.mubr.f32.mxu0 %v2203
    %3308 = vmatmul.mubr.f32.gmra.mrb[0].mxu0 %v1860
    %v3309 = vpop.f32.mrb[0].mxu0
    %v3310 = vadd.f32 %v2725, %v3309
    %v3311 = vpop.f32.mrb[0].mxu0
    %3312 = vmatprep.mubr.f32.mxu0 %v2206
    %3313 = vmatmul.mubr.f32.gmra.mrb[0].mxu0 %v1864
    %v3314 = vpop.f32.mrb[0].mxu0
    %v3315 = vadd.f32 %v2730, %v3314
    %v3316 = vpop.f32.mrb[0].mxu0
    %3317 = vmatprep.mubr.f32.mxu0 %v2209
    %3318 = vmatmul.mubr.f32.gmra.mrb[0].mxu0 %v1868
    %v3319 = vpop.f32.mrb[0].mxu0
    %v3320 = vadd.f32 %v2735, %v3319
    %v3321 = vpop.f32.mrb[0].mxu0
    %3322 = vmatprep.mubr.f32.mxu0 %v2212
    %3323 = vmatmul.mubr.f32.gmra.mrb[0].mxu0 %v1872
    %v3324 = vpop.f32.mrb[0].mxu0
    %v3325 = vadd.f32 %v2740, %v3324
    %v3326 = vpop.f32.mrb[0].mxu0
    %3327 = vmatprep.mubr.f32.mxu0 %v2215
    %3328 = vmatmul.mubr.f32.gmra.mrb[0].mxu0 %v1876
    %v3329 = vpop.f32.mrb[0].mxu0
    %v3330 = vadd.f32 %v2745, %v3329
    %v3331 = vpop.f32.mrb[0].mxu0
    %3332 = vmatprep.mubr.f32.mxu0 %v2218
    %3333 = vmatmul.mubr.f32.gmra.mrb[0].mxu0 %v1880
    %v3334 = vpop.f32.mrb[0].mxu0
    %v3335 = vadd.f32 %v2750, %v3334
    %v3336 = vpop.f32.mrb[0].mxu0
    %3337 = vmatprep.mubr.f32.mxu0 %v2221
    %3338 = vmatmul.mubr.f32.gmra.mrb[0].mxu0 %v1884
    %v3339 = vpop.f32.mrb[0].mxu0
    %v3340 = vadd.f32 %v2755, %v3339
    %v3341 = vpop.f32.mrb[0].mxu0
    %3342 = vmatprep.mubr.f32.mxu0 %v2224
    %3343 = vmatmul.mubr.f32.gmra.mrb[0].mxu0 %v1888
    %v3344 = vpop.f32.mrb[0].mxu0
    %v3345 = vadd.f32 %v2760, %v3344
    %v3346 = vpop.f32.mrb[0].mxu0
    %3347 = vmatprep.mubr.f32.mxu0 %v2227
    %3348 = vmatmul.mubr.f32.gmra.mrb[0].mxu0 %v1892
    %v3349 = vpop.f32.mrb[0].mxu0
    %v3350 = vadd.f32 %v2765, %v3349
    %v3351 = vpop.f32.mrb[0].mxu0
    %3352 = vmatprep.mubr.f32.mxu0 %v2230
    %3353 = vmatmul.mubr.f32.gmra.mrb[0].mxu0 %v1896
    %v3354 = vpop.f32.mrb[0].mxu0
    %v3355 = vadd.f32 %v2770, %v3354
    %v3356 = vpop.f32.mrb[0].mxu0
    %3357 = vmatprep.mubr.f32.mxu0 %v2233
    %3358 = vmatmul.mubr.f32.gmra.mrb[0].mxu0 %v1900
    %v3359 = vpop.f32.mrb[0].mxu0
    %v3360 = vadd.f32 %v2775, %v3359
    %v3361 = vpop.f32.mrb[0].mxu0
    %3362 = vmatprep.mubr.f32.mxu0 %v2236
    %3363 = vmatmul.mubr.f32.gmra.mrb[0].mxu0 %v1904
    %v3364 = vpop.f32.mrb[0].mxu0
    %v3365 = vadd.f32 %v2780, %v3364
    %v3366 = vpop.f32.mrb[0].mxu0
    %3367 = vmatprep.mubr.f32.mxu0 %v2239
    %3368 = vmatmul.mubr.f32.gmra.mrb[0].mxu0 %v1908
    %v3369 = vpop.f32.mrb[0].mxu0
    %v3370 = vadd.f32 %v2785, %v3369
    %v3371 = vpop.f32.mrb[0].mxu0
    %3372 = vmatprep.mubr.f32.mxu0 %v2242
    %3373 = vmatmul.mubr.f32.gmra.mrb[0].mxu0 %v1912
    %v3374 = vpop.f32.mrb[0].mxu0
    %v3375 = vadd.f32 %v2790, %v3374
    %v3376 = vpop.f32.mrb[0].mxu0
    %3377 = vmatprep.mubr.f32.mxu0 %v2245
    %3378 = vmatmul.mubr.f32.gmra.mrb[0].mxu0 %v1916
    %v3379 = vpop.f32.mrb[0].mxu0
    %v3380 = vadd.f32 %v2795, %v3379
    %v3381 = vpop.f32.mrb[0].mxu0
    %3382 = vmatprep.mubr.f32.mxu0 %v2248
    %3383 = vmatmul.mubr.f32.gmra.mrb[0].mxu0 %v1920
    %v3384 = vpop.f32.mrb[0].mxu0
    %v3385 = vadd.f32 %v2800, %v3384
    %v3386 = vpop.f32.mrb[0].mxu0
    %3387 = vmatprep.mubr.f32.mxu0 %v2251
    %3388 = vmatmul.mubr.f32.gmra.mrb[0].mxu0 %v1924
    %v3389 = vpop.f32.mrb[0].mxu0
    %v3390 = vadd.f32 %v2805, %v3389
    %v3391 = vpop.f32.mrb[0].mxu0
    %3392 = vmatprep.mubr.f32.mxu0 %v2254
    %3393 = vmatmul.mubr.f32.gmra.mrb[0].mxu0 %v1928
    %v3394 = vpop.f32.mrb[0].mxu0
    %v3395 = vadd.f32 %v2810, %v3394
    %v3396 = vpop.f32.mrb[0].mxu0
    %3397 = vmatprep.mubr.f32.mxu0 %v2257
    %3398 = vmatmul.mubr.f32.gmra.mrb[0].mxu0 %v1932
    %v3399 = vpop.f32.mrb[0].mxu0
    %v3400 = vadd.f32 %v2815, %v3399
    %v3401 = vpop.f32.mrb[0].mxu0
    %3402 = vmatprep.mubr.f32.mxu0 %v2260
    %3403 = vmatmul.mubr.f32.gmra.mrb[0].mxu0 %v1936
    %v3404 = vpop.f32.mrb[0].mxu0
    %v3405 = vadd.f32 %v2820, %v3404
    %v3406 = vpop.f32.mrb[0].mxu0
    %3407 = vmatprep.mubr.f32.mxu0 %v2263
    %3408 = vmatmul.mubr.f32.gmra.mrb[0].mxu0 %v1940
    %v3409 = vpop.f32.mrb[0].mxu0
    %v3410 = vadd.f32 %v2825, %v3409
    %v3411 = vpop.f32.mrb[0].mxu0
    %3412 = vmatprep.mubr.f32.mxu0 %v2266
    %3413 = vmatmul.mubr.f32.gmra.mrb[0].mxu0 %v1944
    %v3414 = vpop.f32.mrb[0].mxu0
    %v3415 = vadd.f32 %v2830, %v3414
    %v3416 = vpop.f32.mrb[0].mxu0
    %3417 = vmatprep.mubr.f32.mxu0 %v2269
    %3418 = vmatmul.mubr.f32.gmra.mrb[0].mxu0 %v1948
    %v3419 = vpop.f32.mrb[0].mxu0
    %v3420 = vadd.f32 %v2835, %v3419
    %v3421 = vpop.f32.mrb[0].mxu0
    %3422 = vmatprep.mubr.f32.mxu0 %v2272
    %3423 = vmatmul.mubr.f32.gmra.mrb[0].mxu0 %v1952
    %v3424 = vpop.f32.mrb[0].mxu0
    %v3425 = vadd.f32 %v2840, %v3424
    %v3426 = vpop.f32.mrb[0].mxu0
    %3427 = vmatprep.mubr.f32.mxu0 %v2275
    %3428 = vmatmul.mubr.f32.gmra.mrb[0].mxu0 %v1956
    %v3429 = vpop.f32.mrb[0].mxu0
    %v3430 = vadd.f32 %v2845, %v3429
    %v3431 = vpop.f32.mrb[0].mxu0
    %3432 = vmatprep.mubr.f32.mxu0 %v2278
    %3433 = vmatmul.mubr.f32.gmra.mrb[0].mxu0 %v1960
    %v3434 = vpop.f32.mrb[0].mxu0
    %v3435 = vadd.f32 %v2850, %v3434
    %v3436 = vpop.f32.mrb[0].mxu0
    %3437 = vmatprep.mubr.f32.mxu0 %v2281
    %3438 = vmatmul.mubr.f32.gmra.mrb[0].mxu0 %v1964
    %v3439 = vpop.f32.mrb[0].mxu0
    %v3440 = vadd.f32 %v2855, %v3439
    %v3441 = vpop.f32.mrb[0].mxu0
    %3442 = vmatprep.mubr.f32.mxu0 %v2284
    %3443 = vmatmul.mubr.f32.gmra.mrb[0].mxu0 %v1968
    %v3444 = vpop.f32.mrb[0].mxu0
    %v3445 = vadd.f32 %v2860, %v3444
    %v3446 = vpop.f32.mrb[0].mxu0
    %3447 = vmatprep.mubr.f32.mxu0 %v2287
    %3448 = vmatmul.mubr.f32.gmra.mrb[0].mxu0 %v1972
    %v3449 = vpop.f32.mrb[0].mxu0
    %v3450 = vadd.f32 %v2865, %v3449
    %v3451 = vpop.f32.mrb[0].mxu0
    %3452 = vmatprep.mubr.f32.mxu0 %v2290
    %3453 = vmatmul.mubr.f32.gmra.mrb[0].mxu0 %v1976
    %v3454 = vpop.f32.mrb[0].mxu0
    %v3455 = vadd.f32 %v2870, %v3454
    %v3456 = vpop.f32.mrb[0].mxu0
    %3457 = vmatprep.mubr.f32.mxu0 %v2293
    %3458 = vmatmul.mubr.f32.gmra.mrb[0].mxu0 %v1980
    %v3459 = vpop.f32.mrb[0].mxu0
    %v3460 = vadd.f32 %v2875, %v3459
    %v3461 = vpop.f32.mrb[0].mxu0
    %3462 = vmatprep.mubr.f32.mxu0 %v2296
    %3463 = vmatmul.mubr.f32.gmra.mrb[0].mxu0 %v1984
    %v3464 = vpop.f32.mrb[0].mxu0
    %v3465 = vadd.f32 %v2880, %v3464
    %v3466 = vpop.f32.mrb[0].mxu0
    %3467 = vdwg.mxu0
    %v3468 = vld [vmem:[%s6] sm:$0xff]
    %v3469 = vld [vmem:[%s6 + $0x8] sm:$0xff]
    %v3470 = vld [vmem:[%s6 + $0x10] sm:$0xff]
    %v3471 = vld [vmem:[%s6 + $0x18] sm:$0xff]
    %v3472 = vld [vmem:[%s6 + $0x20] sm:$0xff]
    %v3473 = vld [vmem:[%s6 + $0x28] sm:$0xff]
    %v3474 = vld [vmem:[%s6 + $0x30] sm:$0xff]
    %v3475 = vld [vmem:[%s6 + $0x38] sm:$0xff]
    %v3476 = vld [vmem:[%s6 + $0x40] sm:$0xff]
    %v3477 = vld [vmem:[%s6 + $0x48] sm:$0xff]
    %v3478 = vld [vmem:[%s6 + $0x50] sm:$0xff]
    %v3479 = vld [vmem:[%s6 + $0x58] sm:$0xff]
    %v3480 = vld [vmem:[%s6 + $0x60] sm:$0xff]
    %v3481 = vld [vmem:[%s6 + $0x68] sm:$0xff]
    %v3482 = vld [vmem:[%s6 + $0x70] sm:$0xff]
    %v3483 = vld [vmem:[%s6 + $0x78] sm:$0xff]
    %v3484 = vld [vmem:[%s6 + $0x80] sm:$0xff]
    %v3485 = vld [vmem:[%s6 + $0x88] sm:$0xff]
    %v3486 = vld [vmem:[%s6 + $0x90] sm:$0xff]
    %v3487 = vld [vmem:[%s6 + $0x98] sm:$0xff]
    %v3488 = vld [vmem:[%s6 + $0xa0] sm:$0xff]
    %v3489 = vld [vmem:[%s6 + $0xa8] sm:$0xff]
    %v3490 = vld [vmem:[%s6 + $0xb0] sm:$0xff]
    %v3491 = vld [vmem:[%s6 + $0xb8] sm:$0xff]
    %v3492 = vld [vmem:[%s6 + $0xc0] sm:$0xff]
    %v3493 = vld [vmem:[%s6 + $0xc8] sm:$0xff]
    %v3494 = vld [vmem:[%s6 + $0xd0] sm:$0xff]
    %v3495 = vld [vmem:[%s6 + $0xd8] sm:$0xff]
    %v3496 = vld [vmem:[%s6 + $0xe0] sm:$0xff]
    %v3497 = vld [vmem:[%s6 + $0xe8] sm:$0xff]
    %v3498 = vld [vmem:[%s6 + $0xf0] sm:$0xff]
    %v3499 = vld [vmem:[%s6 + $0xf8] sm:$0xff]
    %v3500 = vld [vmem:[%s6 + $0x100] sm:$0xff]
    %v3501 = vld [vmem:[%s6 + $0x108] sm:$0xff]
    %v3502 = vld [vmem:[%s6 + $0x110] sm:$0xff]
    %v3503 = vld [vmem:[%s6 + $0x118] sm:$0xff]
    %v3504 = vld [vmem:[%s6 + $0x120] sm:$0xff]
    %v3505 = vld [vmem:[%s6 + $0x128] sm:$0xff]
    %v3506 = vld [vmem:[%s6 + $0x130] sm:$0xff]
    %v3507 = vld [vmem:[%s6 + $0x138] sm:$0xff]
    %v3508 = vld [vmem:[%s6 + $0x140] sm:$0xff]
    %v3509 = vld [vmem:[%s6 + $0x148] sm:$0xff]
    %v3510 = vld [vmem:[%s6 + $0x150] sm:$0xff]
    %v3511 = vld [vmem:[%s6 + $0x158] sm:$0xff]
    %v3512 = vld [vmem:[%s6 + $0x160] sm:$0xff]
    %v3513 = vld [vmem:[%s6 + $0x168] sm:$0xff]
    %v3514 = vld [vmem:[%s6 + $0x170] sm:$0xff]
    %v3515 = vld [vmem:[%s6 + $0x178] sm:$0xff]
    %v3516 = vld [vmem:[%s6 + $0x180] sm:$0xff]
    %v3517 = vld [vmem:[%s6 + $0x188] sm:$0xff]
    %v3518 = vld [vmem:[%s6 + $0x190] sm:$0xff]
    %v3519 = vld [vmem:[%s6 + $0x198] sm:$0xff]
    %v3520 = vld [vmem:[%s6 + $0x1a0] sm:$0xff]
    %v3521 = vld [vmem:[%s6 + $0x1a8] sm:$0xff]
    %v3522 = vld [vmem:[%s6 + $0x1b0] sm:$0xff]
    %v3523 = vld [vmem:[%s6 + $0x1b8] sm:$0xff]
    %v3524 = vld [vmem:[%s6 + $0x1c0] sm:$0xff]
    %v3525 = vld [vmem:[%s6 + $0x1c8] sm:$0xff]
    %v3526 = vld [vmem:[%s6 + $0x1d0] sm:$0xff]
    %v3527 = vld [vmem:[%s6 + $0x1d8] sm:$0xff]
    %v3528 = vld [vmem:[%s6 + $0x1e0] sm:$0xff]
    %v3529 = vld [vmem:[%s6 + $0x1e8] sm:$0xff]
    %v3530 = vld [vmem:[%s6 + $0x1f0] sm:$0xff]
    %v3531 = vld [vmem:[%s6 + $0x1f8] sm:$0xff]
    %v3532 = vld [vmem:[%s6 + $0x200] sm:$0xff]
    %v3533 = vld [vmem:[%s6 + $0x208] sm:$0xff]
    %v3534 = vld [vmem:[%s6 + $0x210] sm:$0xff]
    %v3535 = vld [vmem:[%s6 + $0x218] sm:$0xff]
    %v3536 = vld [vmem:[%s6 + $0x220] sm:$0xff]
    %v3537 = vld [vmem:[%s6 + $0x228] sm:$0xff]
    %v3538 = vld [vmem:[%s6 + $0x230] sm:$0xff]
    %v3539 = vld [vmem:[%s6 + $0x238] sm:$0xff]
    %v3540 = vld [vmem:[%s6 + $0x240] sm:$0xff]
    %v3541 = vld [vmem:[%s6 + $0x248] sm:$0xff]
    %v3542 = vld [vmem:[%s6 + $0x250] sm:$0xff]
    %v3543 = vld [vmem:[%s6 + $0x258] sm:$0xff]
    %v3544 = vld [vmem:[%s6 + $0x260] sm:$0xff]
    %v3545 = vld [vmem:[%s6 + $0x268] sm:$0xff]
    %v3546 = vld [vmem:[%s6 + $0x270] sm:$0xff]
    %v3547 = vld [vmem:[%s6 + $0x278] sm:$0xff]
    %v3548 = vld [vmem:[%s6 + $0x280] sm:$0xff]
    %v3549 = vld [vmem:[%s6 + $0x288] sm:$0xff]
    %v3550 = vld [vmem:[%s6 + $0x290] sm:$0xff]
    %v3551 = vld [vmem:[%s6 + $0x298] sm:$0xff]
    %v3552 = vld [vmem:[%s6 + $0x2a0] sm:$0xff]
    %v3553 = vld [vmem:[%s6 + $0x2a8] sm:$0xff]
    %v3554 = vld [vmem:[%s6 + $0x2b0] sm:$0xff]
    %v3555 = vld [vmem:[%s6 + $0x2b8] sm:$0xff]
    %v3556 = vld [vmem:[%s6 + $0x2c0] sm:$0xff]
    %v3557 = vld [vmem:[%s6 + $0x2c8] sm:$0xff]
    %v3558 = vld [vmem:[%s6 + $0x2d0] sm:$0xff]
    %v3559 = vld [vmem:[%s6 + $0x2d8] sm:$0xff]
    %v3560 = vld [vmem:[%s6 + $0x2e0] sm:$0xff]
    %v3561 = vld [vmem:[%s6 + $0x2e8] sm:$0xff]
    %v3562 = vld [vmem:[%s6 + $0x2f0] sm:$0xff]
    %v3563 = vld [vmem:[%s6 + $0x2f8] sm:$0xff]
    %v3564 = vld [vmem:[%s6 + $0x300] sm:$0xff]
    %v3565 = vld [vmem:[%s6 + $0x308] sm:$0xff]
    %v3566 = vld [vmem:[%s6 + $0x310] sm:$0xff]
    %v3567 = vld [vmem:[%s6 + $0x318] sm:$0xff]
    %v3568 = vld [vmem:[%s6 + $0x320] sm:$0xff]
    %v3569 = vld [vmem:[%s6 + $0x328] sm:$0xff]
    %v3570 = vld [vmem:[%s6 + $0x330] sm:$0xff]
    %v3571 = vld [vmem:[%s6 + $0x338] sm:$0xff]
    %3573 = vset.pattern.permute.xlu0 0
    %3574 = vperm.xlu0 %3573, %v3468
    %v3575 = vpop.permute.xlu0 %3574
    %3578 = vset.pattern.permute.xlu0 0
    %3579 = vperm.xlu0 %3578, %v3469
    %v3580 = vpop.permute.xlu0 %3579
    %3583 = vset.pattern.permute.xlu0 0
    %3584 = vperm.xlu0 %3583, %v3470
    %v3585 = vpop.permute.xlu0 %3584
    %3588 = vset.pattern.permute.xlu0 0
    %3589 = vperm.xlu0 %3588, %v3471
    %v3590 = vpop.permute.xlu0 %3589
    %3593 = vset.pattern.permute.xlu0 0
    %3594 = vperm.xlu0 %3593, %v3472
    %v3595 = vpop.permute.xlu0 %3594
    %3598 = vset.pattern.permute.xlu0 0
    %3599 = vperm.xlu0 %3598, %v3473
    %v3600 = vpop.permute.xlu0 %3599
    %3603 = vset.pattern.permute.xlu0 0
    %3604 = vperm.xlu0 %3603, %v3474
    %v3605 = vpop.permute.xlu0 %3604
    %3608 = vset.pattern.permute.xlu0 0
    %3609 = vperm.xlu0 %3608, %v3475
    %v3610 = vpop.permute.xlu0 %3609
    %3613 = vset.pattern.permute.xlu0 0
    %3614 = vperm.xlu0 %3613, %v3476
    %v3615 = vpop.permute.xlu0 %3614
    %3618 = vset.pattern.permute.xlu0 0
    %3619 = vperm.xlu0 %3618, %v3477
    %v3620 = vpop.permute.xlu0 %3619
    %3623 = vset.pattern.permute.xlu0 0
    %3624 = vperm.xlu0 %3623, %v3478
    %v3625 = vpop.permute.xlu0 %3624
    %3628 = vset.pattern.permute.xlu0 0
    %3629 = vperm.xlu0 %3628, %v3479
    %v3630 = vpop.permute.xlu0 %3629
    %3633 = vset.pattern.permute.xlu0 0
    %3634 = vperm.xlu0 %3633, %v3480
    %v3635 = vpop.permute.xlu0 %3634
    %3638 = vset.pattern.permute.xlu0 0
    %3639 = vperm.xlu0 %3638, %v3481
    %v3640 = vpop.permute.xlu0 %3639
    %3643 = vset.pattern.permute.xlu0 0
    %3644 = vperm.xlu0 %3643, %v3482
    %v3645 = vpop.permute.xlu0 %3644
    %3648 = vset.pattern.permute.xlu0 0
    %3649 = vperm.xlu0 %3648, %v3483
    %v3650 = vpop.permute.xlu0 %3649
    %3653 = vset.pattern.permute.xlu0 0
    %3654 = vperm.xlu0 %3653, %v3484
    %v3655 = vpop.permute.xlu0 %3654
    %3658 = vset.pattern.permute.xlu0 0
    %3659 = vperm.xlu0 %3658, %v3485
    %v3660 = vpop.permute.xlu0 %3659
    %3663 = vset.pattern.permute.xlu0 0
    %3664 = vperm.xlu0 %3663, %v3486
    %v3665 = vpop.permute.xlu0 %3664
    %3668 = vset.pattern.permute.xlu0 0
    %3669 = vperm.xlu0 %3668, %v3487
    %v3670 = vpop.permute.xlu0 %3669
    %3673 = vset.pattern.permute.xlu0 0
    %3674 = vperm.xlu0 %3673, %v3488
    %v3675 = vpop.permute.xlu0 %3674
    %3678 = vset.pattern.permute.xlu0 0
    %3679 = vperm.xlu0 %3678, %v3489
    %v3680 = vpop.permute.xlu0 %3679
    %3683 = vset.pattern.permute.xlu0 0
    %3684 = vperm.xlu0 %3683, %v3490
    %v3685 = vpop.permute.xlu0 %3684
    %3688 = vset.pattern.permute.xlu0 0
    %3689 = vperm.xlu0 %3688, %v3491
    %v3690 = vpop.permute.xlu0 %3689
    %3693 = vset.pattern.permute.xlu0 0
    %3694 = vperm.xlu0 %3693, %v3492
    %v3695 = vpop.permute.xlu0 %3694
    %3698 = vset.pattern.permute.xlu0 0
    %3699 = vperm.xlu0 %3698, %v3493
    %v3700 = vpop.permute.xlu0 %3699
    %3703 = vset.pattern.permute.xlu0 0
    %3704 = vperm.xlu0 %3703, %v3494
    %v3705 = vpop.permute.xlu0 %3704
    %3708 = vset.pattern.permute.xlu0 0
    %3709 = vperm.xlu0 %3708, %v3495
    %v3710 = vpop.permute.xlu0 %3709
    %3713 = vset.pattern.permute.xlu0 0
    %3714 = vperm.xlu0 %3713, %v3496
    %v3715 = vpop.permute.xlu0 %3714
    %3718 = vset.pattern.permute.xlu0 0
    %3719 = vperm.xlu0 %3718, %v3497
    %v3720 = vpop.permute.xlu0 %3719
    %3723 = vset.pattern.permute.xlu0 0
    %3724 = vperm.xlu0 %3723, %v3498
    %v3725 = vpop.permute.xlu0 %3724
    %3728 = vset.pattern.permute.xlu0 0
    %3729 = vperm.xlu0 %3728, %v3499
    %v3730 = vpop.permute.xlu0 %3729
    %3733 = vset.pattern.permute.xlu0 0
    %3734 = vperm.xlu0 %3733, %v3500
    %v3735 = vpop.permute.xlu0 %3734
    %3738 = vset.pattern.permute.xlu0 0
    %3739 = vperm.xlu0 %3738, %v3501
    %v3740 = vpop.permute.xlu0 %3739
    %3743 = vset.pattern.permute.xlu0 0
    %3744 = vperm.xlu0 %3743, %v3502
    %v3745 = vpop.permute.xlu0 %3744
    %3748 = vset.pattern.permute.xlu0 0
    %3749 = vperm.xlu0 %3748, %v3503
    %v3750 = vpop.permute.xlu0 %3749
    %3753 = vset.pattern.permute.xlu0 0
    %3754 = vperm.xlu0 %3753, %v3504
    %v3755 = vpop.permute.xlu0 %3754
    %3758 = vset.pattern.permute.xlu0 0
    %3759 = vperm.xlu0 %3758, %v3505
    %v3760 = vpop.permute.xlu0 %3759
    %3763 = vset.pattern.permute.xlu0 0
    %3764 = vperm.xlu0 %3763, %v3506
    %v3765 = vpop.permute.xlu0 %3764
    %3768 = vset.pattern.permute.xlu0 0
    %3769 = vperm.xlu0 %3768, %v3507
    %v3770 = vpop.permute.xlu0 %3769
    %3773 = vset.pattern.permute.xlu0 0
    %3774 = vperm.xlu0 %3773, %v3508
    %v3775 = vpop.permute.xlu0 %3774
    %3778 = vset.pattern.permute.xlu0 0
    %3779 = vperm.xlu0 %3778, %v3509
    %v3780 = vpop.permute.xlu0 %3779
    %3783 = vset.pattern.permute.xlu0 0
    %3784 = vperm.xlu0 %3783, %v3510
    %v3785 = vpop.permute.xlu0 %3784
    %3788 = vset.pattern.permute.xlu0 0
    %3789 = vperm.xlu0 %3788, %v3511
    %v3790 = vpop.permute.xlu0 %3789
    %3793 = vset.pattern.permute.xlu0 0
    %3794 = vperm.xlu0 %3793, %v3512
    %v3795 = vpop.permute.xlu0 %3794
    %3798 = vset.pattern.permute.xlu0 0
    %3799 = vperm.xlu0 %3798, %v3513
    %v3800 = vpop.permute.xlu0 %3799
    %3803 = vset.pattern.permute.xlu0 0
    %3804 = vperm.xlu0 %3803, %v3514
    %v3805 = vpop.permute.xlu0 %3804
    %3808 = vset.pattern.permute.xlu0 0
    %3809 = vperm.xlu0 %3808, %v3515
    %v3810 = vpop.permute.xlu0 %3809
    %3813 = vset.pattern.permute.xlu0 0
    %3814 = vperm.xlu0 %3813, %v3516
    %v3815 = vpop.permute.xlu0 %3814
    %3818 = vset.pattern.permute.xlu0 0
    %3819 = vperm.xlu0 %3818, %v3517
    %v3820 = vpop.permute.xlu0 %3819
    %3823 = vset.pattern.permute.xlu0 0
    %3824 = vperm.xlu0 %3823, %v3518
    %v3825 = vpop.permute.xlu0 %3824
    %3828 = vset.pattern.permute.xlu0 0
    %3829 = vperm.xlu0 %3828, %v3519
    %v3830 = vpop.permute.xlu0 %3829
    %3833 = vset.pattern.permute.xlu0 0
    %3834 = vperm.xlu0 %3833, %v3520
    %v3835 = vpop.permute.xlu0 %3834
    %3838 = vset.pattern.permute.xlu0 0
    %3839 = vperm.xlu0 %3838, %v3521
    %v3840 = vpop.permute.xlu0 %3839
    %3843 = vset.pattern.permute.xlu0 0
    %3844 = vperm.xlu0 %3843, %v3522
    %v3845 = vpop.permute.xlu0 %3844
    %3848 = vset.pattern.permute.xlu0 0
    %3849 = vperm.xlu0 %3848, %v3523
    %v3850 = vpop.permute.xlu0 %3849
    %3853 = vset.pattern.permute.xlu0 0
    %3854 = vperm.xlu0 %3853, %v3524
    %v3855 = vpop.permute.xlu0 %3854
    %3858 = vset.pattern.permute.xlu0 0
    %3859 = vperm.xlu0 %3858, %v3525
    %v3860 = vpop.permute.xlu0 %3859
    %3863 = vset.pattern.permute.xlu0 0
    %3864 = vperm.xlu0 %3863, %v3526
    %v3865 = vpop.permute.xlu0 %3864
    %3868 = vset.pattern.permute.xlu0 0
    %3869 = vperm.xlu0 %3868, %v3527
    %v3870 = vpop.permute.xlu0 %3869
    %3873 = vset.pattern.permute.xlu0 0
    %3874 = vperm.xlu0 %3873, %v3528
    %v3875 = vpop.permute.xlu0 %3874
    %3878 = vset.pattern.permute.xlu0 0
    %3879 = vperm.xlu0 %3878, %v3529
    %v3880 = vpop.permute.xlu0 %3879
    %3883 = vset.pattern.permute.xlu0 0
    %3884 = vperm.xlu0 %3883, %v3530
    %v3885 = vpop.permute.xlu0 %3884
    %3888 = vset.pattern.permute.xlu0 0
    %3889 = vperm.xlu0 %3888, %v3531
    %v3890 = vpop.permute.xlu0 %3889
    %3893 = vset.pattern.permute.xlu0 0
    %3894 = vperm.xlu0 %3893, %v3532
    %v3895 = vpop.permute.xlu0 %3894
    %3898 = vset.pattern.permute.xlu0 0
    %3899 = vperm.xlu0 %3898, %v3533
    %v3900 = vpop.permute.xlu0 %3899
    %3903 = vset.pattern.permute.xlu0 0
    %3904 = vperm.xlu0 %3903, %v3534
    %v3905 = vpop.permute.xlu0 %3904
    %3908 = vset.pattern.permute.xlu0 0
    %3909 = vperm.xlu0 %3908, %v3535
    %v3910 = vpop.permute.xlu0 %3909
    %3913 = vset.pattern.permute.xlu0 0
    %3914 = vperm.xlu0 %3913, %v3536
    %v3915 = vpop.permute.xlu0 %3914
    %3918 = vset.pattern.permute.xlu0 0
    %3919 = vperm.xlu0 %3918, %v3537
    %v3920 = vpop.permute.xlu0 %3919
    %3923 = vset.pattern.permute.xlu0 0
    %3924 = vperm.xlu0 %3923, %v3538
    %v3925 = vpop.permute.xlu0 %3924
    %3928 = vset.pattern.permute.xlu0 0
    %3929 = vperm.xlu0 %3928, %v3539
    %v3930 = vpop.permute.xlu0 %3929
    %3933 = vset.pattern.permute.xlu0 0
    %3934 = vperm.xlu0 %3933, %v3540
    %v3935 = vpop.permute.xlu0 %3934
    %3938 = vset.pattern.permute.xlu0 0
    %3939 = vperm.xlu0 %3938, %v3541
    %v3940 = vpop.permute.xlu0 %3939
    %3943 = vset.pattern.permute.xlu0 0
    %3944 = vperm.xlu0 %3943, %v3542
    %v3945 = vpop.permute.xlu0 %3944
    %3948 = vset.pattern.permute.xlu0 0
    %3949 = vperm.xlu0 %3948, %v3543
    %v3950 = vpop.permute.xlu0 %3949
    %3953 = vset.pattern.permute.xlu0 0
    %3954 = vperm.xlu0 %3953, %v3544
    %v3955 = vpop.permute.xlu0 %3954
    %3958 = vset.pattern.permute.xlu0 0
    %3959 = vperm.xlu0 %3958, %v3545
    %v3960 = vpop.permute.xlu0 %3959
    %3963 = vset.pattern.permute.xlu0 0
    %3964 = vperm.xlu0 %3963, %v3546
    %v3965 = vpop.permute.xlu0 %3964
    %3968 = vset.pattern.permute.xlu0 0
    %3969 = vperm.xlu0 %3968, %v3547
    %v3970 = vpop.permute.xlu0 %3969
    %3973 = vset.pattern.permute.xlu0 0
    %3974 = vperm.xlu0 %3973, %v3548
    %v3975 = vpop.permute.xlu0 %3974
    %3978 = vset.pattern.permute.xlu0 0
    %3979 = vperm.xlu0 %3978, %v3549
    %v3980 = vpop.permute.xlu0 %3979
    %3983 = vset.pattern.permute.xlu0 0
    %3984 = vperm.xlu0 %3983, %v3550
    %v3985 = vpop.permute.xlu0 %3984
    %3988 = vset.pattern.permute.xlu0 0
    %3989 = vperm.xlu0 %3988, %v3551
    %v3990 = vpop.permute.xlu0 %3989
    %3993 = vset.pattern.permute.xlu0 0
    %3994 = vperm.xlu0 %3993, %v3552
    %v3995 = vpop.permute.xlu0 %3994
    %3998 = vset.pattern.permute.xlu0 0
    %3999 = vperm.xlu0 %3998, %v3553
    %v4000 = vpop.permute.xlu0 %3999
    %4003 = vset.pattern.permute.xlu0 0
    %4004 = vperm.xlu0 %4003, %v3554
    %v4005 = vpop.permute.xlu0 %4004
    %4008 = vset.pattern.permute.xlu0 0
    %4009 = vperm.xlu0 %4008, %v3555
    %v4010 = vpop.permute.xlu0 %4009
    %4013 = vset.pattern.permute.xlu0 0
    %4014 = vperm.xlu0 %4013, %v3556
    %v4015 = vpop.permute.xlu0 %4014
    %4018 = vset.pattern.permute.xlu0 0
    %4019 = vperm.xlu0 %4018, %v3557
    %v4020 = vpop.permute.xlu0 %4019
    %4023 = vset.pattern.permute.xlu0 0
    %4024 = vperm.xlu0 %4023, %v3558
    %v4025 = vpop.permute.xlu0 %4024
    %4028 = vset.pattern.permute.xlu0 0
    %4029 = vperm.xlu0 %4028, %v3559
    %v4030 = vpop.permute.xlu0 %4029
    %4033 = vset.pattern.permute.xlu0 0
    %4034 = vperm.xlu0 %4033, %v3560
    %v4035 = vpop.permute.xlu0 %4034
    %4038 = vset.pattern.permute.xlu0 0
    %4039 = vperm.xlu0 %4038, %v3561
    %v4040 = vpop.permute.xlu0 %4039
    %4043 = vset.pattern.permute.xlu0 0
    %4044 = vperm.xlu0 %4043, %v3562
    %v4045 = vpop.permute.xlu0 %4044
    %4048 = vset.pattern.permute.xlu0 0
    %4049 = vperm.xlu0 %4048, %v3563
    %v4050 = vpop.permute.xlu0 %4049
    %4053 = vset.pattern.permute.xlu0 0
    %4054 = vperm.xlu0 %4053, %v3564
    %v4055 = vpop.permute.xlu0 %4054
    %4058 = vset.pattern.permute.xlu0 0
    %4059 = vperm.xlu0 %4058, %v3565
    %v4060 = vpop.permute.xlu0 %4059
    %4063 = vset.pattern.permute.xlu0 0
    %4064 = vperm.xlu0 %4063, %v3566
    %v4065 = vpop.permute.xlu0 %4064
    %4068 = vset.pattern.permute.xlu0 0
    %4069 = vperm.xlu0 %4068, %v3567
    %v4070 = vpop.permute.xlu0 %4069
    %4073 = vset.pattern.permute.xlu0 0
    %4074 = vperm.xlu0 %4073, %v3568
    %v4075 = vpop.permute.xlu0 %4074
    %4078 = vset.pattern.permute.xlu0 0
    %4079 = vperm.xlu0 %4078, %v3569
    %v4080 = vpop.permute.xlu0 %4079
    %4083 = vset.pattern.permute.xlu0 0
    %4084 = vperm.xlu0 %4083, %v3570
    %v4085 = vpop.permute.xlu0 %4084
    %4088 = vset.pattern.permute.xlu0 0
    %4089 = vperm.xlu0 %4088, %v3571
    %v4090 = vpop.permute.xlu0 %4089
    %v4092 = vmul.f32 %v2950, %v3575
    %v4093 = vmul.f32 %v2955, %v3580
    %v4094 = vmul.f32 %v2960, %v3585
    %v4095 = vmul.f32 %v2965, %v3590
    %v4096 = vmul.f32 %v2970, %v3595
    %v4097 = vmul.f32 %v2975, %v3600
    %v4098 = vmul.f32 %v2980, %v3605
    %v4099 = vmul.f32 %v2985, %v3610
    %v4100 = vmul.f32 %v2990, %v3615
    %v4101 = vmul.f32 %v2995, %v3620
    %v4102 = vmul.f32 %v3000, %v3625
    %v4103 = vmul.f32 %v3005, %v3630
    %v4104 = vmul.f32 %v3010, %v3635
    %v4105 = vmul.f32 %v3015, %v3640
    %v4106 = vmul.f32 %v3020, %v3645
    %v4107 = vmul.f32 %v3025, %v3650
    %v4108 = vmul.f32 %v3030, %v3655
    %v4109 = vmul.f32 %v3035, %v3660
    %v4110 = vmul.f32 %v3040, %v3665
    %v4111 = vmul.f32 %v3045, %v3670
    %v4112 = vmul.f32 %v3050, %v3675
    %v4113 = vmul.f32 %v3055, %v3680
    %v4114 = vmul.f32 %v3060, %v3685
    %v4115 = vmul.f32 %v3065, %v3690
    %v4116 = vmul.f32 %v3070, %v3695
    %v4117 = vmul.f32 %v3075, %v3700
    %v4118 = vmul.f32 %v3080, %v3705
    %v4119 = vmul.f32 %v3085, %v3710
    %v4120 = vmul.f32 %v3090, %v3715
    %v4121 = vmul.f32 %v3095, %v3720
    %v4122 = vmul.f32 %v3100, %v3725
    %v4123 = vmul.f32 %v3105, %v3730
    %v4124 = vmul.f32 %v3110, %v3735
    %v4125 = vmul.f32 %v3115, %v3740
    %v4126 = vmul.f32 %v3120, %v3745
    %v4127 = vmul.f32 %v3125, %v3750
    %v4128 = vmul.f32 %v3130, %v3755
    %v4129 = vmul.f32 %v3135, %v3760
    %v4130 = vmul.f32 %v3140, %v3765
    %v4131 = vmul.f32 %v3145, %v3770
    %v4132 = vmul.f32 %v3150, %v3775
    %v4133 = vmul.f32 %v3155, %v3780
    %v4134 = vmul.f32 %v3160, %v3785
    %v4135 = vmul.f32 %v3165, %v3790
    %v4136 = vmul.f32 %v3170, %v3795
    %v4137 = vmul.f32 %v3175, %v3800
    %v4138 = vmul.f32 %v3180, %v3805
    %v4139 = vmul.f32 %v3185, %v3810
    %v4140 = vmul.f32 %v3190, %v3815
    %v4141 = vmul.f32 %v3195, %v3820
    %v4142 = vmul.f32 %v3200, %v3825
    %v4143 = vmul.f32 %v3205, %v3830
    %v4144 = vmul.f32 %v3210, %v3835
    %v4145 = vmul.f32 %v3215, %v3840
    %v4146 = vmul.f32 %v3220, %v3845
    %v4147 = vmul.f32 %v3225, %v3850
    %v4148 = vmul.f32 %v3230, %v3855
    %v4149 = vmul.f32 %v3235, %v3860
    %v4150 = vmul.f32 %v3240, %v3865
    %v4151 = vmul.f32 %v3245, %v3870
    %v4152 = vmul.f32 %v3250, %v3875
    %v4153 = vmul.f32 %v3255, %v3880
    %v4154 = vmul.f32 %v3260, %v3885
    %v4155 = vmul.f32 %v3265, %v3890
    %v4156 = vmul.f32 %v3270, %v3895
    %v4157 = vmul.f32 %v3275, %v3900
    %v4158 = vmul.f32 %v3280, %v3905
    %v4159 = vmul.f32 %v3285, %v3910
    %v4160 = vmul.f32 %v3290, %v3915
    %v4161 = vmul.f32 %v3295, %v3920
    %v4162 = vmul.f32 %v3300, %v3925
    %v4163 = vmul.f32 %v3305, %v3930
    %v4164 = vmul.f32 %v3310, %v3935
    %v4165 = vmul.f32 %v3315, %v3940
    %v4166 = vmul.f32 %v3320, %v3945
    %v4167 = vmul.f32 %v3325, %v3950
    %v4168 = vmul.f32 %v3330, %v3955
    %v4169 = vmul.f32 %v3335, %v3960
    %v4170 = vmul.f32 %v3340, %v3965
    %v4171 = vmul.f32 %v3345, %v3970
    %v4172 = vmul.f32 %v3350, %v3975
    %v4173 = vmul.f32 %v3355, %v3980
    %v4174 = vmul.f32 %v3360, %v3985
    %v4175 = vmul.f32 %v3365, %v3990
    %v4176 = vmul.f32 %v3370, %v3995
    %v4177 = vmul.f32 %v3375, %v4000
    %v4178 = vmul.f32 %v3380, %v4005
    %v4179 = vmul.f32 %v3385, %v4010
    %v4180 = vmul.f32 %v3390, %v4015
    %v4181 = vmul.f32 %v3395, %v4020
    %v4182 = vmul.f32 %v3400, %v4025
    %v4183 = vmul.f32 %v3405, %v4030
    %v4184 = vmul.f32 %v3410, %v4035
    %v4185 = vmul.f32 %v3415, %v4040
    %v4186 = vmul.f32 %v3420, %v4045
    %v4187 = vmul.f32 %v3425, %v4050
    %v4188 = vmul.f32 %v3430, %v4055
    %v4189 = vmul.f32 %v3435, %v4060
    %v4190 = vmul.f32 %v3440, %v4065
    %v4191 = vmul.f32 %v3445, %v4070
    %v4192 = vmul.f32 %v3450, %v4075
    %v4193 = vmul.f32 %v3455, %v4080
    %v4194 = vmul.f32 %v3460, %v4085
    %v4195 = vmul.f32 %v3465, %v4090
    %v4196 = vld [vmem:[%s7] sm:$0xff]
    %v4197 = vld [vmem:[%s7 + $0x8] sm:$0xff]
    %v4198 = vld [vmem:[%s7 + $0x10] sm:$0xff]
    %v4199 = vld [vmem:[%s7 + $0x18] sm:$0xff]
    %v4200 = vld [vmem:[%s7 + $0x20] sm:$0xff]
    %v4201 = vld [vmem:[%s7 + $0x28] sm:$0xff]
    %v4202 = vld [vmem:[%s7 + $0x30] sm:$0xff]
    %v4203 = vld [vmem:[%s7 + $0x38] sm:$0xff]
    %v4204 = vld [vmem:[%s7 + $0x40] sm:$0xff]
    %v4205 = vld [vmem:[%s7 + $0x48] sm:$0xff]
    %v4206 = vld [vmem:[%s7 + $0x50] sm:$0xff]
    %v4207 = vld [vmem:[%s7 + $0x58] sm:$0xff]
    %v4208 = vld [vmem:[%s7 + $0x60] sm:$0xff]
    %v4209 = vld [vmem:[%s7 + $0x68] sm:$0xff]
    %v4210 = vld [vmem:[%s7 + $0x70] sm:$0xff]
    %v4211 = vld [vmem:[%s7 + $0x78] sm:$0xff]
    %v4212 = vld [vmem:[%s7 + $0x80] sm:$0xff]
    %v4213 = vld [vmem:[%s7 + $0x88] sm:$0xff]
    %v4214 = vld [vmem:[%s7 + $0x90] sm:$0xff]
    %v4215 = vld [vmem:[%s7 + $0x98] sm:$0xff]
    %v4216 = vld [vmem:[%s7 + $0xa0] sm:$0xff]
    %v4217 = vld [vmem:[%s7 + $0xa8] sm:$0xff]
    %v4218 = vld [vmem:[%s7 + $0xb0] sm:$0xff]
    %v4219 = vld [vmem:[%s7 + $0xb8] sm:$0xff]
    %v4220 = vld [vmem:[%s7 + $0xc0] sm:$0xff]
    %v4221 = vld [vmem:[%s7 + $0xc8] sm:$0xff]
    %v4222 = vld [vmem:[%s7 + $0xd0] sm:$0xff]
    %v4223 = vld [vmem:[%s7 + $0xd8] sm:$0xff]
    %v4224 = vld [vmem:[%s7 + $0xe0] sm:$0xff]
    %v4225 = vld [vmem:[%s7 + $0xe8] sm:$0xff]
    %v4226 = vld [vmem:[%s7 + $0xf0] sm:$0xff]
    %v4227 = vld [vmem:[%s7 + $0xf8] sm:$0xff]
    %v4228 = vld [vmem:[%s7 + $0x100] sm:$0xff]
    %v4229 = vld [vmem:[%s7 + $0x108] sm:$0xff]
    %v4230 = vld [vmem:[%s7 + $0x110] sm:$0xff]
    %v4231 = vld [vmem:[%s7 + $0x118] sm:$0xff]
    %v4232 = vld [vmem:[%s7 + $0x120] sm:$0xff]
    %v4233 = vld [vmem:[%s7 + $0x128] sm:$0xff]
    %v4234 = vld [vmem:[%s7 + $0x130] sm:$0xff]
    %v4235 = vld [vmem:[%s7 + $0x138] sm:$0xff]
    %v4236 = vld [vmem:[%s7 + $0x140] sm:$0xff]
    %v4237 = vld [vmem:[%s7 + $0x148] sm:$0xff]
    %v4238 = vld [vmem:[%s7 + $0x150] sm:$0xff]
    %v4239 = vld [vmem:[%s7 + $0x158] sm:$0xff]
    %v4240 = vld [vmem:[%s7 + $0x160] sm:$0xff]
    %v4241 = vld [vmem:[%s7 + $0x168] sm:$0xff]
    %v4242 = vld [vmem:[%s7 + $0x170] sm:$0xff]
    %v4243 = vld [vmem:[%s7 + $0x178] sm:$0xff]
    %v4244 = vld [vmem:[%s7 + $0x180] sm:$0xff]
    %v4245 = vld [vmem:[%s7 + $0x188] sm:$0xff]
    %v4246 = vld [vmem:[%s7 + $0x190] sm:$0xff]
    %v4247 = vld [vmem:[%s7 + $0x198] sm:$0xff]
    %v4248 = vld [vmem:[%s7 + $0x1a0] sm:$0xff]
    %v4249 = vld [vmem:[%s7 + $0x1a8] sm:$0xff]
    %v4250 = vld [vmem:[%s7 + $0x1b0] sm:$0xff]
    %v4251 = vld [vmem:[%s7 + $0x1b8] sm:$0xff]
    %v4252 = vld [vmem:[%s7 + $0x1c0] sm:$0xff]
    %v4253 = vld [vmem:[%s7 + $0x1c8] sm:$0xff]
    %v4254 = vld [vmem:[%s7 + $0x1d0] sm:$0xff]
    %v4255 = vld [vmem:[%s7 + $0x1d8] sm:$0xff]
    %v4256 = vld [vmem:[%s7 + $0x1e0] sm:$0xff]
    %v4257 = vld [vmem:[%s7 + $0x1e8] sm:$0xff]
    %v4258 = vld [vmem:[%s7 + $0x1f0] sm:$0xff]
    %v4259 = vld [vmem:[%s7 + $0x1f8] sm:$0xff]
    %v4260 = vld [vmem:[%s7 + $0x200] sm:$0xff]
    %v4261 = vld [vmem:[%s7 + $0x208] sm:$0xff]
    %v4262 = vld [vmem:[%s7 + $0x210] sm:$0xff]
    %v4263 = vld [vmem:[%s7 + $0x218] sm:$0xff]
    %v4264 = vld [vmem:[%s7 + $0x220] sm:$0xff]
    %v4265 = vld [vmem:[%s7 + $0x228] sm:$0xff]
    %v4266 = vld [vmem:[%s7 + $0x230] sm:$0xff]
    %v4267 = vld [vmem:[%s7 + $0x238] sm:$0xff]
    %v4268 = vld [vmem:[%s7 + $0x240] sm:$0xff]
    %v4269 = vld [vmem:[%s7 + $0x248] sm:$0xff]
    %v4270 = vld [vmem:[%s7 + $0x250] sm:$0xff]
    %v4271 = vld [vmem:[%s7 + $0x258] sm:$0xff]
    %v4272 = vld [vmem:[%s7 + $0x260] sm:$0xff]
    %v4273 = vld [vmem:[%s7 + $0x268] sm:$0xff]
    %v4274 = vld [vmem:[%s7 + $0x270] sm:$0xff]
    %v4275 = vld [vmem:[%s7 + $0x278] sm:$0xff]
    %v4276 = vld [vmem:[%s7 + $0x280] sm:$0xff]
    %v4277 = vld [vmem:[%s7 + $0x288] sm:$0xff]
    %v4278 = vld [vmem:[%s7 + $0x290] sm:$0xff]
    %v4279 = vld [vmem:[%s7 + $0x298] sm:$0xff]
    %v4280 = vld [vmem:[%s7 + $0x2a0] sm:$0xff]
    %v4281 = vld [vmem:[%s7 + $0x2a8] sm:$0xff]
    %v4282 = vld [vmem:[%s7 + $0x2b0] sm:$0xff]
    %v4283 = vld [vmem:[%s7 + $0x2b8] sm:$0xff]
    %v4284 = vld [vmem:[%s7 + $0x2c0] sm:$0xff]
    %v4285 = vld [vmem:[%s7 + $0x2c8] sm:$0xff]
    %v4286 = vld [vmem:[%s7 + $0x2d0] sm:$0xff]
    %v4287 = vld [vmem:[%s7 + $0x2d8] sm:$0xff]
    %v4288 = vld [vmem:[%s7 + $0x2e0] sm:$0xff]
    %v4289 = vld [vmem:[%s7 + $0x2e8] sm:$0xff]
    %v4290 = vld [vmem:[%s7 + $0x2f0] sm:$0xff]
    %v4291 = vld [vmem:[%s7 + $0x2f8] sm:$0xff]
    %v4292 = vld [vmem:[%s7 + $0x300] sm:$0xff]
    %v4293 = vld [vmem:[%s7 + $0x308] sm:$0xff]
    %v4294 = vld [vmem:[%s7 + $0x310] sm:$0xff]
    %v4295 = vld [vmem:[%s7 + $0x318] sm:$0xff]
    %v4296 = vld [vmem:[%s7 + $0x320] sm:$0xff]
    %v4297 = vld [vmem:[%s7 + $0x328] sm:$0xff]
    %v4298 = vld [vmem:[%s7 + $0x330] sm:$0xff]
    %v4299 = vld [vmem:[%s7 + $0x338] sm:$0xff]
    %4301 = vset.pattern.permute.xlu0 0
    %4302 = vperm.xlu0 %4301, %v4196
    %v4303 = vpop.permute.xlu0 %4302
    %4306 = vset.pattern.permute.xlu0 0
    %4307 = vperm.xlu0 %4306, %v4197
    %v4308 = vpop.permute.xlu0 %4307
    %4311 = vset.pattern.permute.xlu0 0
    %4312 = vperm.xlu0 %4311, %v4198
    %v4313 = vpop.permute.xlu0 %4312
    %4316 = vset.pattern.permute.xlu0 0
    %4317 = vperm.xlu0 %4316, %v4199
    %v4318 = vpop.permute.xlu0 %4317
    %4321 = vset.pattern.permute.xlu0 0
    %4322 = vperm.xlu0 %4321, %v4200
    %v4323 = vpop.permute.xlu0 %4322
    %4326 = vset.pattern.permute.xlu0 0
    %4327 = vperm.xlu0 %4326, %v4201
    %v4328 = vpop.permute.xlu0 %4327
    %4331 = vset.pattern.permute.xlu0 0
    %4332 = vperm.xlu0 %4331, %v4202
    %v4333 = vpop.permute.xlu0 %4332
    %4336 = vset.pattern.permute.xlu0 0
    %4337 = vperm.xlu0 %4336, %v4203
    %v4338 = vpop.permute.xlu0 %4337
    %4341 = vset.pattern.permute.xlu0 0
    %4342 = vperm.xlu0 %4341, %v4204
    %v4343 = vpop.permute.xlu0 %4342
    %4346 = vset.pattern.permute.xlu0 0
    %4347 = vperm.xlu0 %4346, %v4205
    %v4348 = vpop.permute.xlu0 %4347
    %4351 = vset.pattern.permute.xlu0 0
    %4352 = vperm.xlu0 %4351, %v4206
    %v4353 = vpop.permute.xlu0 %4352
    %4356 = vset.pattern.permute.xlu0 0
    %4357 = vperm.xlu0 %4356, %v4207
    %v4358 = vpop.permute.xlu0 %4357
    %4361 = vset.pattern.permute.xlu0 0
    %4362 = vperm.xlu0 %4361, %v4208
    %v4363 = vpop.permute.xlu0 %4362
    %4366 = vset.pattern.permute.xlu0 0
    %4367 = vperm.xlu0 %4366, %v4209
    %v4368 = vpop.permute.xlu0 %4367
    %4371 = vset.pattern.permute.xlu0 0
    %4372 = vperm.xlu0 %4371, %v4210
    %v4373 = vpop.permute.xlu0 %4372
    %4376 = vset.pattern.permute.xlu0 0
    %4377 = vperm.xlu0 %4376, %v4211
    %v4378 = vpop.permute.xlu0 %4377
    %4381 = vset.pattern.permute.xlu0 0
    %4382 = vperm.xlu0 %4381, %v4212
    %v4383 = vpop.permute.xlu0 %4382
    %4386 = vset.pattern.permute.xlu0 0
    %4387 = vperm.xlu0 %4386, %v4213
    %v4388 = vpop.permute.xlu0 %4387
    %4391 = vset.pattern.permute.xlu0 0
    %4392 = vperm.xlu0 %4391, %v4214
    %v4393 = vpop.permute.xlu0 %4392
    %4396 = vset.pattern.permute.xlu0 0
    %4397 = vperm.xlu0 %4396, %v4215
    %v4398 = vpop.permute.xlu0 %4397
    %4401 = vset.pattern.permute.xlu0 0
    %4402 = vperm.xlu0 %4401, %v4216
    %v4403 = vpop.permute.xlu0 %4402
    %4406 = vset.pattern.permute.xlu0 0
    %4407 = vperm.xlu0 %4406, %v4217
    %v4408 = vpop.permute.xlu0 %4407
    %4411 = vset.pattern.permute.xlu0 0
    %4412 = vperm.xlu0 %4411, %v4218
    %v4413 = vpop.permute.xlu0 %4412
    %4416 = vset.pattern.permute.xlu0 0
    %4417 = vperm.xlu0 %4416, %v4219
    %v4418 = vpop.permute.xlu0 %4417
    %4421 = vset.pattern.permute.xlu0 0
    %4422 = vperm.xlu0 %4421, %v4220
    %v4423 = vpop.permute.xlu0 %4422
    %4426 = vset.pattern.permute.xlu0 0
    %4427 = vperm.xlu0 %4426, %v4221
    %v4428 = vpop.permute.xlu0 %4427
    %4431 = vset.pattern.permute.xlu0 0
    %4432 = vperm.xlu0 %4431, %v4222
    %v4433 = vpop.permute.xlu0 %4432
    %4436 = vset.pattern.permute.xlu0 0
    %4437 = vperm.xlu0 %4436, %v4223
    %v4438 = vpop.permute.xlu0 %4437
    %4441 = vset.pattern.permute.xlu0 0
    %4442 = vperm.xlu0 %4441, %v4224
    %v4443 = vpop.permute.xlu0 %4442
    %4446 = vset.pattern.permute.xlu0 0
    %4447 = vperm.xlu0 %4446, %v4225
    %v4448 = vpop.permute.xlu0 %4447
    %4451 = vset.pattern.permute.xlu0 0
    %4452 = vperm.xlu0 %4451, %v4226
    %v4453 = vpop.permute.xlu0 %4452
    %4456 = vset.pattern.permute.xlu0 0
    %4457 = vperm.xlu0 %4456, %v4227
    %v4458 = vpop.permute.xlu0 %4457
    %4461 = vset.pattern.permute.xlu0 0
    %4462 = vperm.xlu0 %4461, %v4228
    %v4463 = vpop.permute.xlu0 %4462
    %4466 = vset.pattern.permute.xlu0 0
    %4467 = vperm.xlu0 %4466, %v4229
    %v4468 = vpop.permute.xlu0 %4467
    %4471 = vset.pattern.permute.xlu0 0
    %4472 = vperm.xlu0 %4471, %v4230
    %v4473 = vpop.permute.xlu0 %4472
    %4476 = vset.pattern.permute.xlu0 0
    %4477 = vperm.xlu0 %4476, %v4231
    %v4478 = vpop.permute.xlu0 %4477
    %4481 = vset.pattern.permute.xlu0 0
    %4482 = vperm.xlu0 %4481, %v4232
    %v4483 = vpop.permute.xlu0 %4482
    %4486 = vset.pattern.permute.xlu0 0
    %4487 = vperm.xlu0 %4486, %v4233
    %v4488 = vpop.permute.xlu0 %4487
    %4491 = vset.pattern.permute.xlu0 0
    %4492 = vperm.xlu0 %4491, %v4234
    %v4493 = vpop.permute.xlu0 %4492
    %4496 = vset.pattern.permute.xlu0 0
    %4497 = vperm.xlu0 %4496, %v4235
    %v4498 = vpop.permute.xlu0 %4497
    %4501 = vset.pattern.permute.xlu0 0
    %4502 = vperm.xlu0 %4501, %v4236
    %v4503 = vpop.permute.xlu0 %4502
    %4506 = vset.pattern.permute.xlu0 0
    %4507 = vperm.xlu0 %4506, %v4237
    %v4508 = vpop.permute.xlu0 %4507
    %4511 = vset.pattern.permute.xlu0 0
    %4512 = vperm.xlu0 %4511, %v4238
    %v4513 = vpop.permute.xlu0 %4512
    %4516 = vset.pattern.permute.xlu0 0
    %4517 = vperm.xlu0 %4516, %v4239
    %v4518 = vpop.permute.xlu0 %4517
    %4521 = vset.pattern.permute.xlu0 0
    %4522 = vperm.xlu0 %4521, %v4240
    %v4523 = vpop.permute.xlu0 %4522
    %4526 = vset.pattern.permute.xlu0 0
    %4527 = vperm.xlu0 %4526, %v4241
    %v4528 = vpop.permute.xlu0 %4527
    %4531 = vset.pattern.permute.xlu0 0
    %4532 = vperm.xlu0 %4531, %v4242
    %v4533 = vpop.permute.xlu0 %4532
    %4536 = vset.pattern.permute.xlu0 0
    %4537 = vperm.xlu0 %4536, %v4243
    %v4538 = vpop.permute.xlu0 %4537
    %4541 = vset.pattern.permute.xlu0 0
    %4542 = vperm.xlu0 %4541, %v4244
    %v4543 = vpop.permute.xlu0 %4542
    %4546 = vset.pattern.permute.xlu0 0
    %4547 = vperm.xlu0 %4546, %v4245
    %v4548 = vpop.permute.xlu0 %4547
    %4551 = vset.pattern.permute.xlu0 0
    %4552 = vperm.xlu0 %4551, %v4246
    %v4553 = vpop.permute.xlu0 %4552
    %4556 = vset.pattern.permute.xlu0 0
    %4557 = vperm.xlu0 %4556, %v4247
    %v4558 = vpop.permute.xlu0 %4557
    %4561 = vset.pattern.permute.xlu0 0
    %4562 = vperm.xlu0 %4561, %v4248
    %v4563 = vpop.permute.xlu0 %4562
    %4566 = vset.pattern.permute.xlu0 0
    %4567 = vperm.xlu0 %4566, %v4249
    %v4568 = vpop.permute.xlu0 %4567
    %4571 = vset.pattern.permute.xlu0 0
    %4572 = vperm.xlu0 %4571, %v4250
    %v4573 = vpop.permute.xlu0 %4572
    %4576 = vset.pattern.permute.xlu0 0
    %4577 = vperm.xlu0 %4576, %v4251
    %v4578 = vpop.permute.xlu0 %4577
    %4581 = vset.pattern.permute.xlu0 0
    %4582 = vperm.xlu0 %4581, %v4252
    %v4583 = vpop.permute.xlu0 %4582
    %4586 = vset.pattern.permute.xlu0 0
    %4587 = vperm.xlu0 %4586, %v4253
    %v4588 = vpop.permute.xlu0 %4587
    %4591 = vset.pattern.permute.xlu0 0
    %4592 = vperm.xlu0 %4591, %v4254
    %v4593 = vpop.permute.xlu0 %4592
    %4596 = vset.pattern.permute.xlu0 0
    %4597 = vperm.xlu0 %4596, %v4255
    %v4598 = vpop.permute.xlu0 %4597
    %4601 = vset.pattern.permute.xlu0 0
    %4602 = vperm.xlu0 %4601, %v4256
    %v4603 = vpop.permute.xlu0 %4602
    %4606 = vset.pattern.permute.xlu0 0
    %4607 = vperm.xlu0 %4606, %v4257
    %v4608 = vpop.permute.xlu0 %4607
    %4611 = vset.pattern.permute.xlu0 0
    %4612 = vperm.xlu0 %4611, %v4258
    %v4613 = vpop.permute.xlu0 %4612
    %4616 = vset.pattern.permute.xlu0 0
    %4617 = vperm.xlu0 %4616, %v4259
    %v4618 = vpop.permute.xlu0 %4617
    %4621 = vset.pattern.permute.xlu0 0
    %4622 = vperm.xlu0 %4621, %v4260
    %v4623 = vpop.permute.xlu0 %4622
    %4626 = vset.pattern.permute.xlu0 0
    %4627 = vperm.xlu0 %4626, %v4261
    %v4628 = vpop.permute.xlu0 %4627
    %4631 = vset.pattern.permute.xlu0 0
    %4632 = vperm.xlu0 %4631, %v4262
    %v4633 = vpop.permute.xlu0 %4632
    %4636 = vset.pattern.permute.xlu0 0
    %4637 = vperm.xlu0 %4636, %v4263
    %v4638 = vpop.permute.xlu0 %4637
    %4641 = vset.pattern.permute.xlu0 0
    %4642 = vperm.xlu0 %4641, %v4264
    %v4643 = vpop.permute.xlu0 %4642
    %4646 = vset.pattern.permute.xlu0 0
    %4647 = vperm.xlu0 %4646, %v4265
    %v4648 = vpop.permute.xlu0 %4647
    %4651 = vset.pattern.permute.xlu0 0
    %4652 = vperm.xlu0 %4651, %v4266
    %v4653 = vpop.permute.xlu0 %4652
    %4656 = vset.pattern.permute.xlu0 0
    %4657 = vperm.xlu0 %4656, %v4267
    %v4658 = vpop.permute.xlu0 %4657
    %4661 = vset.pattern.permute.xlu0 0
    %4662 = vperm.xlu0 %4661, %v4268
    %v4663 = vpop.permute.xlu0 %4662
    %4666 = vset.pattern.permute.xlu0 0
    %4667 = vperm.xlu0 %4666, %v4269
    %v4668 = vpop.permute.xlu0 %4667
    %4671 = vset.pattern.permute.xlu0 0
    %4672 = vperm.xlu0 %4671, %v4270
    %v4673 = vpop.permute.xlu0 %4672
    %4676 = vset.pattern.permute.xlu0 0
    %4677 = vperm.xlu0 %4676, %v4271
    %v4678 = vpop.permute.xlu0 %4677
    %4681 = vset.pattern.permute.xlu0 0
    %4682 = vperm.xlu0 %4681, %v4272
    %v4683 = vpop.permute.xlu0 %4682
    %4686 = vset.pattern.permute.xlu0 0
    %4687 = vperm.xlu0 %4686, %v4273
    %v4688 = vpop.permute.xlu0 %4687
    %4691 = vset.pattern.permute.xlu0 0
    %4692 = vperm.xlu0 %4691, %v4274
    %v4693 = vpop.permute.xlu0 %4692
    %4696 = vset.pattern.permute.xlu0 0
    %4697 = vperm.xlu0 %4696, %v4275
    %v4698 = vpop.permute.xlu0 %4697
    %4701 = vset.pattern.permute.xlu0 0
    %4702 = vperm.xlu0 %4701, %v4276
    %v4703 = vpop.permute.xlu0 %4702
    %4706 = vset.pattern.permute.xlu0 0
    %4707 = vperm.xlu0 %4706, %v4277
    %v4708 = vpop.permute.xlu0 %4707
    %4711 = vset.pattern.permute.xlu0 0
    %4712 = vperm.xlu0 %4711, %v4278
    %v4713 = vpop.permute.xlu0 %4712
    %4716 = vset.pattern.permute.xlu0 0
    %4717 = vperm.xlu0 %4716, %v4279
    %v4718 = vpop.permute.xlu0 %4717
    %4721 = vset.pattern.permute.xlu0 0
    %4722 = vperm.xlu0 %4721, %v4280
    %v4723 = vpop.permute.xlu0 %4722
    %4726 = vset.pattern.permute.xlu0 0
    %4727 = vperm.xlu0 %4726, %v4281
    %v4728 = vpop.permute.xlu0 %4727
    %4731 = vset.pattern.permute.xlu0 0
    %4732 = vperm.xlu0 %4731, %v4282
    %v4733 = vpop.permute.xlu0 %4732
    %4736 = vset.pattern.permute.xlu0 0
    %4737 = vperm.xlu0 %4736, %v4283
    %v4738 = vpop.permute.xlu0 %4737
    %4741 = vset.pattern.permute.xlu0 0
    %4742 = vperm.xlu0 %4741, %v4284
    %v4743 = vpop.permute.xlu0 %4742
    %4746 = vset.pattern.permute.xlu0 0
    %4747 = vperm.xlu0 %4746, %v4285
    %v4748 = vpop.permute.xlu0 %4747
    %4751 = vset.pattern.permute.xlu0 0
    %4752 = vperm.xlu0 %4751, %v4286
    %v4753 = vpop.permute.xlu0 %4752
    %4756 = vset.pattern.permute.xlu0 0
    %4757 = vperm.xlu0 %4756, %v4287
    %v4758 = vpop.permute.xlu0 %4757
    %4761 = vset.pattern.permute.xlu0 0
    %4762 = vperm.xlu0 %4761, %v4288
    %v4763 = vpop.permute.xlu0 %4762
    %4766 = vset.pattern.permute.xlu0 0
    %4767 = vperm.xlu0 %4766, %v4289
    %v4768 = vpop.permute.xlu0 %4767
    %4771 = vset.pattern.permute.xlu0 0
    %4772 = vperm.xlu0 %4771, %v4290
    %v4773 = vpop.permute.xlu0 %4772
    %4776 = vset.pattern.permute.xlu0 0
    %4777 = vperm.xlu0 %4776, %v4291
    %v4778 = vpop.permute.xlu0 %4777
    %4781 = vset.pattern.permute.xlu0 0
    %4782 = vperm.xlu0 %4781, %v4292
    %v4783 = vpop.permute.xlu0 %4782
    %4786 = vset.pattern.permute.xlu0 0
    %4787 = vperm.xlu0 %4786, %v4293
    %v4788 = vpop.permute.xlu0 %4787
    %4791 = vset.pattern.permute.xlu0 0
    %4792 = vperm.xlu0 %4791, %v4294
    %v4793 = vpop.permute.xlu0 %4792
    %4796 = vset.pattern.permute.xlu0 0
    %4797 = vperm.xlu0 %4796, %v4295
    %v4798 = vpop.permute.xlu0 %4797
    %4801 = vset.pattern.permute.xlu0 0
    %4802 = vperm.xlu0 %4801, %v4296
    %v4803 = vpop.permute.xlu0 %4802
    %4806 = vset.pattern.permute.xlu0 0
    %4807 = vperm.xlu0 %4806, %v4297
    %v4808 = vpop.permute.xlu0 %4807
    %4811 = vset.pattern.permute.xlu0 0
    %4812 = vperm.xlu0 %4811, %v4298
    %v4813 = vpop.permute.xlu0 %4812
    %4816 = vset.pattern.permute.xlu0 0
    %4817 = vperm.xlu0 %4816, %v4299
    %v4818 = vpop.permute.xlu0 %4817
    %v4820 = vadd.f32 %v4092, %v4303
    %v4821 = vadd.f32 %v4093, %v4308
    %v4822 = vadd.f32 %v4094, %v4313
    %v4823 = vadd.f32 %v4095, %v4318
    %v4824 = vadd.f32 %v4096, %v4323
    %v4825 = vadd.f32 %v4097, %v4328
    %v4826 = vadd.f32 %v4098, %v4333
    %v4827 = vadd.f32 %v4099, %v4338
    %v4828 = vadd.f32 %v4100, %v4343
    %v4829 = vadd.f32 %v4101, %v4348
    %v4830 = vadd.f32 %v4102, %v4353
    %v4831 = vadd.f32 %v4103, %v4358
    %v4832 = vadd.f32 %v4104, %v4363
    %v4833 = vadd.f32 %v4105, %v4368
    %v4834 = vadd.f32 %v4106, %v4373
    %v4835 = vadd.f32 %v4107, %v4378
    %v4836 = vadd.f32 %v4108, %v4383
    %v4837 = vadd.f32 %v4109, %v4388
    %v4838 = vadd.f32 %v4110, %v4393
    %v4839 = vadd.f32 %v4111, %v4398
    %v4840 = vadd.f32 %v4112, %v4403
    %v4841 = vadd.f32 %v4113, %v4408
    %v4842 = vadd.f32 %v4114, %v4413
    %v4843 = vadd.f32 %v4115, %v4418
    %v4844 = vadd.f32 %v4116, %v4423
    %v4845 = vadd.f32 %v4117, %v4428
    %v4846 = vadd.f32 %v4118, %v4433
    %v4847 = vadd.f32 %v4119, %v4438
    %v4848 = vadd.f32 %v4120, %v4443
    %v4849 = vadd.f32 %v4121, %v4448
    %v4850 = vadd.f32 %v4122, %v4453
    %v4851 = vadd.f32 %v4123, %v4458
    %v4852 = vadd.f32 %v4124, %v4463
    %v4853 = vadd.f32 %v4125, %v4468
    %v4854 = vadd.f32 %v4126, %v4473
    %v4855 = vadd.f32 %v4127, %v4478
    %v4856 = vadd.f32 %v4128, %v4483
    %v4857 = vadd.f32 %v4129, %v4488
    %v4858 = vadd.f32 %v4130, %v4493
    %v4859 = vadd.f32 %v4131, %v4498
    %v4860 = vadd.f32 %v4132, %v4503
    %v4861 = vadd.f32 %v4133, %v4508
    %v4862 = vadd.f32 %v4134, %v4513
    %v4863 = vadd.f32 %v4135, %v4518
    %v4864 = vadd.f32 %v4136, %v4523
    %v4865 = vadd.f32 %v4137, %v4528
    %v4866 = vadd.f32 %v4138, %v4533
    %v4867 = vadd.f32 %v4139, %v4538
    %v4868 = vadd.f32 %v4140, %v4543
    %v4869 = vadd.f32 %v4141, %v4548
    %v4870 = vadd.f32 %v4142, %v4553
    %v4871 = vadd.f32 %v4143, %v4558
    %v4872 = vadd.f32 %v4144, %v4563
    %v4873 = vadd.f32 %v4145, %v4568
    %v4874 = vadd.f32 %v4146, %v4573
    %v4875 = vadd.f32 %v4147, %v4578
    %v4876 = vadd.f32 %v4148, %v4583
    %v4877 = vadd.f32 %v4149, %v4588
    %v4878 = vadd.f32 %v4150, %v4593
    %v4879 = vadd.f32 %v4151, %v4598
    %v4880 = vadd.f32 %v4152, %v4603
    %v4881 = vadd.f32 %v4153, %v4608
    %v4882 = vadd.f32 %v4154, %v4613
    %v4883 = vadd.f32 %v4155, %v4618
    %v4884 = vadd.f32 %v4156, %v4623
    %v4885 = vadd.f32 %v4157, %v4628
    %v4886 = vadd.f32 %v4158, %v4633
    %v4887 = vadd.f32 %v4159, %v4638
    %v4888 = vadd.f32 %v4160, %v4643
    %v4889 = vadd.f32 %v4161, %v4648
    %v4890 = vadd.f32 %v4162, %v4653
    %v4891 = vadd.f32 %v4163, %v4658
    %v4892 = vadd.f32 %v4164, %v4663
    %v4893 = vadd.f32 %v4165, %v4668
    %v4894 = vadd.f32 %v4166, %v4673
    %v4895 = vadd.f32 %v4167, %v4678
    %v4896 = vadd.f32 %v4168, %v4683
    %v4897 = vadd.f32 %v4169, %v4688
    %v4898 = vadd.f32 %v4170, %v4693
    %v4899 = vadd.f32 %v4171, %v4698
    %v4900 = vadd.f32 %v4172, %v4703
    %v4901 = vadd.f32 %v4173, %v4708
    %v4902 = vadd.f32 %v4174, %v4713
    %v4903 = vadd.f32 %v4175, %v4718
    %v4904 = vadd.f32 %v4176, %v4723
    %v4905 = vadd.f32 %v4177, %v4728
    %v4906 = vadd.f32 %v4178, %v4733
    %v4907 = vadd.f32 %v4179, %v4738
    %v4908 = vadd.f32 %v4180, %v4743
    %v4909 = vadd.f32 %v4181, %v4748
    %v4910 = vadd.f32 %v4182, %v4753
    %v4911 = vadd.f32 %v4183, %v4758
    %v4912 = vadd.f32 %v4184, %v4763
    %v4913 = vadd.f32 %v4185, %v4768
    %v4914 = vadd.f32 %v4186, %v4773
    %v4915 = vadd.f32 %v4187, %v4778
    %v4916 = vadd.f32 %v4188, %v4783
    %v4917 = vadd.f32 %v4189, %v4788
    %v4918 = vadd.f32 %v4190, %v4793
    %v4919 = vadd.f32 %v4191, %v4798
    %v4920 = vadd.f32 %v4192, %v4803
    %v4921 = vadd.f32 %v4193, %v4808
    %v4922 = vadd.f32 %v4194, %v4813
    %v4923 = vadd.f32 %v4195, %v4818
    %vm4924 = vcmp.gt.f32.partialorder %v4820, 0.0
    %vm4925 = vcmp.gt.f32.partialorder %v4821, 0.0
    %vm4926 = vcmp.gt.f32.partialorder %v4822, 0.0
    %vm4927 = vcmp.gt.f32.partialorder %v4823, 0.0
    %vm4928 = vcmp.gt.f32.partialorder %v4824, 0.0
    %vm4929 = vcmp.gt.f32.partialorder %v4825, 0.0
    %vm4930 = vcmp.gt.f32.partialorder %v4826, 0.0
    %vm4931 = vcmp.gt.f32.partialorder %v4827, 0.0
    %vm4932 = vcmp.gt.f32.partialorder %v4828, 0.0
    %vm4933 = vcmp.gt.f32.partialorder %v4829, 0.0
    %vm4934 = vcmp.gt.f32.partialorder %v4830, 0.0
    %vm4935 = vcmp.gt.f32.partialorder %v4831, 0.0
    %vm4936 = vcmp.gt.f32.partialorder %v4832, 0.0
    %vm4937 = vcmp.gt.f32.partialorder %v4833, 0.0
    %vm4938 = vcmp.gt.f32.partialorder %v4834, 0.0
    %vm4939 = vcmp.gt.f32.partialorder %v4835, 0.0
    %vm4940 = vcmp.gt.f32.partialorder %v4836, 0.0
    %vm4941 = vcmp.gt.f32.partialorder %v4837, 0.0
    %vm4942 = vcmp.gt.f32.partialorder %v4838, 0.0
    %vm4943 = vcmp.gt.f32.partialorder %v4839, 0.0
    %vm4944 = vcmp.gt.f32.partialorder %v4840, 0.0
    %vm4945 = vcmp.gt.f32.partialorder %v4841, 0.0
    %vm4946 = vcmp.gt.f32.partialorder %v4842, 0.0
    %vm4947 = vcmp.gt.f32.partialorder %v4843, 0.0
    %vm4948 = vcmp.gt.f32.partialorder %v4844, 0.0
    %vm4949 = vcmp.gt.f32.partialorder %v4845, 0.0
    %vm4950 = vcmp.gt.f32.partialorder %v4846, 0.0
    %vm4951 = vcmp.gt.f32.partialorder %v4847, 0.0
    %vm4952 = vcmp.gt.f32.partialorder %v4848, 0.0
    %vm4953 = vcmp.gt.f32.partialorder %v4849, 0.0
    %vm4954 = vcmp.gt.f32.partialorder %v4850, 0.0
    %vm4955 = vcmp.gt.f32.partialorder %v4851, 0.0
    %vm4956 = vcmp.gt.f32.partialorder %v4852, 0.0
    %vm4957 = vcmp.gt.f32.partialorder %v4853, 0.0
    %vm4958 = vcmp.gt.f32.partialorder %v4854, 0.0
    %vm4959 = vcmp.gt.f32.partialorder %v4855, 0.0
    %vm4960 = vcmp.gt.f32.partialorder %v4856, 0.0
    %vm4961 = vcmp.gt.f32.partialorder %v4857, 0.0
    %vm4962 = vcmp.gt.f32.partialorder %v4858, 0.0
    %vm4963 = vcmp.gt.f32.partialorder %v4859, 0.0
    %vm4964 = vcmp.gt.f32.partialorder %v4860, 0.0
    %vm4965 = vcmp.gt.f32.partialorder %v4861, 0.0
    %vm4966 = vcmp.gt.f32.partialorder %v4862, 0.0
    %vm4967 = vcmp.gt.f32.partialorder %v4863, 0.0
    %vm4968 = vcmp.gt.f32.partialorder %v4864, 0.0
    %vm4969 = vcmp.gt.f32.partialorder %v4865, 0.0
    %vm4970 = vcmp.gt.f32.partialorder %v4866, 0.0
    %vm4971 = vcmp.gt.f32.partialorder %v4867, 0.0
    %vm4972 = vcmp.gt.f32.partialorder %v4868, 0.0
    %vm4973 = vcmp.gt.f32.partialorder %v4869, 0.0
    %vm4974 = vcmp.gt.f32.partialorder %v4870, 0.0
    %vm4975 = vcmp.gt.f32.partialorder %v4871, 0.0
    %vm4976 = vcmp.gt.f32.partialorder %v4872, 0.0
    %vm4977 = vcmp.gt.f32.partialorder %v4873, 0.0
    %vm4978 = vcmp.gt.f32.partialorder %v4874, 0.0
    %vm4979 = vcmp.gt.f32.partialorder %v4875, 0.0
    %vm4980 = vcmp.gt.f32.partialorder %v4876, 0.0
    %vm4981 = vcmp.gt.f32.partialorder %v4877, 0.0
    %vm4982 = vcmp.gt.f32.partialorder %v4878, 0.0
    %vm4983 = vcmp.gt.f32.partialorder %v4879, 0.0
    %vm4984 = vcmp.gt.f32.partialorder %v4880, 0.0
    %vm4985 = vcmp.gt.f32.partialorder %v4881, 0.0
    %vm4986 = vcmp.gt.f32.partialorder %v4882, 0.0
    %vm4987 = vcmp.gt.f32.partialorder %v4883, 0.0
    %vm4988 = vcmp.gt.f32.partialorder %v4884, 0.0
    %vm4989 = vcmp.gt.f32.partialorder %v4885, 0.0
    %vm4990 = vcmp.gt.f32.partialorder %v4886, 0.0
    %vm4991 = vcmp.gt.f32.partialorder %v4887, 0.0
    %vm4992 = vcmp.gt.f32.partialorder %v4888, 0.0
    %vm4993 = vcmp.gt.f32.partialorder %v4889, 0.0
    %vm4994 = vcmp.gt.f32.partialorder %v4890, 0.0
    %vm4995 = vcmp.gt.f32.partialorder %v4891, 0.0
    %vm4996 = vcmp.gt.f32.partialorder %v4892, 0.0
    %vm4997 = vcmp.gt.f32.partialorder %v4893, 0.0
    %vm4998 = vcmp.gt.f32.partialorder %v4894, 0.0
    %vm4999 = vcmp.gt.f32.partialorder %v4895, 0.0
    %vm5000 = vcmp.gt.f32.partialorder %v4896, 0.0
    %vm5001 = vcmp.gt.f32.partialorder %v4897, 0.0
    %vm5002 = vcmp.gt.f32.partialorder %v4898, 0.0
    %vm5003 = vcmp.gt.f32.partialorder %v4899, 0.0
    %vm5004 = vcmp.gt.f32.partialorder %v4900, 0.0
    %vm5005 = vcmp.gt.f32.partialorder %v4901, 0.0
    %vm5006 = vcmp.gt.f32.partialorder %v4902, 0.0
    %vm5007 = vcmp.gt.f32.partialorder %v4903, 0.0
    %vm5008 = vcmp.gt.f32.partialorder %v4904, 0.0
    %vm5009 = vcmp.gt.f32.partialorder %v4905, 0.0
    %vm5010 = vcmp.gt.f32.partialorder %v4906, 0.0
    %vm5011 = vcmp.gt.f32.partialorder %v4907, 0.0
    %vm5012 = vcmp.gt.f32.partialorder %v4908, 0.0
    %vm5013 = vcmp.gt.f32.partialorder %v4909, 0.0
    %vm5014 = vcmp.gt.f32.partialorder %v4910, 0.0
    %vm5015 = vcmp.gt.f32.partialorder %v4911, 0.0
    %vm5016 = vcmp.gt.f32.partialorder %v4912, 0.0
    %vm5017 = vcmp.gt.f32.partialorder %v4913, 0.0
    %vm5018 = vcmp.gt.f32.partialorder %v4914, 0.0
    %vm5019 = vcmp.gt.f32.partialorder %v4915, 0.0
    %vm5020 = vcmp.gt.f32.partialorder %v4916, 0.0
    %vm5021 = vcmp.gt.f32.partialorder %v4917, 0.0
    %vm5022 = vcmp.gt.f32.partialorder %v4918, 0.0
    %vm5023 = vcmp.gt.f32.partialorder %v4919, 0.0
    %vm5024 = vcmp.gt.f32.partialorder %v4920, 0.0
    %vm5025 = vcmp.gt.f32.partialorder %v4921, 0.0
    %vm5026 = vcmp.gt.f32.partialorder %v4922, 0.0
    %vm5027 = vcmp.gt.f32.partialorder %v4923, 0.0
    %v5028 = vmul.f32 %v4820, 0.01
    %v5029 = vmul.f32 %v4821, 0.01
    %v5030 = vmul.f32 %v4822, 0.01
    %v5031 = vmul.f32 %v4823, 0.01
    %v5032 = vmul.f32 %v4824, 0.01
    %v5033 = vmul.f32 %v4825, 0.01
    %v5034 = vmul.f32 %v4826, 0.01
    %v5035 = vmul.f32 %v4827, 0.01
    %v5036 = vmul.f32 %v4828, 0.01
    %v5037 = vmul.f32 %v4829, 0.01
    %v5038 = vmul.f32 %v4830, 0.01
    %v5039 = vmul.f32 %v4831, 0.01
    %v5040 = vmul.f32 %v4832, 0.01
    %v5041 = vmul.f32 %v4833, 0.01
    %v5042 = vmul.f32 %v4834, 0.01
    %v5043 = vmul.f32 %v4835, 0.01
    %v5044 = vmul.f32 %v4836, 0.01
    %v5045 = vmul.f32 %v4837, 0.01
    %v5046 = vmul.f32 %v4838, 0.01
    %v5047 = vmul.f32 %v4839, 0.01
    %v5048 = vmul.f32 %v4840, 0.01
    %v5049 = vmul.f32 %v4841, 0.01
    %v5050 = vmul.f32 %v4842, 0.01
    %v5051 = vmul.f32 %v4843, 0.01
    %v5052 = vmul.f32 %v4844, 0.01
    %v5053 = vmul.f32 %v4845, 0.01
    %v5054 = vmul.f32 %v4846, 0.01
    %v5055 = vmul.f32 %v4847, 0.01
    %v5056 = vmul.f32 %v4848, 0.01
    %v5057 = vmul.f32 %v4849, 0.01
    %v5058 = vmul.f32 %v4850, 0.01
    %v5059 = vmul.f32 %v4851, 0.01
    %v5060 = vmul.f32 %v4852, 0.01
    %v5061 = vmul.f32 %v4853, 0.01
    %v5062 = vmul.f32 %v4854, 0.01
    %v5063 = vmul.f32 %v4855, 0.01
    %v5064 = vmul.f32 %v4856, 0.01
    %v5065 = vmul.f32 %v4857, 0.01
    %v5066 = vmul.f32 %v4858, 0.01
    %v5067 = vmul.f32 %v4859, 0.01
    %v5068 = vmul.f32 %v4860, 0.01
    %v5069 = vmul.f32 %v4861, 0.01
    %v5070 = vmul.f32 %v4862, 0.01
    %v5071 = vmul.f32 %v4863, 0.01
    %v5072 = vmul.f32 %v4864, 0.01
    %v5073 = vmul.f32 %v4865, 0.01
    %v5074 = vmul.f32 %v4866, 0.01
    %v5075 = vmul.f32 %v4867, 0.01
    %v5076 = vmul.f32 %v4868, 0.01
    %v5077 = vmul.f32 %v4869, 0.01
    %v5078 = vmul.f32 %v4870, 0.01
    %v5079 = vmul.f32 %v4871, 0.01
    %v5080 = vmul.f32 %v4872, 0.01
    %v5081 = vmul.f32 %v4873, 0.01
    %v5082 = vmul.f32 %v4874, 0.01
    %v5083 = vmul.f32 %v4875, 0.01
    %v5084 = vmul.f32 %v4876, 0.01
    %v5085 = vmul.f32 %v4877, 0.01
    %v5086 = vmul.f32 %v4878, 0.01
    %v5087 = vmul.f32 %v4879, 0.01
    %v5088 = vmul.f32 %v4880, 0.01
    %v5089 = vmul.f32 %v4881, 0.01
    %v5090 = vmul.f32 %v4882, 0.01
    %v5091 = vmul.f32 %v4883, 0.01
    %v5092 = vmul.f32 %v4884, 0.01
    %v5093 = vmul.f32 %v4885, 0.01
    %v5094 = vmul.f32 %v4886, 0.01
    %v5095 = vmul.f32 %v4887, 0.01
    %v5096 = vmul.f32 %v4888, 0.01
    %v5097 = vmul.f32 %v4889, 0.01
    %v5098 = vmul.f32 %v4890, 0.01
    %v5099 = vmul.f32 %v4891, 0.01
    %v5100 = vmul.f32 %v4892, 0.01
    %v5101 = vmul.f32 %v4893, 0.01
    %v5102 = vmul.f32 %v4894, 0.01
    %v5103 = vmul.f32 %v4895, 0.01
    %v5104 = vmul.f32 %v4896, 0.01
    %v5105 = vmul.f32 %v4897, 0.01
    %v5106 = vmul.f32 %v4898, 0.01
    %v5107 = vmul.f32 %v4899, 0.01
    %v5108 = vmul.f32 %v4900, 0.01
    %v5109 = vmul.f32 %v4901, 0.01
    %v5110 = vmul.f32 %v4902, 0.01
    %v5111 = vmul.f32 %v4903, 0.01
    %v5112 = vmul.f32 %v4904, 0.01
    %v5113 = vmul.f32 %v4905, 0.01
    %v5114 = vmul.f32 %v4906, 0.01
    %v5115 = vmul.f32 %v4907, 0.01
    %v5116 = vmul.f32 %v4908, 0.01
    %v5117 = vmul.f32 %v4909, 0.01
    %v5118 = vmul.f32 %v4910, 0.01
    %v5119 = vmul.f32 %v4911, 0.01
    %v5120 = vmul.f32 %v4912, 0.01
    %v5121 = vmul.f32 %v4913, 0.01
    %v5122 = vmul.f32 %v4914, 0.01
    %v5123 = vmul.f32 %v4915, 0.01
    %v5124 = vmul.f32 %v4916, 0.01
    %v5125 = vmul.f32 %v4917, 0.01
    %v5126 = vmul.f32 %v4918, 0.01
    %v5127 = vmul.f32 %v4919, 0.01
    %v5128 = vmul.f32 %v4920, 0.01
    %v5129 = vmul.f32 %v4921, 0.01
    %v5130 = vmul.f32 %v4922, 0.01
    %v5131 = vmul.f32 %v4923, 0.01
    %v5132 = vsel %vm4924, %v4820, %v5028
    %v5133 = vsel %vm4925, %v4821, %v5029
    %v5134 = vsel %vm4926, %v4822, %v5030
    %v5135 = vsel %vm4927, %v4823, %v5031
    %v5136 = vsel %vm4928, %v4824, %v5032
    %v5137 = vsel %vm4929, %v4825, %v5033
    %v5138 = vsel %vm4930, %v4826, %v5034
    %v5139 = vsel %vm4931, %v4827, %v5035
    %v5140 = vsel %vm4932, %v4828, %v5036
    %v5141 = vsel %vm4933, %v4829, %v5037
    %v5142 = vsel %vm4934, %v4830, %v5038
    %v5143 = vsel %vm4935, %v4831, %v5039
    %v5144 = vsel %vm4936, %v4832, %v5040
    %v5145 = vsel %vm4937, %v4833, %v5041
    %v5146 = vsel %vm4938, %v4834, %v5042
    %v5147 = vsel %vm4939, %v4835, %v5043
    %v5148 = vsel %vm4940, %v4836, %v5044
    %v5149 = vsel %vm4941, %v4837, %v5045
    %v5150 = vsel %vm4942, %v4838, %v5046
    %v5151 = vsel %vm4943, %v4839, %v5047
    %v5152 = vsel %vm4944, %v4840, %v5048
    %v5153 = vsel %vm4945, %v4841, %v5049
    %v5154 = vsel %vm4946, %v4842, %v5050
    %v5155 = vsel %vm4947, %v4843, %v5051
    %v5156 = vsel %vm4948, %v4844, %v5052
    %v5157 = vsel %vm4949, %v4845, %v5053
    %v5158 = vsel %vm4950, %v4846, %v5054
    %v5159 = vsel %vm4951, %v4847, %v5055
    %v5160 = vsel %vm4952, %v4848, %v5056
    %v5161 = vsel %vm4953, %v4849, %v5057
    %v5162 = vsel %vm4954, %v4850, %v5058
    %v5163 = vsel %vm4955, %v4851, %v5059
    %v5164 = vsel %vm4956, %v4852, %v5060
    %v5165 = vsel %vm4957, %v4853, %v5061
    %v5166 = vsel %vm4958, %v4854, %v5062
    %v5167 = vsel %vm4959, %v4855, %v5063
    %v5168 = vsel %vm4960, %v4856, %v5064
    %v5169 = vsel %vm4961, %v4857, %v5065
    %v5170 = vsel %vm4962, %v4858, %v5066
    %v5171 = vsel %vm4963, %v4859, %v5067
    %v5172 = vsel %vm4964, %v4860, %v5068
    %v5173 = vsel %vm4965, %v4861, %v5069
    %v5174 = vsel %vm4966, %v4862, %v5070
    %v5175 = vsel %vm4967, %v4863, %v5071
    %v5176 = vsel %vm4968, %v4864, %v5072
    %v5177 = vsel %vm4969, %v4865, %v5073
    %v5178 = vsel %vm4970, %v4866, %v5074
    %v5179 = vsel %vm4971, %v4867, %v5075
    %v5180 = vsel %vm4972, %v4868, %v5076
    %v5181 = vsel %vm4973, %v4869, %v5077
    %v5182 = vsel %vm4974, %v4870, %v5078
    %v5183 = vsel %vm4975, %v4871, %v5079
    %v5184 = vsel %vm4976, %v4872, %v5080
    %v5185 = vsel %vm4977, %v4873, %v5081
    %v5186 = vsel %vm4978, %v4874, %v5082
    %v5187 = vsel %vm4979, %v4875, %v5083
    %v5188 = vsel %vm4980, %v4876, %v5084
    %v5189 = vsel %vm4981, %v4877, %v5085
    %v5190 = vsel %vm4982, %v4878, %v5086
    %v5191 = vsel %vm4983, %v4879, %v5087
    %v5192 = vsel %vm4984, %v4880, %v5088
    %v5193 = vsel %vm4985, %v4881, %v5089
    %v5194 = vsel %vm4986, %v4882, %v5090
    %v5195 = vsel %vm4987, %v4883, %v5091
    %v5196 = vsel %vm4988, %v4884, %v5092
    %v5197 = vsel %vm4989, %v4885, %v5093
    %v5198 = vsel %vm4990, %v4886, %v5094
    %v5199 = vsel %vm4991, %v4887, %v5095
    %v5200 = vsel %vm4992, %v4888, %v5096
    %v5201 = vsel %vm4993, %v4889, %v5097
    %v5202 = vsel %vm4994, %v4890, %v5098
    %v5203 = vsel %vm4995, %v4891, %v5099
    %v5204 = vsel %vm4996, %v4892, %v5100
    %v5205 = vsel %vm4997, %v4893, %v5101
    %v5206 = vsel %vm4998, %v4894, %v5102
    %v5207 = vsel %vm4999, %v4895, %v5103
    %v5208 = vsel %vm5000, %v4896, %v5104
    %v5209 = vsel %vm5001, %v4897, %v5105
    %v5210 = vsel %vm5002, %v4898, %v5106
    %v5211 = vsel %vm5003, %v4899, %v5107
    %v5212 = vsel %vm5004, %v4900, %v5108
    %v5213 = vsel %vm5005, %v4901, %v5109
    %v5214 = vsel %vm5006, %v4902, %v5110
    %v5215 = vsel %vm5007, %v4903, %v5111
    %v5216 = vsel %vm5008, %v4904, %v5112
    %v5217 = vsel %vm5009, %v4905, %v5113
    %v5218 = vsel %vm5010, %v4906, %v5114
    %v5219 = vsel %vm5011, %v4907, %v5115
    %v5220 = vsel %vm5012, %v4908, %v5116
    %v5221 = vsel %vm5013, %v4909, %v5117
    %v5222 = vsel %vm5014, %v4910, %v5118
    %v5223 = vsel %vm5015, %v4911, %v5119
    %v5224 = vsel %vm5016, %v4912, %v5120
    %v5225 = vsel %vm5017, %v4913, %v5121
    %v5226 = vsel %vm5018, %v4914, %v5122
    %v5227 = vsel %vm5019, %v4915, %v5123
    %v5228 = vsel %vm5020, %v4916, %v5124
    %v5229 = vsel %vm5021, %v4917, %v5125
    %v5230 = vsel %vm5022, %v4918, %v5126
    %v5231 = vsel %vm5023, %v4919, %v5127
    %v5232 = vsel %vm5024, %v4920, %v5128
    %v5233 = vsel %vm5025, %v4921, %v5129
    %v5234 = vsel %vm5026, %v4922, %v5130
    %v5235 = vsel %vm5027, %v4923, %v5131
    %v5236 = vld [vmem:[%s8] sm:$0xff]
    %v5237 = vld [vmem:[%s8 + $0x8] sm:$0xff]
    %v5238 = vld [vmem:[%s8 + $0x10] sm:$0xff]
    %v5239 = vld [vmem:[%s8 + $0x18] sm:$0xff]
    %v5240 = vld [vmem:[%s8 + $0x20] sm:$0xff]
    %v5241 = vld [vmem:[%s8 + $0x28] sm:$0xff]
    %v5242 = vld [vmem:[%s8 + $0x30] sm:$0xff]
    %v5243 = vld [vmem:[%s8 + $0x38] sm:$0xff]
    %v5244 = vld [vmem:[%s8 + $0x40] sm:$0xff]
    %v5245 = vld [vmem:[%s8 + $0x48] sm:$0xff]
    %v5246 = vld [vmem:[%s8 + $0x50] sm:$0xff]
    %v5247 = vld [vmem:[%s8 + $0x58] sm:$0xff]
    %v5248 = vld [vmem:[%s8 + $0x60] sm:$0xff]
    %v5249 = vld [vmem:[%s8 + $0x68] sm:$0xff]
    %v5250 = vld [vmem:[%s8 + $0x70] sm:$0xff]
    %v5251 = vld [vmem:[%s8 + $0x78] sm:$0xff]
    %v5252 = vld [vmem:[%s8 + $0x80] sm:$0xff]
    %v5253 = vld [vmem:[%s8 + $0x88] sm:$0xff]
    %v5254 = vld [vmem:[%s8 + $0x90] sm:$0xff]
    %v5255 = vld [vmem:[%s8 + $0x98] sm:$0xff]
    %v5256 = vld [vmem:[%s8 + $0xa0] sm:$0xff]
    %v5257 = vld [vmem:[%s8 + $0xa8] sm:$0xff]
    %v5258 = vld [vmem:[%s8 + $0xb0] sm:$0xff]
    %v5259 = vld [vmem:[%s8 + $0xb8] sm:$0xff]
    %v5260 = vld [vmem:[%s8 + $0xc0] sm:$0xff]
    %v5261 = vld [vmem:[%s8 + $0xc8] sm:$0xff]
    %v5262 = vld [vmem:[%s8 + $0xd0] sm:$0xff]
    %v5263 = vld [vmem:[%s8 + $0xd8] sm:$0xff]
    %v5264 = vld [vmem:[%s8 + $0xe0] sm:$0xff]
    %v5265 = vld [vmem:[%s8 + $0xe8] sm:$0xff]
    %v5266 = vld [vmem:[%s8 + $0xf0] sm:$0xff]
    %v5267 = vld [vmem:[%s8 + $0xf8] sm:$0xff]
    %v5268 = vld [vmem:[%s8 + $0x100] sm:$0xff]
    %v5269 = vld [vmem:[%s8 + $0x108] sm:$0xff]
    %v5270 = vld [vmem:[%s8 + $0x110] sm:$0xff]
    %v5271 = vld [vmem:[%s8 + $0x118] sm:$0xff]
    %v5272 = vld [vmem:[%s8 + $0x120] sm:$0xff]
    %v5273 = vld [vmem:[%s8 + $0x128] sm:$0xff]
    %v5274 = vld [vmem:[%s8 + $0x130] sm:$0xff]
    %v5275 = vld [vmem:[%s8 + $0x138] sm:$0xff]
    %v5276 = vld [vmem:[%s8 + $0x140] sm:$0xff]
    %v5277 = vld [vmem:[%s8 + $0x148] sm:$0xff]
    %v5278 = vld [vmem:[%s8 + $0x150] sm:$0xff]
    %v5279 = vld [vmem:[%s8 + $0x158] sm:$0xff]
    %v5280 = vld [vmem:[%s8 + $0x160] sm:$0xff]
    %v5281 = vld [vmem:[%s8 + $0x168] sm:$0xff]
    %v5282 = vld [vmem:[%s8 + $0x170] sm:$0xff]
    %v5283 = vld [vmem:[%s8 + $0x178] sm:$0xff]
    %v5284 = vld [vmem:[%s8 + $0x180] sm:$0xff]
    %v5285 = vld [vmem:[%s8 + $0x188] sm:$0xff]
    %v5286 = vld [vmem:[%s8 + $0x190] sm:$0xff]
    %v5287 = vld [vmem:[%s8 + $0x198] sm:$0xff]
    %v5288 = vld [vmem:[%s8 + $0x1a0] sm:$0xff]
    %v5289 = vld [vmem:[%s8 + $0x1a8] sm:$0xff]
    %v5290 = vld [vmem:[%s8 + $0x1b0] sm:$0xff]
    %v5291 = vld [vmem:[%s8 + $0x1b8] sm:$0xff]
    %v5292 = vld [vmem:[%s8 + $0x1c0] sm:$0xff]
    %v5293 = vld [vmem:[%s8 + $0x1c8] sm:$0xff]
    %v5294 = vld [vmem:[%s8 + $0x1d0] sm:$0xff]
    %v5295 = vld [vmem:[%s8 + $0x1d8] sm:$0xff]
    %v5296 = vld [vmem:[%s8 + $0x1e0] sm:$0xff]
    %v5297 = vld [vmem:[%s8 + $0x1e8] sm:$0xff]
    %v5298 = vld [vmem:[%s8 + $0x1f0] sm:$0xff]
    %v5299 = vld [vmem:[%s8 + $0x1f8] sm:$0xff]
    %v5300 = vld [vmem:[%s8 + $0x200] sm:$0xff]
    %v5301 = vld [vmem:[%s8 + $0x208] sm:$0xff]
    %v5302 = vld [vmem:[%s8 + $0x210] sm:$0xff]
    %v5303 = vld [vmem:[%s8 + $0x218] sm:$0xff]
    %v5304 = vld [vmem:[%s8 + $0x220] sm:$0xff]
    %v5305 = vld [vmem:[%s8 + $0x228] sm:$0xff]
    %v5306 = vld [vmem:[%s8 + $0x230] sm:$0xff]
    %v5307 = vld [vmem:[%s8 + $0x238] sm:$0xff]
    %v5308 = vld [vmem:[%s8 + $0x240] sm:$0xff]
    %v5309 = vld [vmem:[%s8 + $0x248] sm:$0xff]
    %v5310 = vld [vmem:[%s8 + $0x250] sm:$0xff]
    %v5311 = vld [vmem:[%s8 + $0x258] sm:$0xff]
    %v5312 = vld [vmem:[%s8 + $0x260] sm:$0xff]
    %v5313 = vld [vmem:[%s8 + $0x268] sm:$0xff]
    %v5314 = vld [vmem:[%s8 + $0x270] sm:$0xff]
    %v5315 = vld [vmem:[%s8 + $0x278] sm:$0xff]
    %v5316 = vld [vmem:[%s8 + $0x280] sm:$0xff]
    %v5317 = vld [vmem:[%s8 + $0x288] sm:$0xff]
    %v5318 = vld [vmem:[%s8 + $0x290] sm:$0xff]
    %v5319 = vld [vmem:[%s8 + $0x298] sm:$0xff]
    %v5320 = vld [vmem:[%s8 + $0x2a0] sm:$0xff]
    %v5321 = vld [vmem:[%s8 + $0x2a8] sm:$0xff]
    %v5322 = vld [vmem:[%s8 + $0x2b0] sm:$0xff]
    %v5323 = vld [vmem:[%s8 + $0x2b8] sm:$0xff]
    %v5324 = vld [vmem:[%s8 + $0x2c0] sm:$0xff]
    %v5325 = vld [vmem:[%s8 + $0x2c8] sm:$0xff]
    %v5326 = vld [vmem:[%s8 + $0x2d0] sm:$0xff]
    %v5327 = vld [vmem:[%s8 + $0x2d8] sm:$0x3f]
    %v5328 = vld [vmem:[%s8 + $0x2e0] sm:$0x3f]
    %v5329 = vld [vmem:[%s8 + $0x2e8] sm:$0x3f]
    %v5330 = vld [vmem:[%s8 + $0x2f0] sm:$0x3f]
    %v5331 = vld [vmem:[%s8 + $0x2f8] sm:$0x3f]
    %v5332 = vld [vmem:[%s8 + $0x300] sm:$0x3f]
    %v5333 = vld [vmem:[%s8 + $0x308] sm:$0x3f]
    %vm5334 = vcmask 523264
    %v5336 = vsel %vm5334, %v5242, 0
    %v5339 = vsel %vm5334, %v5249, 0
    %v5342 = vsel %vm5334, %v5256, 0
    %v5345 = vsel %vm5334, %v5263, 0
    %v5348 = vsel %vm5334, %v5270, 0
    %v5351 = vsel %vm5334, %v5277, 0
    %v5354 = vsel %vm5334, %v5284, 0
    %v5357 = vsel %vm5334, %v5291, 0
    %v5360 = vsel %vm5334, %v5298, 0
    %v5363 = vsel %vm5334, %v5305, 0
    %v5366 = vsel %vm5334, %v5312, 0
    %v5369 = vsel %vm5334, %v5319, 0
    %v5372 = vsel %vm5334, %v5326, 0
    %v5375 = vsel %vm5334, %v5333, 0
    %5377 = vmatprep.subr.mxu0 0.0
    %5378 = vmatpush1.msra.mxu0 %v5132
    %5379 = vmatprep.subr.mxu0 0.0
    %5380 = vmatpush1.msra.mxu0 %v5133
    %5381 = vmatprep.subr.mxu0 0.0
    %5382 = vmatpush1.msra.mxu0 %v5134
    %5383 = vmatprep.subr.mxu0 0.0
    %5384 = vmatpush1.msra.mxu0 %v5135
    %5385 = vmatprep.subr.mxu0 0.0
    %5386 = vmatpush1.msra.mxu0 %v5136
    %5387 = vmatprep.subr.mxu0 0.0
    %5388 = vmatpush1.msra.mxu0 %v5137
    %5389 = vmatprep.subr.mxu0 0.0
    %5390 = vmatpush1.msra.mxu0 %v5138
    %5391 = vmatprep.subr.mxu0 0.0
    %5392 = vmatpush1.msra.mxu0 %v5139
    %5393 = vmatprep.subr.mxu0 0.0
    %5394 = vmatpush1.msra.mxu0 %v5140
    %5395 = vmatprep.subr.mxu0 0.0
    %5396 = vmatpush1.msra.mxu0 %v5141
    %5397 = vmatprep.subr.mxu0 0.0
    %5398 = vmatpush1.msra.mxu0 %v5142
    %5399 = vmatprep.subr.mxu0 0.0
    %5400 = vmatpush1.msra.mxu0 %v5143
    %5401 = vmatprep.subr.mxu0 0.0
    %5402 = vmatpush1.msra.mxu0 %v5144
    %5403 = vmatprep.subr.mxu0 0.0
    %5404 = vmatpush1.msra.mxu0 %v5145
    %5405 = vmatprep.subr.mxu0 0.0
    %5406 = vmatpush1.msra.mxu0 %v5146
    %5407 = vmatprep.subr.mxu0 0.0
    %5408 = vmatpush1.msra.mxu0 %v5147
    %5409 = vmatprep.subr.mxu0 0.0
    %5410 = vmatpush1.msra.mxu0 %v5148
    %5411 = vmatprep.subr.mxu0 0.0
    %5412 = vmatpush1.msra.mxu0 %v5149
    %5413 = vmatprep.subr.mxu0 0.0
    %5414 = vmatpush1.msra.mxu0 %v5150
    %5415 = vmatprep.subr.mxu0 0.0
    %5416 = vmatpush1.msra.mxu0 %v5151
    %5417 = vmatprep.subr.mxu0 0.0
    %5418 = vmatpush1.msra.mxu0 %v5152
    %5419 = vmatprep.subr.mxu0 0.0
    %5420 = vmatpush1.msra.mxu0 %v5153
    %5421 = vmatprep.subr.mxu0 0.0
    %5422 = vmatpush1.msra.mxu0 %v5154
    %5423 = vmatprep.subr.mxu0 0.0
    %5424 = vmatpush1.msra.mxu0 %v5155
    %5425 = vmatprep.subr.mxu0 0.0
    %5426 = vmatpush1.msra.mxu0 %v5156
    %5427 = vmatprep.subr.mxu0 0.0
    %5428 = vmatpush1.msra.mxu0 %v5157
    %5429 = vmatprep.subr.mxu0 0.0
    %5430 = vmatpush1.msra.mxu0 %v5158
    %5431 = vmatprep.subr.mxu0 0.0
    %5432 = vmatpush1.msra.mxu0 %v5159
    %5433 = vmatprep.subr.mxu0 0.0
    %5434 = vmatpush1.msra.mxu0 %v5160
    %5435 = vmatprep.subr.mxu0 0.0
    %5436 = vmatpush1.msra.mxu0 %v5161
    %5437 = vmatprep.subr.mxu0 0.0
    %5438 = vmatpush1.msra.mxu0 %v5162
    %5439 = vmatprep.subr.mxu0 0.0
    %5440 = vmatpush1.msra.mxu0 %v5163
    %5441 = vmatprep.mubr.f32.mxu0 %v5237
    %5442 = vmatmul.mubr.f32.gmra.mrb[0].mxu0 %v5236
    %v5443 = vpop.f32.mrb[0].mxu0
    %v5444 = vadd.f32 0.0, %v5443
    %v5445 = vpop.f32.mrb[0].mxu0
    %5446 = vmatprep.mubr.f32.mxu0 %v5244
    %5447 = vmatmul.mubr.f32.gmra.mrb[0].mxu0 %v5243
    %v5448 = vpop.f32.mrb[0].mxu0
    %v5449 = vadd.f32 0.0, %v5448
    %v5450 = vpop.f32.mrb[0].mxu0
    %5451 = vmatprep.mubr.f32.mxu0 %v5251
    %5452 = vmatmul.mubr.f32.gmra.mrb[0].mxu0 %v5250
    %v5453 = vpop.f32.mrb[0].mxu0
    %v5454 = vadd.f32 0.0, %v5453
    %v5455 = vpop.f32.mrb[0].mxu0
    %5456 = vmatprep.mubr.f32.mxu0 %v5258
    %5457 = vmatmul.mubr.f32.gmra.mrb[0].mxu0 %v5257
    %v5458 = vpop.f32.mrb[0].mxu0
    %v5459 = vadd.f32 0.0, %v5458
    %v5460 = vpop.f32.mrb[0].mxu0
    %5461 = vmatprep.mubr.f32.mxu0 %v5265
    %5462 = vmatmul.mubr.f32.gmra.mrb[0].mxu0 %v5264
    %v5463 = vpop.f32.mrb[0].mxu0
    %v5464 = vadd.f32 0.0, %v5463
    %v5465 = vpop.f32.mrb[0].mxu0
    %5466 = vmatprep.mubr.f32.mxu0 %v5272
    %5467 = vmatmul.mubr.f32.gmra.mrb[0].mxu0 %v5271
    %v5468 = vpop.f32.mrb[0].mxu0
    %v5469 = vadd.f32 0.0, %v5468
    %v5470 = vpop.f32.mrb[0].mxu0
    %5471 = vmatprep.mubr.f32.mxu0 %v5279
    %5472 = vmatmul.mubr.f32.gmra.mrb[0].mxu0 %v5278
    %v5473 = vpop.f32.mrb[0].mxu0
    %v5474 = vadd.f32 0.0, %v5473
    %v5475 = vpop.f32.mrb[0].mxu0
    %5476 = vmatprep.mubr.f32.mxu0 %v5286
    %5477 = vmatmul.mubr.f32.gmra.mrb[0].mxu0 %v5285
    %v5478 = vpop.f32.mrb[0].mxu0
    %v5479 = vadd.f32 0.0, %v5478
    %v5480 = vpop.f32.mrb[0].mxu0
    %5481 = vmatprep.mubr.f32.mxu0 %v5293
    %5482 = vmatmul.mubr.f32.gmra.mrb[0].mxu0 %v5292
    %v5483 = vpop.f32.mrb[0].mxu0
    %v5484 = vadd.f32 0.0, %v5483
    %v5485 = vpop.f32.mrb[0].mxu0
    %5486 = vmatprep.mubr.f32.mxu0 %v5300
    %5487 = vmatmul.mubr.f32.gmra.mrb[0].mxu0 %v5299
    %v5488 = vpop.f32.mrb[0].mxu0
    %v5489 = vadd.f32 0.0, %v5488
    %v5490 = vpop.f32.mrb[0].mxu0
    %5491 = vmatprep.mubr.f32.mxu0 %v5307
    %5492 = vmatmul.mubr.f32.gmra.mrb[0].mxu0 %v5306
    %v5493 = vpop.f32.mrb[0].mxu0
    %v5494 = vadd.f32 0.0, %v5493
    %v5495 = vpop.f32.mrb[0].mxu0
    %5496 = vmatprep.mubr.f32.mxu0 %v5314
    %5497 = vmatmul.mubr.f32.gmra.mrb[0].mxu0 %v5313
    %v5498 = vpop.f32.mrb[0].mxu0
    %v5499 = vadd.f32 0.0, %v5498
    %v5500 = vpop.f32.mrb[0].mxu0
    %5501 = vmatprep.mubr.f32.mxu0 %v5321
    %5502 = vmatmul.mubr.f32.gmra.mrb[0].mxu0 %v5320
    %v5503 = vpop.f32.mrb[0].mxu0
    %v5504 = vadd.f32 0.0, %v5503
    %v5505 = vpop.f32.mrb[0].mxu0
    %5506 = vmatprep.mubr.f32.mxu0 %v5328
    %5507 = vmatmul.mubr.f32.gmra.mrb[0].mxu0 %v5327
    %v5508 = vpop.f32.mrb[0].mxu0
    %v5509 = vadd.f32 0.0, %v5508
    %v5510 = vpop.f32.mrb[0].mxu0
    %5511 = vdwg.mxu0
    %5512 = vmatprep.subr.mxu0 0.0
    %5513 = vmatpush1.msra.mxu0 %v5164
    %5514 = vmatprep.subr.mxu0 0.0
    %5515 = vmatpush1.msra.mxu0 %v5165
    %5516 = vmatprep.subr.mxu0 0.0
    %5517 = vmatpush1.msra.mxu0 %v5166
    %5518 = vmatprep.subr.mxu0 0.0
    %5519 = vmatpush1.msra.mxu0 %v5167
    %5520 = vmatprep.subr.mxu0 0.0
    %5521 = vmatpush1.msra.mxu0 %v5168
    %5522 = vmatprep.subr.mxu0 0.0
    %5523 = vmatpush1.msra.mxu0 %v5169
    %5524 = vmatprep.subr.mxu0 0.0
    %5525 = vmatpush1.msra.mxu0 %v5170
    %5526 = vmatprep.subr.mxu0 0.0
    %5527 = vmatpush1.msra.mxu0 %v5171
    %5528 = vmatprep.subr.mxu0 0.0
    %5529 = vmatpush1.msra.mxu0 %v5172
    %5530 = vmatprep.subr.mxu0 0.0
    %5531 = vmatpush1.msra.mxu0 %v5173
    %5532 = vmatprep.subr.mxu0 0.0
    %5533 = vmatpush1.msra.mxu0 %v5174
    %5534 = vmatprep.subr.mxu0 0.0
    %5535 = vmatpush1.msra.mxu0 %v5175
    %5536 = vmatprep.subr.mxu0 0.0
    %5537 = vmatpush1.msra.mxu0 %v5176
    %5538 = vmatprep.subr.mxu0 0.0
    %5539 = vmatpush1.msra.mxu0 %v5177
    %5540 = vmatprep.subr.mxu0 0.0
    %5541 = vmatpush1.msra.mxu0 %v5178
    %5542 = vmatprep.subr.mxu0 0.0
    %5543 = vmatpush1.msra.mxu0 %v5179
    %5544 = vmatprep.subr.mxu0 0.0
    %5545 = vmatpush1.msra.mxu0 %v5180
    %5546 = vmatprep.subr.mxu0 0.0
    %5547 = vmatpush1.msra.mxu0 %v5181
    %5548 = vmatprep.subr.mxu0 0.0
    %5549 = vmatpush1.msra.mxu0 %v5182
    %5550 = vmatprep.subr.mxu0 0.0
    %5551 = vmatpush1.msra.mxu0 %v5183
    %5552 = vmatprep.subr.mxu0 0.0
    %5553 = vmatpush1.msra.mxu0 %v5184
    %5554 = vmatprep.subr.mxu0 0.0
    %5555 = vmatpush1.msra.mxu0 %v5185
    %5556 = vmatprep.subr.mxu0 0.0
    %5557 = vmatpush1.msra.mxu0 %v5186
    %5558 = vmatprep.subr.mxu0 0.0
    %5559 = vmatpush1.msra.mxu0 %v5187
    %5560 = vmatprep.subr.mxu0 0.0
    %5561 = vmatpush1.msra.mxu0 %v5188
    %5562 = vmatprep.subr.mxu0 0.0
    %5563 = vmatpush1.msra.mxu0 %v5189
    %5564 = vmatprep.subr.mxu0 0.0
    %5565 = vmatpush1.msra.mxu0 %v5190
    %5566 = vmatprep.subr.mxu0 0.0
    %5567 = vmatpush1.msra.mxu0 %v5191
    %5568 = vmatprep.subr.mxu0 0.0
    %5569 = vmatpush1.msra.mxu0 %v5192
    %5570 = vmatprep.subr.mxu0 0.0
    %5571 = vmatpush1.msra.mxu0 %v5193
    %5572 = vmatprep.subr.mxu0 0.0
    %5573 = vmatpush1.msra.mxu0 %v5194
    %5574 = vmatprep.subr.mxu0 0.0
    %5575 = vmatpush1.msra.mxu0 %v5195
    %5576 = vmatprep.mubr.f32.mxu0 %v5239
    %5577 = vmatmul.mubr.f32.gmra.mrb[0].mxu0 %v5238
    %v5578 = vpop.f32.mrb[0].mxu0
    %v5579 = vadd.f32 %v5444, %v5578
    %v5580 = vpop.f32.mrb[0].mxu0
    %5581 = vmatprep.mubr.f32.mxu0 %v5246
    %5582 = vmatmul.mubr.f32.gmra.mrb[0].mxu0 %v5245
    %v5583 = vpop.f32.mrb[0].mxu0
    %v5584 = vadd.f32 %v5449, %v5583
    %v5585 = vpop.f32.mrb[0].mxu0
    %5586 = vmatprep.mubr.f32.mxu0 %v5253
    %5587 = vmatmul.mubr.f32.gmra.mrb[0].mxu0 %v5252
    %v5588 = vpop.f32.mrb[0].mxu0
    %v5589 = vadd.f32 %v5454, %v5588
    %v5590 = vpop.f32.mrb[0].mxu0
    %5591 = vmatprep.mubr.f32.mxu0 %v5260
    %5592 = vmatmul.mubr.f32.gmra.mrb[0].mxu0 %v5259
    %v5593 = vpop.f32.mrb[0].mxu0
    %v5594 = vadd.f32 %v5459, %v5593
    %v5595 = vpop.f32.mrb[0].mxu0
    %5596 = vmatprep.mubr.f32.mxu0 %v5267
    %5597 = vmatmul.mubr.f32.gmra.mrb[0].mxu0 %v5266
    %v5598 = vpop.f32.mrb[0].mxu0
    %v5599 = vadd.f32 %v5464, %v5598
    %v5600 = vpop.f32.mrb[0].mxu0
    %5601 = vmatprep.mubr.f32.mxu0 %v5274
    %5602 = vmatmul.mubr.f32.gmra.mrb[0].mxu0 %v5273
    %v5603 = vpop.f32.mrb[0].mxu0
    %v5604 = vadd.f32 %v5469, %v5603
    %v5605 = vpop.f32.mrb[0].mxu0
    %5606 = vmatprep.mubr.f32.mxu0 %v5281
    %5607 = vmatmul.mubr.f32.gmra.mrb[0].mxu0 %v5280
    %v5608 = vpop.f32.mrb[0].mxu0
    %v5609 = vadd.f32 %v5474, %v5608
    %v5610 = vpop.f32.mrb[0].mxu0
    %5611 = vmatprep.mubr.f32.mxu0 %v5288
    %5612 = vmatmul.mubr.f32.gmra.mrb[0].mxu0 %v5287
    %v5613 = vpop.f32.mrb[0].mxu0
    %v5614 = vadd.f32 %v5479, %v5613
    %v5615 = vpop.f32.mrb[0].mxu0
    %5616 = vmatprep.mubr.f32.mxu0 %v5295
    %5617 = vmatmul.mubr.f32.gmra.mrb[0].mxu0 %v5294
    %v5618 = vpop.f32.mrb[0].mxu0
    %v5619 = vadd.f32 %v5484, %v5618
    %v5620 = vpop.f32.mrb[0].mxu0
    %5621 = vmatprep.mubr.f32.mxu0 %v5302
    %5622 = vmatmul.mubr.f32.gmra.mrb[0].mxu0 %v5301
    %v5623 = vpop.f32.mrb[0].mxu0
    %v5624 = vadd.f32 %v5489, %v5623
    %v5625 = vpop.f32.mrb[0].mxu0
    %5626 = vmatprep.mubr.f32.mxu0 %v5309
    %5627 = vmatmul.mubr.f32.gmra.mrb[0].mxu0 %v5308
    %v5628 = vpop.f32.mrb[0].mxu0
    %v5629 = vadd.f32 %v5494, %v5628
    %v5630 = vpop.f32.mrb[0].mxu0
    %5631 = vmatprep.mubr.f32.mxu0 %v5316
    %5632 = vmatmul.mubr.f32.gmra.mrb[0].mxu0 %v5315
    %v5633 = vpop.f32.mrb[0].mxu0
    %v5634 = vadd.f32 %v5499, %v5633
    %v5635 = vpop.f32.mrb[0].mxu0
    %5636 = vmatprep.mubr.f32.mxu0 %v5323
    %5637 = vmatmul.mubr.f32.gmra.mrb[0].mxu0 %v5322
    %v5638 = vpop.f32.mrb[0].mxu0
    %v5639 = vadd.f32 %v5504, %v5638
    %v5640 = vpop.f32.mrb[0].mxu0
    %5641 = vmatprep.mubr.f32.mxu0 %v5330
    %5642 = vmatmul.mubr.f32.gmra.mrb[0].mxu0 %v5329
    %v5643 = vpop.f32.mrb[0].mxu0
    %v5644 = vadd.f32 %v5509, %v5643
    %v5645 = vpop.f32.mrb[0].mxu0
    %5646 = vdwg.mxu0
    %5647 = vmatprep.subr.mxu0 0.0
    %5648 = vmatpush1.msra.mxu0 %v5196
    %5649 = vmatprep.subr.mxu0 0.0
    %5650 = vmatpush1.msra.mxu0 %v5197
    %5651 = vmatprep.subr.mxu0 0.0
    %5652 = vmatpush1.msra.mxu0 %v5198
    %5653 = vmatprep.subr.mxu0 0.0
    %5654 = vmatpush1.msra.mxu0 %v5199
    %5655 = vmatprep.subr.mxu0 0.0
    %5656 = vmatpush1.msra.mxu0 %v5200
    %5657 = vmatprep.subr.mxu0 0.0
    %5658 = vmatpush1.msra.mxu0 %v5201
    %5659 = vmatprep.subr.mxu0 0.0
    %5660 = vmatpush1.msra.mxu0 %v5202
    %5661 = vmatprep.subr.mxu0 0.0
    %5662 = vmatpush1.msra.mxu0 %v5203
    %5663 = vmatprep.subr.mxu0 0.0
    %5664 = vmatpush1.msra.mxu0 %v5204
    %5665 = vmatprep.subr.mxu0 0.0
    %5666 = vmatpush1.msra.mxu0 %v5205
    %5667 = vmatprep.subr.mxu0 0.0
    %5668 = vmatpush1.msra.mxu0 %v5206
    %5669 = vmatprep.subr.mxu0 0.0
    %5670 = vmatpush1.msra.mxu0 %v5207
    %5671 = vmatprep.subr.mxu0 0.0
    %5672 = vmatpush1.msra.mxu0 %v5208
    %5673 = vmatprep.subr.mxu0 0.0
    %5674 = vmatpush1.msra.mxu0 %v5209
    %5675 = vmatprep.subr.mxu0 0.0
    %5676 = vmatpush1.msra.mxu0 %v5210
    %5677 = vmatprep.subr.mxu0 0.0
    %5678 = vmatpush1.msra.mxu0 %v5211
    %5679 = vmatprep.subr.mxu0 0.0
    %5680 = vmatpush1.msra.mxu0 %v5212
    %5681 = vmatprep.subr.mxu0 0.0
    %5682 = vmatpush1.msra.mxu0 %v5213
    %5683 = vmatprep.subr.mxu0 0.0
    %5684 = vmatpush1.msra.mxu0 %v5214
    %5685 = vmatprep.subr.mxu0 0.0
    %5686 = vmatpush1.msra.mxu0 %v5215
    %5687 = vmatprep.subr.mxu0 0.0
    %5688 = vmatpush1.msra.mxu0 %v5216
    %5689 = vmatprep.subr.mxu0 0.0
    %5690 = vmatpush1.msra.mxu0 %v5217
    %5691 = vmatprep.subr.mxu0 0.0
    %5692 = vmatpush1.msra.mxu0 %v5218
    %5693 = vmatprep.subr.mxu0 0.0
    %5694 = vmatpush1.msra.mxu0 %v5219
    %5695 = vmatprep.subr.mxu0 0.0
    %5696 = vmatpush1.msra.mxu0 %v5220
    %5697 = vmatprep.subr.mxu0 0.0
    %5698 = vmatpush1.msra.mxu0 %v5221
    %5699 = vmatprep.subr.mxu0 0.0
    %5700 = vmatpush1.msra.mxu0 %v5222
    %5701 = vmatprep.subr.mxu0 0.0
    %5702 = vmatpush1.msra.mxu0 %v5223
    %5703 = vmatprep.subr.mxu0 0.0
    %5704 = vmatpush1.msra.mxu0 %v5224
    %5705 = vmatprep.subr.mxu0 0.0
    %5706 = vmatpush1.msra.mxu0 %v5225
    %5707 = vmatprep.subr.mxu0 0.0
    %5708 = vmatpush1.msra.mxu0 %v5226
    %5709 = vmatprep.subr.mxu0 0.0
    %5710 = vmatpush1.msra.mxu0 %v5227
    %5711 = vmatprep.mubr.f32.mxu0 %v5241
    %5712 = vmatmul.mubr.f32.gmra.mrb[0].mxu0 %v5240
    %v5713 = vpop.f32.mrb[0].mxu0
    %v5714 = vadd.f32 %v5579, %v5713
    %v5715 = vpop.f32.mrb[0].mxu0
    %5716 = vmatprep.mubr.f32.mxu0 %v5248
    %5717 = vmatmul.mubr.f32.gmra.mrb[0].mxu0 %v5247
    %v5718 = vpop.f32.mrb[0].mxu0
    %v5719 = vadd.f32 %v5584, %v5718
    %v5720 = vpop.f32.mrb[0].mxu0
    %5721 = vmatprep.mubr.f32.mxu0 %v5255
    %5722 = vmatmul.mubr.f32.gmra.mrb[0].mxu0 %v5254
    %v5723 = vpop.f32.mrb[0].mxu0
    %v5724 = vadd.f32 %v5589, %v5723
    %v5725 = vpop.f32.mrb[0].mxu0
    %5726 = vmatprep.mubr.f32.mxu0 %v5262
    %5727 = vmatmul.mubr.f32.gmra.mrb[0].mxu0 %v5261
    %v5728 = vpop.f32.mrb[0].mxu0
    %v5729 = vadd.f32 %v5594, %v5728
    %v5730 = vpop.f32.mrb[0].mxu0
    %5731 = vmatprep.mubr.f32.mxu0 %v5269
    %5732 = vmatmul.mubr.f32.gmra.mrb[0].mxu0 %v5268
    %v5733 = vpop.f32.mrb[0].mxu0
    %v5734 = vadd.f32 %v5599, %v5733
    %v5735 = vpop.f32.mrb[0].mxu0
    %5736 = vmatprep.mubr.f32.mxu0 %v5276
    %5737 = vmatmul.mubr.f32.gmra.mrb[0].mxu0 %v5275
    %v5738 = vpop.f32.mrb[0].mxu0
    %v5739 = vadd.f32 %v5604, %v5738
    %v5740 = vpop.f32.mrb[0].mxu0
    %5741 = vmatprep.mubr.f32.mxu0 %v5283
    %5742 = vmatmul.mubr.f32.gmra.mrb[0].mxu0 %v5282
    %v5743 = vpop.f32.mrb[0].mxu0
    %v5744 = vadd.f32 %v5609, %v5743
    %v5745 = vpop.f32.mrb[0].mxu0
    %5746 = vmatprep.mubr.f32.mxu0 %v5290
    %5747 = vmatmul.mubr.f32.gmra.mrb[0].mxu0 %v5289
    %v5748 = vpop.f32.mrb[0].mxu0
    %v5749 = vadd.f32 %v5614, %v5748
    %v5750 = vpop.f32.mrb[0].mxu0
    %5751 = vmatprep.mubr.f32.mxu0 %v5297
    %5752 = vmatmul.mubr.f32.gmra.mrb[0].mxu0 %v5296
    %v5753 = vpop.f32.mrb[0].mxu0
    %v5754 = vadd.f32 %v5619, %v5753
    %v5755 = vpop.f32.mrb[0].mxu0
    %5756 = vmatprep.mubr.f32.mxu0 %v5304
    %5757 = vmatmul.mubr.f32.gmra.mrb[0].mxu0 %v5303
    %v5758 = vpop.f32.mrb[0].mxu0
    %v5759 = vadd.f32 %v5624, %v5758
    %v5760 = vpop.f32.mrb[0].mxu0
    %5761 = vmatprep.mubr.f32.mxu0 %v5311
    %5762 = vmatmul.mubr.f32.gmra.mrb[0].mxu0 %v5310
    %v5763 = vpop.f32.mrb[0].mxu0
    %v5764 = vadd.f32 %v5629, %v5763
    %v5765 = vpop.f32.mrb[0].mxu0
    %5766 = vmatprep.mubr.f32.mxu0 %v5318
    %5767 = vmatmul.mubr.f32.gmra.mrb[0].mxu0 %v5317
    %v5768 = vpop.f32.mrb[0].mxu0
    %v5769 = vadd.f32 %v5634, %v5768
    %v5770 = vpop.f32.mrb[0].mxu0
    %5771 = vmatprep.mubr.f32.mxu0 %v5325
    %5772 = vmatmul.mubr.f32.gmra.mrb[0].mxu0 %v5324
    %v5773 = vpop.f32.mrb[0].mxu0
    %v5774 = vadd.f32 %v5639, %v5773
    %v5775 = vpop.f32.mrb[0].mxu0
    %5776 = vmatprep.mubr.f32.mxu0 %v5332
    %5777 = vmatmul.mubr.f32.gmra.mrb[0].mxu0 %v5331
    %v5778 = vpop.f32.mrb[0].mxu0
    %v5779 = vadd.f32 %v5644, %v5778
    %v5780 = vpop.f32.mrb[0].mxu0
    %5781 = vdwg.mxu0
    %5782 = vmatprep.subr.mxu0 0.0
    %5783 = vmatpush1.msra.mxu0 %v5228
    %5784 = vmatprep.subr.mxu0 0.0
    %5785 = vmatpush1.msra.mxu0 %v5229
    %5786 = vmatprep.subr.mxu0 0.0
    %5787 = vmatpush1.msra.mxu0 %v5230
    %5788 = vmatprep.subr.mxu0 0.0
    %5789 = vmatpush1.msra.mxu0 %v5231
    %5790 = vmatprep.subr.mxu0 0.0
    %5791 = vmatpush1.msra.mxu0 %v5232
    %5792 = vmatprep.subr.mxu0 0.0
    %5793 = vmatpush1.msra.mxu0 %v5233
    %5794 = vmatprep.subr.mxu0 0.0
    %5795 = vmatpush1.msra.mxu0 %v5234
    %5796 = vmatprep.subr.mxu0 0.0
    %5797 = vmatpush1.msra.mxu0 %v5235
    %5798 = vmatprep.subr.mxu0 0.0
    %5799 = vmatpush1.msra.mxu0 0.0
    %5800 = vmatprep.subr.mxu0 0.0
    %5801 = vmatpush1.msra.mxu0 0.0
    %5802 = vmatprep.subr.mxu0 0.0
    %5803 = vmatpush1.msra.mxu0 0.0
    %5804 = vmatprep.subr.mxu0 0.0
    %5805 = vmatpush1.msra.mxu0 0.0
    %5806 = vmatprep.subr.mxu0 0.0
    %5807 = vmatpush1.msra.mxu0 0.0
    %5808 = vmatprep.subr.mxu0 0.0
    %5809 = vmatpush1.msra.mxu0 0.0
    %5810 = vmatprep.subr.mxu0 0.0
    %5811 = vmatpush1.msra.mxu0 0.0
    %5812 = vmatprep.subr.mxu0 0.0
    %5813 = vmatpush1.msra.mxu0 0.0
    %5814 = vmatprep.subr.mxu0 0.0
    %5815 = vmatpush1.msra.mxu0 0.0
    %5816 = vmatprep.subr.mxu0 0.0
    %5817 = vmatpush1.msra.mxu0 0.0
    %5818 = vmatprep.subr.mxu0 0.0
    %5819 = vmatpush1.msra.mxu0 0.0
    %5820 = vmatprep.subr.mxu0 0.0
    %5821 = vmatpush1.msra.mxu0 0.0
    %5822 = vmatprep.subr.mxu0 0.0
    %5823 = vmatpush1.msra.mxu0 0.0
    %5824 = vmatprep.subr.mxu0 0.0
    %5825 = vmatpush1.msra.mxu0 0.0
    %5826 = vmatprep.subr.mxu0 0.0
    %5827 = vmatpush1.msra.mxu0 0.0
    %5828 = vmatprep.subr.mxu0 0.0
    %5829 = vmatpush1.msra.mxu0 0.0
    %5830 = vmatprep.subr.mxu0 0.0
    %5831 = vmatpush1.msra.mxu0 0.0
    %5832 = vmatprep.subr.mxu0 0.0
    %5833 = vmatpush1.msra.mxu0 0.0
    %5834 = vmatprep.subr.mxu0 0.0
    %5835 = vmatpush1.msra.mxu0 0.0
    %5836 = vmatprep.subr.mxu0 0.0
    %5837 = vmatpush1.msra.mxu0 0.0
    %5838 = vmatprep.subr.mxu0 0.0
    %5839 = vmatpush1.msra.mxu0 0.0
    %5840 = vmatprep.subr.mxu0 0.0
    %5841 = vmatpush1.msra.mxu0 0.0
    %5842 = vmatprep.subr.mxu0 0.0
    %5843 = vmatpush1.msra.mxu0 0.0
    %5844 = vmatprep.subr.mxu0 0.0
    %5845 = vmatpush1.msra.mxu0 0.0
    %5846 = vmatprep.mubr.f32.mxu0 0.0
    %5847 = vmatmul.mubr.f32.gmra.mrb[0].mxu0 %v5336
    %v5848 = vpop.f32.mrb[0].mxu0
    %v5849 = vadd.f32 %v5714, %v5848
    %v5850 = vpop.f32.mrb[0].mxu0
    %5851 = vmatprep.mubr.f32.mxu0 0.0
    %5852 = vmatmul.mubr.f32.gmra.mrb[0].mxu0 %v5339
    %v5853 = vpop.f32.mrb[0].mxu0
    %v5854 = vadd.f32 %v5719, %v5853
    %v5855 = vpop.f32.mrb[0].mxu0
    %5856 = vmatprep.mubr.f32.mxu0 0.0
    %5857 = vmatmul.mubr.f32.gmra.mrb[0].mxu0 %v5342
    %v5858 = vpop.f32.mrb[0].mxu0
    %v5859 = vadd.f32 %v5724, %v5858
    %v5860 = vpop.f32.mrb[0].mxu0
    %5861 = vmatprep.mubr.f32.mxu0 0.0
    %5862 = vmatmul.mubr.f32.gmra.mrb[0].mxu0 %v5345
    %v5863 = vpop.f32.mrb[0].mxu0
    %v5864 = vadd.f32 %v5729, %v5863
    %v5865 = vpop.f32.mrb[0].mxu0
    %5866 = vmatprep.mubr.f32.mxu0 0.0
    %5867 = vmatmul.mubr.f32.gmra.mrb[0].mxu0 %v5348
    %v5868 = vpop.f32.mrb[0].mxu0
    %v5869 = vadd.f32 %v5734, %v5868
    %v5870 = vpop.f32.mrb[0].mxu0
    %5871 = vmatprep.mubr.f32.mxu0 0.0
    %5872 = vmatmul.mubr.f32.gmra.mrb[0].mxu0 %v5351
    %v5873 = vpop.f32.mrb[0].mxu0
    %v5874 = vadd.f32 %v5739, %v5873
    %v5875 = vpop.f32.mrb[0].mxu0
    %5876 = vmatprep.mubr.f32.mxu0 0.0
    %5877 = vmatmul.mubr.f32.gmra.mrb[0].mxu0 %v5354
    %v5878 = vpop.f32.mrb[0].mxu0
    %v5879 = vadd.f32 %v5744, %v5878
    %v5880 = vpop.f32.mrb[0].mxu0
    %5881 = vmatprep.mubr.f32.mxu0 0.0
    %5882 = vmatmul.mubr.f32.gmra.mrb[0].mxu0 %v5357
    %v5883 = vpop.f32.mrb[0].mxu0
    %v5884 = vadd.f32 %v5749, %v5883
    %v5885 = vpop.f32.mrb[0].mxu0
    %5886 = vmatprep.mubr.f32.mxu0 0.0
    %5887 = vmatmul.mubr.f32.gmra.mrb[0].mxu0 %v5360
    %v5888 = vpop.f32.mrb[0].mxu0
    %v5889 = vadd.f32 %v5754, %v5888
    %v5890 = vpop.f32.mrb[0].mxu0
    %5891 = vmatprep.mubr.f32.mxu0 0.0
    %5892 = vmatmul.mubr.f32.gmra.mrb[0].mxu0 %v5363
    %v5893 = vpop.f32.mrb[0].mxu0
    %v5894 = vadd.f32 %v5759, %v5893
    %v5895 = vpop.f32.mrb[0].mxu0
    %5896 = vmatprep.mubr.f32.mxu0 0.0
    %5897 = vmatmul.mubr.f32.gmra.mrb[0].mxu0 %v5366
    %v5898 = vpop.f32.mrb[0].mxu0
    %v5899 = vadd.f32 %v5764, %v5898
    %v5900 = vpop.f32.mrb[0].mxu0
    %5901 = vmatprep.mubr.f32.mxu0 0.0
    %5902 = vmatmul.mubr.f32.gmra.mrb[0].mxu0 %v5369
    %v5903 = vpop.f32.mrb[0].mxu0
    %v5904 = vadd.f32 %v5769, %v5903
    %v5905 = vpop.f32.mrb[0].mxu0
    %5906 = vmatprep.mubr.f32.mxu0 0.0
    %5907 = vmatmul.mubr.f32.gmra.mrb[0].mxu0 %v5372
    %v5908 = vpop.f32.mrb[0].mxu0
    %v5909 = vadd.f32 %v5774, %v5908
    %v5910 = vpop.f32.mrb[0].mxu0
    %5911 = vmatprep.mubr.f32.mxu0 0.0
    %5912 = vmatmul.mubr.f32.gmra.mrb[0].mxu0 %v5375
    %v5913 = vpop.f32.mrb[0].mxu0
    %v5914 = vadd.f32 %v5779, %v5913
    %v5915 = vpop.f32.mrb[0].mxu0
    %5916 = vdwg.mxu0
    %v5917 = vld [vmem:[%s9] sm:$0xff]
    %v5918 = vld [vmem:[%s9 + $0x8] sm:$0xff]
    %v5919 = vld [vmem:[%s9 + $0x10] sm:$0xff]
    %v5920 = vld [vmem:[%s9 + $0x18] sm:$0xff]
    %v5921 = vld [vmem:[%s9 + $0x20] sm:$0xff]
    %v5922 = vld [vmem:[%s9 + $0x28] sm:$0xff]
    %v5923 = vld [vmem:[%s9 + $0x30] sm:$0xff]
    %v5924 = vld [vmem:[%s9 + $0x38] sm:$0xff]
    %v5925 = vld [vmem:[%s9 + $0x40] sm:$0xff]
    %v5926 = vld [vmem:[%s9 + $0x48] sm:$0xff]
    %v5927 = vld [vmem:[%s9 + $0x50] sm:$0xff]
    %v5928 = vld [vmem:[%s9 + $0x58] sm:$0xff]
    %v5929 = vld [vmem:[%s9 + $0x60] sm:$0xff]
    %v5930 = vld [vmem:[%s9 + $0x68] sm:$0x3f]
    %5932 = vset.pattern.permute.xlu0 0
    %5933 = vperm.xlu0 %5932, %v5917
    %v5934 = vpop.permute.xlu0 %5933
    %5937 = vset.pattern.permute.xlu0 0
    %5938 = vperm.xlu0 %5937, %v5918
    %v5939 = vpop.permute.xlu0 %5938
    %5942 = vset.pattern.permute.xlu0 0
    %5943 = vperm.xlu0 %5942, %v5919
    %v5944 = vpop.permute.xlu0 %5943
    %5947 = vset.pattern.permute.xlu0 0
    %5948 = vperm.xlu0 %5947, %v5920
    %v5949 = vpop.permute.xlu0 %5948
    %5952 = vset.pattern.permute.xlu0 0
    %5953 = vperm.xlu0 %5952, %v5921
    %v5954 = vpop.permute.xlu0 %5953
    %5957 = vset.pattern.permute.xlu0 0
    %5958 = vperm.xlu0 %5957, %v5922
    %v5959 = vpop.permute.xlu0 %5958
    %5962 = vset.pattern.permute.xlu0 0
    %5963 = vperm.xlu0 %5962, %v5923
    %v5964 = vpop.permute.xlu0 %5963
    %5967 = vset.pattern.permute.xlu0 0
    %5968 = vperm.xlu0 %5967, %v5924
    %v5969 = vpop.permute.xlu0 %5968
    %5972 = vset.pattern.permute.xlu0 0
    %5973 = vperm.xlu0 %5972, %v5925
    %v5974 = vpop.permute.xlu0 %5973
    %5977 = vset.pattern.permute.xlu0 0
    %5978 = vperm.xlu0 %5977, %v5926
    %v5979 = vpop.permute.xlu0 %5978
    %5982 = vset.pattern.permute.xlu0 0
    %5983 = vperm.xlu0 %5982, %v5927
    %v5984 = vpop.permute.xlu0 %5983
    %5987 = vset.pattern.permute.xlu0 0
    %5988 = vperm.xlu0 %5987, %v5928
    %v5989 = vpop.permute.xlu0 %5988
    %5992 = vset.pattern.permute.xlu0 0
    %5993 = vperm.xlu0 %5992, %v5929
    %v5994 = vpop.permute.xlu0 %5993
    %5997 = vset.pattern.permute.xlu0 0
    %5998 = vperm.xlu0 %5997, %v5930
    %v5999 = vpop.permute.xlu0 %5998
    %v6001 = vmul.f32 %v5849, %v5934
    %v6002 = vmul.f32 %v5854, %v5939
    %v6003 = vmul.f32 %v5859, %v5944
    %v6004 = vmul.f32 %v5864, %v5949
    %v6005 = vmul.f32 %v5869, %v5954
    %v6006 = vmul.f32 %v5874, %v5959
    %v6007 = vmul.f32 %v5879, %v5964
    %v6008 = vmul.f32 %v5884, %v5969
    %v6009 = vmul.f32 %v5889, %v5974
    %v6010 = vmul.f32 %v5894, %v5979
    %v6011 = vmul.f32 %v5899, %v5984
    %v6012 = vmul.f32 %v5904, %v5989
    %v6013 = vmul.f32 %v5909, %v5994
    %v6014 = vmul.f32 %v5914, %v5999
    %v6015 = vld [vmem:[%s10] sm:$0xff]
    %v6016 = vld [vmem:[%s10 + $0x8] sm:$0xff]
    %v6017 = vld [vmem:[%s10 + $0x10] sm:$0xff]
    %v6018 = vld [vmem:[%s10 + $0x18] sm:$0xff]
    %v6019 = vld [vmem:[%s10 + $0x20] sm:$0xff]
    %v6020 = vld [vmem:[%s10 + $0x28] sm:$0xff]
    %v6021 = vld [vmem:[%s10 + $0x30] sm:$0xff]
    %v6022 = vld [vmem:[%s10 + $0x38] sm:$0xff]
    %v6023 = vld [vmem:[%s10 + $0x40] sm:$0xff]
    %v6024 = vld [vmem:[%s10 + $0x48] sm:$0xff]
    %v6025 = vld [vmem:[%s10 + $0x50] sm:$0xff]
    %v6026 = vld [vmem:[%s10 + $0x58] sm:$0xff]
    %v6027 = vld [vmem:[%s10 + $0x60] sm:$0xff]
    %v6028 = vld [vmem:[%s10 + $0x68] sm:$0x3f]
    %6030 = vset.pattern.permute.xlu0 0
    %6031 = vperm.xlu0 %6030, %v6015
    %v6032 = vpop.permute.xlu0 %6031
    %6035 = vset.pattern.permute.xlu0 0
    %6036 = vperm.xlu0 %6035, %v6016
    %v6037 = vpop.permute.xlu0 %6036
    %6040 = vset.pattern.permute.xlu0 0
    %6041 = vperm.xlu0 %6040, %v6017
    %v6042 = vpop.permute.xlu0 %6041
    %6045 = vset.pattern.permute.xlu0 0
    %6046 = vperm.xlu0 %6045, %v6018
    %v6047 = vpop.permute.xlu0 %6046
    %6050 = vset.pattern.permute.xlu0 0
    %6051 = vperm.xlu0 %6050, %v6019
    %v6052 = vpop.permute.xlu0 %6051
    %6055 = vset.pattern.permute.xlu0 0
    %6056 = vperm.xlu0 %6055, %v6020
    %v6057 = vpop.permute.xlu0 %6056
    %6060 = vset.pattern.permute.xlu0 0
    %6061 = vperm.xlu0 %6060, %v6021
    %v6062 = vpop.permute.xlu0 %6061
    %6065 = vset.pattern.permute.xlu0 0
    %6066 = vperm.xlu0 %6065, %v6022
    %v6067 = vpop.permute.xlu0 %6066
    %6070 = vset.pattern.permute.xlu0 0
    %6071 = vperm.xlu0 %6070, %v6023
    %v6072 = vpop.permute.xlu0 %6071
    %6075 = vset.pattern.permute.xlu0 0
    %6076 = vperm.xlu0 %6075, %v6024
    %v6077 = vpop.permute.xlu0 %6076
    %6080 = vset.pattern.permute.xlu0 0
    %6081 = vperm.xlu0 %6080, %v6025
    %v6082 = vpop.permute.xlu0 %6081
    %6085 = vset.pattern.permute.xlu0 0
    %6086 = vperm.xlu0 %6085, %v6026
    %v6087 = vpop.permute.xlu0 %6086
    %6090 = vset.pattern.permute.xlu0 0
    %6091 = vperm.xlu0 %6090, %v6027
    %v6092 = vpop.permute.xlu0 %6091
    %6095 = vset.pattern.permute.xlu0 0
    %6096 = vperm.xlu0 %6095, %v6028
    %v6097 = vpop.permute.xlu0 %6096
    %v6099 = vadd.f32 %v6001, %v6032
    %v6100 = vadd.f32 %v6002, %v6037
    %v6101 = vadd.f32 %v6003, %v6042
    %v6102 = vadd.f32 %v6004, %v6047
    %v6103 = vadd.f32 %v6005, %v6052
    %v6104 = vadd.f32 %v6006, %v6057
    %v6105 = vadd.f32 %v6007, %v6062
    %v6106 = vadd.f32 %v6008, %v6067
    %v6107 = vadd.f32 %v6009, %v6072
    %v6108 = vadd.f32 %v6010, %v6077
    %v6109 = vadd.f32 %v6011, %v6082
    %v6110 = vadd.f32 %v6012, %v6087
    %v6111 = vadd.f32 %v6013, %v6092
    %v6112 = vadd.f32 %v6014, %v6097
    %vm6113 = vcmp.gt.f32.partialorder %v6099, 0.0
    %vm6114 = vcmp.gt.f32.partialorder %v6100, 0.0
    %vm6115 = vcmp.gt.f32.partialorder %v6101, 0.0
    %vm6116 = vcmp.gt.f32.partialorder %v6102, 0.0
    %vm6117 = vcmp.gt.f32.partialorder %v6103, 0.0
    %vm6118 = vcmp.gt.f32.partialorder %v6104, 0.0
    %vm6119 = vcmp.gt.f32.partialorder %v6105, 0.0
    %vm6120 = vcmp.gt.f32.partialorder %v6106, 0.0
    %vm6121 = vcmp.gt.f32.partialorder %v6107, 0.0
    %vm6122 = vcmp.gt.f32.partialorder %v6108, 0.0
    %vm6123 = vcmp.gt.f32.partialorder %v6109, 0.0
    %vm6124 = vcmp.gt.f32.partialorder %v6110, 0.0
    %vm6125 = vcmp.gt.f32.partialorder %v6111, 0.0
    %vm6126 = vcmp.gt.f32.partialorder %v6112, 0.0
    %v6127 = vmul.f32 %v6099, 0.01
    %v6128 = vmul.f32 %v6100, 0.01
    %v6129 = vmul.f32 %v6101, 0.01
    %v6130 = vmul.f32 %v6102, 0.01
    %v6131 = vmul.f32 %v6103, 0.01
    %v6132 = vmul.f32 %v6104, 0.01
    %v6133 = vmul.f32 %v6105, 0.01
    %v6134 = vmul.f32 %v6106, 0.01
    %v6135 = vmul.f32 %v6107, 0.01
    %v6136 = vmul.f32 %v6108, 0.01
    %v6137 = vmul.f32 %v6109, 0.01
    %v6138 = vmul.f32 %v6110, 0.01
    %v6139 = vmul.f32 %v6111, 0.01
    %v6140 = vmul.f32 %v6112, 0.01
    %v6141 = vsel %vm6113, %v6099, %v6127
    %v6142 = vsel %vm6114, %v6100, %v6128
    %v6143 = vsel %vm6115, %v6101, %v6129
    %v6144 = vsel %vm6116, %v6102, %v6130
    %v6145 = vsel %vm6117, %v6103, %v6131
    %v6146 = vsel %vm6118, %v6104, %v6132
    %v6147 = vsel %vm6119, %v6105, %v6133
    %v6148 = vsel %vm6120, %v6106, %v6134
    %v6149 = vsel %vm6121, %v6107, %v6135
    %v6150 = vsel %vm6122, %v6108, %v6136
    %v6151 = vsel %vm6123, %v6109, %v6137
    %v6152 = vsel %vm6124, %v6110, %v6138
    %v6153 = vsel %vm6125, %v6111, %v6139
    %v6154 = vsel %vm6126, %v6112, %v6140
    %6155 = vst [vmem:[#allocation8] sm:$0xff] %v6141
    %6156 = vst [vmem:[#allocation8 + $0x8] sm:$0xff] %v6142
    %6157 = vst [vmem:[#allocation8 + $0x10] sm:$0xff] %v6143
    %6158 = vst [vmem:[#allocation8 + $0x18] sm:$0xff] %v6144
    %6159 = vst [vmem:[#allocation8 + $0x20] sm:$0xff] %v6145
    %6160 = vst [vmem:[#allocation8 + $0x28] sm:$0xff] %v6146
    %6161 = vst [vmem:[#allocation8 + $0x30] sm:$0xff] %v6147
    %6162 = vst [vmem:[#allocation8 + $0x38] sm:$0xff] %v6148
    %6163 = vst [vmem:[#allocation8 + $0x40] sm:$0xff] %v6149
    %6164 = vst [vmem:[#allocation8 + $0x48] sm:$0xff] %v6150
    %6165 = vst [vmem:[#allocation8 + $0x50] sm:$0xff] %v6151
    %6166 = vst [vmem:[#allocation8 + $0x58] sm:$0xff] %v6152
    %6167 = vst [vmem:[#allocation8 + $0x60] sm:$0xff] %v6153
    %6168 = vst [vmem:[#allocation8 + $0x68] sm:$0x3f] %v6154
    // Predicated region
    $region58: #{tpu_custom_call.1} parent=1 // pred_check
      _
    $region59: #{tpu_custom_call.1} parent=1 // pred_check_branch
      %6170 = sbr.rel (0) target = $region61
    $region60: #{tpu_custom_call.1} parent=1 // pred_region
      %s6172 = ssub.s32 1792, 1792
      %6173 = vsyncadd [#allocation4], %s6172
      %s6174 = sshll.u32 [#allocation8], 4
      %s6175 = int_to_ptr.vmem [resolvable:$true] %s6174
      %6180 = dma.vmem_to_hbm [thread:$0]  %s6175, 1792, %s11, [#allocation4], 128, 128, 8
    $region61: #{tpu_custom_call.1} parent=1 // pred_fallthru
      _
    // Predicated region
    $region62: #{tpu_custom_call.1} parent=1 // pred_check
      _
    $region63: #{tpu_custom_call.1} parent=1 // pred_check_branch
      %6182 = sbr.rel (0) target = $region65
    $region64: #{tpu_custom_call.1} parent=1 // pred_region
      %6183 = dma.done [#allocation4], 1792
    $region65: #{tpu_custom_call.1} parent=1 // pred_fallthru
      _
    %6184 = vsyncpa [#allocation3], 1
    %6185 = vsyncpa [#allocation6], 1
    %6186 = vsyncpa [#allocation4], 1

</llo_original>
